<compile_context>
chip_gen: v7x
topology: tpu7x:2x2x1
jax: 0.10.0
libtpu: 0.0.40
codegen_flags: <defaults>
</compile_context>

<pallas_src>
import numpy as np
import jax
import jax.numpy as jnp
from jax.experimental import pallas as pl
from jax.experimental.pallas import tpu as pltpu

# ---- fixed geometry (28x28 input -> 4x4 before the classifier) ---------------
WA, LA = 30, 1024     # stage A: 30x30 zero-padded 28x28 frame, flattened, lane-padded
WB, LB = 16, 256      # stage B: 16x16 zero-padded 14x14 frame
WC, LC = 10, 128      # stage C: 10-wide zero-padded 7x7 frame (flattened 100 -> 128)
WD, LD = 10, 128      # stage D: 10x10 zero-padded 8x8 frame
CIN_PAD = 8           # input channels padded to a full sublane tile


# ------------------------------ in-kernel helpers ------------------------------


def _shift(v, d):
    """new[..., p] = v[..., (p + d) % L]  (lane 'read-ahead' by d; d may be < 0)."""
    L = v.shape[-1]
    s = (-d) % L
    if s == 0:
        return v
    return pltpu.roll(v, shift=s, axis=v.ndim - 1)


def _conv_relu(frame, w_ref, b_ref, wf, kh, kw):
    """One zero-padded conv + bias + ReLU as a single MXU matmul.

    frame : (cin, L) f32 flattened zero-padded frame (row stride wf).
    w_ref : (cout, kh*kw*cin) bf16, tap-major / channel-minor K layout.
    b_ref : (cout, 1) f32.
    Returns (cout, L) f32 in the same flattened coordinates (row stride wf);
    columns outside the valid output window hold garbage (masked by callers
    only where it can reach a halo).
    """
    taps = [dy * wf + dx for dy in range(kh) for dx in range(kw)]
    rhs = jnp.concatenate([_shift(frame, d) for d in taps], axis=0)
    out = jnp.dot(w_ref[...], rhs.astype(jnp.bfloat16),
                  preferred_element_type=jnp.float32)
    return jnp.maximum(out + b_ref[...], 0.0)


def _pool2x2_max(o, wf):
    """Elementwise max of the 2x2 window anchored at every flattened position;
    the stride-2 anchor selection happens later via a selection matmul."""
    return jnp.maximum(jnp.maximum(o, _shift(o, 1)),
                       jnp.maximum(_shift(o, wf), _shift(o, wf + 1)))


# ----------------------------------- kernel ------------------------------------


def _fwd_kernel(xf_ref, w1, b1, w2, b2, w3, b3, w4, b4, w5, b5,
                s1_ref, s2_ref, g_ref, bfc_ref, ma_ref, mc_ref, o_ref):
    # conv_block_1: Conv3x3 + ReLU, Conv3x3 + ReLU, MaxPool2
    f0 = xf_ref[0]                                        # (8, LA) padded input frame
    o1 = _conv_relu(f0, w1, b1, WA, 3, 3)
    f1 = _shift(o1 * ma_ref[...], -(WA + 1))              # masked garbage -> zero halos
    o2 = _conv_relu(f1, w2, b2, WA, 3, 3)
    m1 = _pool2x2_max(o2, WA)
    f2 = jnp.dot(m1.astype(jnp.bfloat16), s1_ref[...],    # pick anchors + scatter into
                 preferred_element_type=jnp.float32)      # next padded frame (hid, LB)

    # conv_block_2: Conv3x3 + ReLU, MaxPool2
    o3 = _conv_relu(f2, w3, b3, WB, 3, 3)
    m2 = _pool2x2_max(o3, WB)
    f3 = jnp.dot(m2.astype(jnp.bfloat16), s2_ref[...],
                 preferred_element_type=jnp.float32)      # (hid, LC) padded frame

    # conv_block_3: Conv2x2(p=1) + ReLU, Conv3x3 + ReLU, MaxPool2
    o4 = _conv_relu(f3, w4, b4, WC, 2, 2)
    f4 = _shift(o4 * mc_ref[...], -(WD + 1))              # (hid, LD) padded frame
    o5 = _conv_relu(f4, w5, b5, WD, 3, 3)
    m3 = _pool2x2_max(o5, WD)                             # (hid, LD)

    # classifier: torch CHW flatten + Linear, folded into per-channel K=128 dots
    acc = bfc_ref[...]                                    # (1, nout) f32
    for c in range(m3.shape[0]):
        lhs = m3[c:c + 1, :].astype(jnp.bfloat16)         # (1, LD)
        acc = acc + jnp.dot(lhs, g_ref[c, :, :],
                            preferred_element_type=jnp.float32)
    o_ref[...] = acc.reshape(1, 1, acc.shape[-1])


# ----------------------------------- wrapper ------------------------------------


def _build_input_frames(x_nchw):
    """NCHW input -> flattened zero-padded stage-A frames (n, CIN_PAD, LA) f32."""
    n, cin, h, w = x_nchw.shape
    assert (h, w) == (28, 28) and cin <= CIN_PAD
    x = x_nchw.astype(jnp.float32)
    x = jnp.pad(x, ((0, 0), (0, CIN_PAD - cin), (1, 1), (1, 1)))   # chan pad + halo
    x = x.reshape(n, CIN_PAD, WA * WA)
    return jnp.pad(x, ((0, 0), (0, 0), (0, LA - WA * WA)))


def fashion_mnist_forward(kp, x_nchw):
    """Fused forward pass. kp = prepare_params(init_params(...)), x in NCHW."""
    n = x_nchw.shape[0]
    nout = kp["bfc"].shape[1]
    xf = _build_input_frames(x_nchw)

    params = (kp["w1"], kp["b1"], kp["w2"], kp["b2"], kp["w3"], kp["b3"],
              kp["w4"], kp["b4"], kp["w5"], kp["b5"],
              kp["s1"], kp["s2"], kp["g"], kp["bfc"], kp["mask_a"], kp["mask_c"])

    in_specs = [pl.BlockSpec((1, CIN_PAD, LA), lambda b: (b, 0, 0))]
    for arr in params:
        in_specs.append(pl.BlockSpec(arr.shape, lambda b, nd=arr.ndim: (0,) * nd))

    out = pl.pallas_call(
        _fwd_kernel,
        out_shape=jax.ShapeDtypeStruct((n, 1, nout), jnp.float32),
        grid_spec=pltpu.PrefetchScalarGridSpec(
            num_scalar_prefetch=0,
            grid=(n,),
            in_specs=in_specs,
            out_specs=pl.BlockSpec((1, 1, nout), lambda b: (b, 0, 0))),
        compiler_params=pltpu.CompilerParams(
            dimension_semantics=("parallel",)),          # 2 TCs on v7x
    )(xf, *params)
    return out[:, 0, :]


# ---------------------------------- parameters ----------------------------------


def _conv_init(key, cout, cin, kh, kw):
    k1, k2 = jax.random.split(key)
    bound = 1.0 / (cin * kh * kw) ** 0.5
    w = jax.random.uniform(k1, (cout, cin, kh, kw), jnp.float32, -bound, bound)
    b = jax.random.uniform(k2, (cout,), jnp.float32, -bound, bound)
    return w, b


def _linear_init(key, out_f, in_f):
    k1, k2 = jax.random.split(key)
    bound = 1.0 / in_f ** 0.5
    w = jax.random.uniform(k1, (out_f, in_f), jnp.float32, -bound, bound)
    b = jax.random.uniform(k2, (out_f,), jnp.float32, -bound, bound)
    return w, b


def init_params(key, input_shape, hidden_units, output_shape):
    """PyTorch-layout parameters (OIHW convs, (out,in) linear)."""
    ks = jax.random.split(key, 6)
    p = {}
    p["c1_w"], p["c1_b"] = _conv_init(ks[0], hidden_units, input_shape, 3, 3)
    p["c2_w"], p["c2_b"] = _conv_init(ks[1], hidden_units, hidden_units, 3, 3)
    p["c3_w"], p["c3_b"] = _conv_init(ks[2], hidden_units, hidden_units, 3, 3)
    p["c4_w"], p["c4_b"] = _conv_init(ks[3], hidden_units, hidden_units, 2, 2)
    p["c5_w"], p["c5_b"] = _conv_init(ks[4], hidden_units, hidden_units, 3, 3)
    p["fc_w"], p["fc_b"] = _linear_init(ks[5], output_shape, hidden_units * 4 * 4)
    return p


def prepare_params(p):
    """One-time re-layout of PyTorch params into the kernel layout."""
    def conv_mat(w, cin_pad=None):
        cout, cin, kh, kw = w.shape
        if cin_pad is not None and cin < cin_pad:
            w = jnp.pad(w, ((0, 0), (0, cin_pad - cin), (0, 0), (0, 0)))
        cin2 = w.shape[1]
        wm = jnp.transpose(w, (0, 2, 3, 1)).reshape(cout, kh * kw * cin2)
        return wm.astype(jnp.bfloat16)                    # tap-major, channel-minor K

    def bias(b):
        return b.reshape(-1, 1).astype(jnp.float32)

    kp = {
        "w1": conv_mat(p["c1_w"], CIN_PAD), "b1": bias(p["c1_b"]),
        "w2": conv_mat(p["c2_w"]), "b2": bias(p["c2_b"]),
        "w3": conv_mat(p["c3_w"]), "b3": bias(p["c3_b"]),
        "w4": conv_mat(p["c4_w"]), "b4": bias(p["c4_b"]),
        "w5": conv_mat(p["c5_w"]), "b5": bias(p["c5_b"]),
    }

    # Pool "selection" matrices: pick every stride-2 2x2 anchor and scatter it
    # straight into the interior of the next zero-padded frame (halos stay 0).
    s1 = np.zeros((LA, LB), np.float32)
    for py in range(14):
        for px in range(14):
            s1[2 * py * WA + 2 * px, (1 + py) * WB + (1 + px)] = 1.0
    s2 = np.zeros((LB, LC), np.float32)
    for py in range(7):
        for px in range(7):
            s2[2 * py * WB + 2 * px, (1 + py) * WC + (1 + px)] = 1.0
    kp["s1"] = jnp.asarray(s1, jnp.bfloat16)
    kp["s2"] = jnp.asarray(s2, jnp.bfloat16)

    # Valid-output masks for the two convs whose outputs are rolled into a new
    # zero-padded frame (conv1: 28x28 @ row-stride 30; conv4: 8x8 @ row-stride 10).
    pa = np.arange(LA)
    kp["mask_a"] = jnp.asarray(((pa < 28 * WA) & (pa % WA < 28))
                               .astype(np.float32)[None, :])
    pc = np.arange(LC)
    kp["mask_c"] = jnp.asarray(((pc < 8 * WC) & (pc % WC < 8))
                               .astype(np.float32)[None, :])

    # Classifier: fold torch's CHW Flatten and the final 2x2 pool anchor
    # selection into per-channel weights g[c, 2py*WD+2px, o] = fc_w[o, c*16+py*4+px].
    out_f, in_f = p["fc_w"].shape
    hid = p["c5_w"].shape[0]
    assert in_f == hid * 16
    fc = p["fc_w"].reshape(out_f, hid, 16)                # [o, c, s], s = py*4 + px
    sel = np.zeros((LD, 16), np.float32)
    for py in range(4):
        for px in range(4):
            sel[2 * py * WD + 2 * px, py * 4 + px] = 1.0
    g = jnp.einsum("ps,ocs->cpo", jnp.asarray(sel), fc)   # (hid, LD, out_f)
    kp["g"] = g.astype(jnp.bfloat16)
    kp["bfc"] = p["fc_b"].reshape(1, out_f).astype(jnp.float32)
    return kp


# ------------------------------- pure-JAX reference ------------------------------


def reference_forward(p, x_nchw):
    x = jnp.transpose(x_nchw, (0, 2, 3, 1)).astype(jnp.float32)

    def conv(x, w, b):
        w_hwio = jnp.transpose(w, (2, 3, 1, 0))
        y = jax.lax.conv_general_dilated(
            x, w_hwio, window_strides=(1, 1), padding=((1, 1), (1, 1)),
            dimension_numbers=("NHWC", "HWIO", "NHWC"))
        return jnp.maximum(y + b.reshape(1, 1, 1, -1), 0.0)

    def pool(x):
        return jax.lax.reduce_window(x, -jnp.inf, jax.lax.max,
                                     (1, 2, 2, 1), (1, 2, 2, 1), "VALID")

    x = conv(x, p["c1_w"], p["c1_b"])
    x = conv(x, p["c2_w"], p["c2_b"])
    x = pool(x)
    x = conv(x, p["c3_w"], p["c3_b"])
    x = pool(x)
    x = conv(x, p["c4_w"], p["c4_b"])
    x = conv(x, p["c5_w"], p["c5_b"])
    x = pool(x)
    x = jnp.transpose(x, (0, 3, 1, 2)).reshape(x.shape[0], -1)   # torch Flatten (CHW)
    return x @ p["fc_w"].T + p["fc_b"]


# ------------------------------------- main --------------------------------------


if __name__ == "__main__":
    # Spatial size must be 28x28 so the Flatten matches hidden_units * 4 * 4.
    batch, in_channels, hidden_units, num_classes = 2, 4, 8, 10

    root = jax.random.PRNGKey(0)
    k_params, k_x = jax.random.split(root)
    params = init_params(k_params, in_channels, hidden_units, num_classes)
    kparams = prepare_params(params)      # one-time weight / constant re-layout
    x = jax.random.normal(k_x, (batch, in_channels, 28, 28), jnp.float32)

    logits = jax.jit(fashion_mnist_forward)(kparams, x)
    logits = jax.block_until_ready(logits)

    assert logits.shape == (batch, num_classes), logits.shape
    assert logits.dtype == jnp.float32

    ref = reference_forward(params, x)
    err = jnp.max(jnp.abs(logits - ref))
    assert err < 2e-2, float(err)   # bf16 matmul inputs, f32 accumulation

    print("KERNEL_OK")
</pallas_src>

<mosaic_0001>
module attributes {stable_mosaic.version = 11 : i64} {
  func.func @_fwd_kernel(%arg0: i32, %arg1: memref<1x8x1024xf32, #tpu.memory_space<vmem>>, %arg2: memref<8x72xbf16, #tpu.memory_space<vmem>>, %arg3: memref<8x1xf32, #tpu.memory_space<vmem>>, %arg4: memref<8x72xbf16, #tpu.memory_space<vmem>>, %arg5: memref<8x1xf32, #tpu.memory_space<vmem>>, %arg6: memref<8x72xbf16, #tpu.memory_space<vmem>>, %arg7: memref<8x1xf32, #tpu.memory_space<vmem>>, %arg8: memref<8x32xbf16, #tpu.memory_space<vmem>>, %arg9: memref<8x1xf32, #tpu.memory_space<vmem>>, %arg10: memref<8x72xbf16, #tpu.memory_space<vmem>>, %arg11: memref<8x1xf32, #tpu.memory_space<vmem>>, %arg12: memref<1024x256xbf16, #tpu.memory_space<vmem>>, %arg13: memref<256x128xbf16, #tpu.memory_space<vmem>>, %arg14: memref<8x128x10xbf16, #tpu.memory_space<vmem>>, %arg15: memref<1x10xf32, #tpu.memory_space<vmem>>, %arg16: memref<1x1024xf32, #tpu.memory_space<vmem>>, %arg17: memref<1x128xf32, #tpu.memory_space<vmem>>, %arg18: memref<1x1x10xf32, #tpu.memory_space<vmem>>) attributes {dimension_semantics = [#tpu.dimension_semantics<parallel>], iteration_bounds = array<i64: 2>, scalar_prefetch = 0 : i64, scratch_operands = 0 : i64, tpu.core_type = #tpu.core_type<tc>, window_params = [{transform_indices = @transform_0, window_bounds = array<i64: 1, 8, 1024>}, {pipeline_mode = #tpu.pipeline_mode<synchronous>, transform_indices = @transform_1, window_bounds = array<i64: 8, 72>}, {pipeline_mode = #tpu.pipeline_mode<synchronous>, transform_indices = @transform_2, window_bounds = array<i64: 8, 1>}, {pipeline_mode = #tpu.pipeline_mode<synchronous>, transform_indices = @transform_3, window_bounds = array<i64: 8, 72>}, {pipeline_mode = #tpu.pipeline_mode<synchronous>, transform_indices = @transform_4, window_bounds = array<i64: 8, 1>}, {pipeline_mode = #tpu.pipeline_mode<synchronous>, transform_indices = @transform_5, window_bounds = array<i64: 8, 72>}, {pipeline_mode = #tpu.pipeline_mode<synchronous>, transform_indices = @transform_6, window_bounds = array<i64: 8, 1>}, {pipeline_mode = #tpu.pipeline_mode<synchronous>, transform_indices = @transform_7, window_bounds = array<i64: 8, 32>}, {pipeline_mode = #tpu.pipeline_mode<synchronous>, transform_indices = @transform_8, window_bounds = array<i64: 8, 1>}, {pipeline_mode = #tpu.pipeline_mode<synchronous>, transform_indices = @transform_9, window_bounds = array<i64: 8, 72>}, {pipeline_mode = #tpu.pipeline_mode<synchronous>, transform_indices = @transform_10, window_bounds = array<i64: 8, 1>}, {pipeline_mode = #tpu.pipeline_mode<synchronous>, transform_indices = @transform_11, window_bounds = array<i64: 1024, 256>}, {pipeline_mode = #tpu.pipeline_mode<synchronous>, transform_indices = @transform_12, window_bounds = array<i64: 256, 128>}, {pipeline_mode = #tpu.pipeline_mode<synchronous>, transform_indices = @transform_13, window_bounds = array<i64: 8, 128, 10>}, {pipeline_mode = #tpu.pipeline_mode<synchronous>, transform_indices = @transform_14, window_bounds = array<i64: 1, 10>}, {pipeline_mode = #tpu.pipeline_mode<synchronous>, transform_indices = @transform_15, window_bounds = array<i64: 1, 1024>}, {pipeline_mode = #tpu.pipeline_mode<synchronous>, transform_indices = @transform_16, window_bounds = array<i64: 1, 128>}, {transform_indices = @transform_17, window_bounds = array<i64: 1, 1, 10>}]} {
    %c0 = arith.constant 0 : index
    %c0_0 = arith.constant 0 : index
    %c0_1 = arith.constant 0 : index
    %0 = vector.load %arg1[%c0, %c0_0, %c0_1] : memref<1x8x1024xf32, #tpu.memory_space<vmem>>, vector<1x8x1024xf32>
    %1 = vector.shape_cast %0 : vector<1x8x1024xf32> to vector<8x1024xf32>
    %c1023_i32 = arith.constant 1023 : i32
    %2 = tpu.dynamic_rotate %1 by %c1023_i32 dim 1 : vector<8x1024xf32>, i32 -> vector<8x1024xf32>
    %c1022_i32 = arith.constant 1022 : i32
    %3 = tpu.dynamic_rotate %1 by %c1022_i32 dim 1 : vector<8x1024xf32>, i32 -> vector<8x1024xf32>
    %c994_i32 = arith.constant 994 : i32
    %4 = tpu.dynamic_rotate %1 by %c994_i32 dim 1 : vector<8x1024xf32>, i32 -> vector<8x1024xf32>
    %c993_i32 = arith.constant 993 : i32
    %5 = tpu.dynamic_rotate %1 by %c993_i32 dim 1 : vector<8x1024xf32>, i32 -> vector<8x1024xf32>
    %c992_i32 = arith.constant 992 : i32
    %6 = tpu.dynamic_rotate %1 by %c992_i32 dim 1 : vector<8x1024xf32>, i32 -> vector<8x1024xf32>
    %c964_i32 = arith.constant 964 : i32
    %7 = tpu.dynamic_rotate %1 by %c964_i32 dim 1 : vector<8x1024xf32>, i32 -> vector<8x1024xf32>
    %c963_i32 = arith.constant 963 : i32
    %8 = tpu.dynamic_rotate %1 by %c963_i32 dim 1 : vector<8x1024xf32>, i32 -> vector<8x1024xf32>
    %c962_i32 = arith.constant 962 : i32
    %9 = tpu.dynamic_rotate %1 by %c962_i32 dim 1 : vector<8x1024xf32>, i32 -> vector<8x1024xf32>
    %10 = tpu.concatenate %1, %2, %3, %4, %5, %6, %7, %8, %9 in 0 : vector<8x1024xf32>, vector<8x1024xf32>, vector<8x1024xf32>, vector<8x1024xf32>, vector<8x1024xf32>, vector<8x1024xf32>, vector<8x1024xf32>, vector<8x1024xf32>, vector<8x1024xf32> -> vector<72x1024xf32>
    %c0_2 = arith.constant 0 : index
    %c0_3 = arith.constant 0 : index
    %11 = vector.load %arg2[%c0_2, %c0_3] : memref<8x72xbf16, #tpu.memory_space<vmem>>, vector<8x72xbf16>
    %12 = arith.truncf %10 : vector<72x1024xf32> to vector<72x1024xbf16>
    %cst = arith.constant dense<0.000000e+00> : vector<8x1024xf32>
    %13 = tpu.matmul %11, %12, %cst {dimension_numbers = #tpu.dot_dimension_numbers<[1], [0], [0], [1], [0, 0, 1, 1], [], []>} : vector<8x72xbf16>, vector<72x1024xbf16>, vector<8x1024xf32> -> vector<8x1024xf32>
    %c0_4 = arith.constant 0 : index
    %c0_5 = arith.constant 0 : index
    %14 = vector.load %arg3[%c0_4, %c0_5] : memref<8x1xf32, #tpu.memory_space<vmem>>, vector<8x1xf32>
    %15 = vector.broadcast %14 : vector<8x1xf32> to vector<8x1024xf32>
    %16 = arith.addf %13, %15 : vector<8x1024xf32>
    %cst_6 = arith.constant 0.000000e+00 : f32
    %17 = vector.broadcast %cst_6 : f32 to vector<8x1024xf32>
    %18 = arith.maximumf %16, %17 : vector<8x1024xf32>
    %c0_7 = arith.constant 0 : index
    %c0_8 = arith.constant 0 : index
    %19 = vector.load %arg16[%c0_7, %c0_8] : memref<1x1024xf32, #tpu.memory_space<vmem>>, vector<1x1024xf32>
    %20 = vector.broadcast %19 : vector<1x1024xf32> to vector<8x1024xf32>
    %21 = arith.mulf %18, %20 : vector<8x1024xf32>
    %c31_i32 = arith.constant 31 : i32
    %22 = tpu.dynamic_rotate %21 by %c31_i32 dim 1 : vector<8x1024xf32>, i32 -> vector<8x1024xf32>
    %c1023_i32_9 = arith.constant 1023 : i32
    %23 = tpu.dynamic_rotate %22 by %c1023_i32_9 dim 1 : vector<8x1024xf32>, i32 -> vector<8x1024xf32>
    %c1022_i32_10 = arith.constant 1022 : i32
    %24 = tpu.dynamic_rotate %22 by %c1022_i32_10 dim 1 : vector<8x1024xf32>, i32 -> vector<8x1024xf32>
    %c994_i32_11 = arith.constant 994 : i32
    %25 = tpu.dynamic_rotate %22 by %c994_i32_11 dim 1 : vector<8x1024xf32>, i32 -> vector<8x1024xf32>
    %c993_i32_12 = arith.constant 993 : i32
    %26 = tpu.dynamic_rotate %22 by %c993_i32_12 dim 1 : vector<8x1024xf32>, i32 -> vector<8x1024xf32>
    %c992_i32_13 = arith.constant 992 : i32
    %27 = tpu.dynamic_rotate %22 by %c992_i32_13 dim 1 : vector<8x1024xf32>, i32 -> vector<8x1024xf32>
    %c964_i32_14 = arith.constant 964 : i32
    %28 = tpu.dynamic_rotate %22 by %c964_i32_14 dim 1 : vector<8x1024xf32>, i32 -> vector<8x1024xf32>
    %c963_i32_15 = arith.constant 963 : i32
    %29 = tpu.dynamic_rotate %22 by %c963_i32_15 dim 1 : vector<8x1024xf32>, i32 -> vector<8x1024xf32>
    %c962_i32_16 = arith.constant 962 : i32
    %30 = tpu.dynamic_rotate %22 by %c962_i32_16 dim 1 : vector<8x1024xf32>, i32 -> vector<8x1024xf32>
    %31 = tpu.concatenate %22, %23, %24, %25, %26, %27, %28, %29, %30 in 0 : vector<8x1024xf32>, vector<8x1024xf32>, vector<8x1024xf32>, vector<8x1024xf32>, vector<8x1024xf32>, vector<8x1024xf32>, vector<8x1024xf32>, vector<8x1024xf32>, vector<8x1024xf32> -> vector<72x1024xf32>
    %c0_17 = arith.constant 0 : index
    %c0_18 = arith.constant 0 : index
    %32 = vector.load %arg4[%c0_17, %c0_18] : memref<8x72xbf16, #tpu.memory_space<vmem>>, vector<8x72xbf16>
    %33 = arith.truncf %31 : vector<72x1024xf32> to vector<72x1024xbf16>
    %cst_19 = arith.constant dense<0.000000e+00> : vector<8x1024xf32>
    %34 = tpu.matmul %32, %33, %cst_19 {dimension_numbers = #tpu.dot_dimension_numbers<[1], [0], [0], [1], [0, 0, 1, 1], [], []>} : vector<8x72xbf16>, vector<72x1024xbf16>, vector<8x1024xf32> -> vector<8x1024xf32>
    %c0_20 = arith.constant 0 : index
    %c0_21 = arith.constant 0 : index
    %35 = vector.load %arg5[%c0_20, %c0_21] : memref<8x1xf32, #tpu.memory_space<vmem>>, vector<8x1xf32>
    %36 = vector.broadcast %35 : vector<8x1xf32> to vector<8x1024xf32>
    %37 = arith.addf %34, %36 : vector<8x1024xf32>
    %cst_22 = arith.constant 0.000000e+00 : f32
    %38 = vector.broadcast %cst_22 : f32 to vector<8x1024xf32>
    %39 = arith.maximumf %37, %38 : vector<8x1024xf32>
    %c1023_i32_23 = arith.constant 1023 : i32
    %40 = tpu.dynamic_rotate %39 by %c1023_i32_23 dim 1 : vector<8x1024xf32>, i32 -> vector<8x1024xf32>
    %41 = arith.maximumf %39, %40 : vector<8x1024xf32>
    %c994_i32_24 = arith.constant 994 : i32
    %42 = tpu.dynamic_rotate %39 by %c994_i32_24 dim 1 : vector<8x1024xf32>, i32 -> vector<8x1024xf32>
    %c993_i32_25 = arith.constant 993 : i32
    %43 = tpu.dynamic_rotate %39 by %c993_i32_25 dim 1 : vector<8x1024xf32>, i32 -> vector<8x1024xf32>
    %44 = arith.maximumf %42, %43 : vector<8x1024xf32>
    %45 = arith.maximumf %41, %44 : vector<8x1024xf32>
    %46 = arith.truncf %45 : vector<8x1024xf32> to vector<8x1024xbf16>
    %c0_26 = arith.constant 0 : index
    %c0_27 = arith.constant 0 : index
    %47 = vector.load %arg12[%c0_26, %c0_27] : memref<1024x256xbf16, #tpu.memory_space<vmem>>, vector<1024x256xbf16>
    %cst_28 = arith.constant dense<0.000000e+00> : vector<8x256xf32>
    %48 = tpu.matmul %46, %47, %cst_28 {dimension_numbers = #tpu.dot_dimension_numbers<[1], [0], [0], [1], [0, 0, 1, 1], [], []>} : vector<8x1024xbf16>, vector<1024x256xbf16>, vector<8x256xf32> -> vector<8x256xf32>
    %c255_i32 = arith.constant 255 : i32
    %49 = tpu.dynamic_rotate %48 by %c255_i32 dim 1 : vector<8x256xf32>, i32 -> vector<8x256xf32>
    %c254_i32 = arith.constant 254 : i32
    %50 = tpu.dynamic_rotate %48 by %c254_i32 dim 1 : vector<8x256xf32>, i32 -> vector<8x256xf32>
    %c240_i32 = arith.constant 240 : i32
    %51 = tpu.dynamic_rotate %48 by %c240_i32 dim 1 : vector<8x256xf32>, i32 -> vector<8x256xf32>
    %c239_i32 = arith.constant 239 : i32
    %52 = tpu.dynamic_rotate %48 by %c239_i32 dim 1 : vector<8x256xf32>, i32 -> vector<8x256xf32>
    %c238_i32 = arith.constant 238 : i32
    %53 = tpu.dynamic_rotate %48 by %c238_i32 dim 1 : vector<8x256xf32>, i32 -> vector<8x256xf32>
    %c224_i32 = arith.constant 224 : i32
    %54 = tpu.dynamic_rotate %48 by %c224_i32 dim 1 : vector<8x256xf32>, i32 -> vector<8x256xf32>
    %c223_i32 = arith.constant 223 : i32
    %55 = tpu.dynamic_rotate %48 by %c223_i32 dim 1 : vector<8x256xf32>, i32 -> vector<8x256xf32>
    %c222_i32 = arith.constant 222 : i32
    %56 = tpu.dynamic_rotate %48 by %c222_i32 dim 1 : vector<8x256xf32>, i32 -> vector<8x256xf32>
    %57 = tpu.concatenate %48, %49, %50, %51, %52, %53, %54, %55, %56 in 0 : vector<8x256xf32>, vector<8x256xf32>, vector<8x256xf32>, vector<8x256xf32>, vector<8x256xf32>, vector<8x256xf32>, vector<8x256xf32>, vector<8x256xf32>, vector<8x256xf32> -> vector<72x256xf32>
    %c0_29 = arith.constant 0 : index
    %c0_30 = arith.constant 0 : index
    %58 = vector.load %arg6[%c0_29, %c0_30] : memref<8x72xbf16, #tpu.memory_space<vmem>>, vector<8x72xbf16>
    %59 = arith.truncf %57 : vector<72x256xf32> to vector<72x256xbf16>
    %cst_31 = arith.constant dense<0.000000e+00> : vector<8x256xf32>
    %60 = tpu.matmul %58, %59, %cst_31 {dimension_numbers = #tpu.dot_dimension_numbers<[1], [0], [0], [1], [0, 0, 1, 1], [], []>} : vector<8x72xbf16>, vector<72x256xbf16>, vector<8x256xf32> -> vector<8x256xf32>
    %c0_32 = arith.constant 0 : index
    %c0_33 = arith.constant 0 : index
    %61 = vector.load %arg7[%c0_32, %c0_33] : memref<8x1xf32, #tpu.memory_space<vmem>>, vector<8x1xf32>
    %62 = vector.broadcast %61 : vector<8x1xf32> to vector<8x256xf32>
    %63 = arith.addf %60, %62 : vector<8x256xf32>
    %cst_34 = arith.constant 0.000000e+00 : f32
    %64 = vector.broadcast %cst_34 : f32 to vector<8x256xf32>
    %65 = arith.maximumf %63, %64 : vector<8x256xf32>
    %c255_i32_35 = arith.constant 255 : i32
    %66 = tpu.dynamic_rotate %65 by %c255_i32_35 dim 1 : vector<8x256xf32>, i32 -> vector<8x256xf32>
    %67 = arith.maximumf %65, %66 : vector<8x256xf32>
    %c240_i32_36 = arith.constant 240 : i32
    %68 = tpu.dynamic_rotate %65 by %c240_i32_36 dim 1 : vector<8x256xf32>, i32 -> vector<8x256xf32>
    %c239_i32_37 = arith.constant 239 : i32
    %69 = tpu.dynamic_rotate %65 by %c239_i32_37 dim 1 : vector<8x256xf32>, i32 -> vector<8x256xf32>
    %70 = arith.maximumf %68, %69 : vector<8x256xf32>
    %71 = arith.maximumf %67, %70 : vector<8x256xf32>
    %72 = arith.truncf %71 : vector<8x256xf32> to vector<8x256xbf16>
    %c0_38 = arith.constant 0 : index
    %c0_39 = arith.constant 0 : index
    %73 = vector.load %arg13[%c0_38, %c0_39] : memref<256x128xbf16, #tpu.memory_space<vmem>>, vector<256x128xbf16>
    %cst_40 = arith.constant dense<0.000000e+00> : vector<8x128xf32>
    %74 = tpu.matmul %72, %73, %cst_40 {dimension_numbers = #tpu.dot_dimension_numbers<[1], [0], [0], [1], [0, 0, 1, 1], [], []>} : vector<8x256xbf16>, vector<256x128xbf16>, vector<8x128xf32> -> vector<8x128xf32>
    %c127_i32 = arith.constant 127 : i32
    %75 = tpu.dynamic_rotate %74 by %c127_i32 dim 1 : vector<8x128xf32>, i32 -> vector<8x128xf32>
    %c118_i32 = arith.constant 118 : i32
    %76 = tpu.dynamic_rotate %74 by %c118_i32 dim 1 : vector<8x128xf32>, i32 -> vector<8x128xf32>
    %c117_i32 = arith.constant 117 : i32
    %77 = tpu.dynamic_rotate %74 by %c117_i32 dim 1 : vector<8x128xf32>, i32 -> vector<8x128xf32>
    %78 = tpu.concatenate %74, %75, %76, %77 in 0 : vector<8x128xf32>, vector<8x128xf32>, vector<8x128xf32>, vector<8x128xf32> -> vector<32x128xf32>
    %c0_41 = arith.constant 0 : index
    %c0_42 = arith.constant 0 : index
    %79 = vector.load %arg8[%c0_41, %c0_42] : memref<8x32xbf16, #tpu.memory_space<vmem>>, vector<8x32xbf16>
    %80 = arith.truncf %78 : vector<32x128xf32> to vector<32x128xbf16>
    %cst_43 = arith.constant dense<0.000000e+00> : vector<8x128xf32>
    %81 = tpu.matmul %79, %80, %cst_43 {dimension_numbers = #tpu.dot_dimension_numbers<[1], [0], [0], [1], [0, 0, 1, 1], [], []>} : vector<8x32xbf16>, vector<32x128xbf16>, vector<8x128xf32> -> vector<8x128xf32>
    %c0_44 = arith.constant 0 : index
    %c0_45 = arith.constant 0 : index
    %82 = vector.load %arg9[%c0_44, %c0_45] : memref<8x1xf32, #tpu.memory_space<vmem>>, vector<8x1xf32>
    %83 = vector.broadcast %82 : vector<8x1xf32> to vector<8x128xf32>
    %84 = arith.addf %81, %83 : vector<8x128xf32>
    %cst_46 = arith.constant 0.000000e+00 : f32
    %85 = vector.broadcast %cst_46 : f32 to vector<8x128xf32>
    %86 = arith.maximumf %84, %85 : vector<8x128xf32>
    %c0_47 = arith.constant 0 : index
    %c0_48 = arith.constant 0 : index
    %87 = vector.load %arg17[%c0_47, %c0_48] : memref<1x128xf32, #tpu.memory_space<vmem>>, vector<1x128xf32>
    %88 = vector.broadcast %87 : vector<1x128xf32> to vector<8x128xf32>
    %89 = arith.mulf %86, %88 : vector<8x128xf32>
    %c11_i32 = arith.constant 11 : i32
    %90 = tpu.dynamic_rotate %89 by %c11_i32 dim 1 : vector<8x128xf32>, i32 -> vector<8x128xf32>
    %c127_i32_49 = arith.constant 127 : i32
    %91 = tpu.dynamic_rotate %90 by %c127_i32_49 dim 1 : vector<8x128xf32>, i32 -> vector<8x128xf32>
    %c126_i32 = arith.constant 126 : i32
    %92 = tpu.dynamic_rotate %90 by %c126_i32 dim 1 : vector<8x128xf32>, i32 -> vector<8x128xf32>
    %c118_i32_50 = arith.constant 118 : i32
    %93 = tpu.dynamic_rotate %90 by %c118_i32_50 dim 1 : vector<8x128xf32>, i32 -> vector<8x128xf32>
    %c117_i32_51 = arith.constant 117 : i32
    %94 = tpu.dynamic_rotate %90 by %c117_i32_51 dim 1 : vector<8x128xf32>, i32 -> vector<8x128xf32>
    %c116_i32 = arith.constant 116 : i32
    %95 = tpu.dynamic_rotate %90 by %c116_i32 dim 1 : vector<8x128xf32>, i32 -> vector<8x128xf32>
    %c108_i32 = arith.constant 108 : i32
    %96 = tpu.dynamic_rotate %90 by %c108_i32 dim 1 : vector<8x128xf32>, i32 -> vector<8x128xf32>
    %c107_i32 = arith.constant 107 : i32
    %97 = tpu.dynamic_rotate %90 by %c107_i32 dim 1 : vector<8x128xf32>, i32 -> vector<8x128xf32>
    %c106_i32 = arith.constant 106 : i32
    %98 = tpu.dynamic_rotate %90 by %c106_i32 dim 1 : vector<8x128xf32>, i32 -> vector<8x128xf32>
    %99 = tpu.concatenate %90, %91, %92, %93, %94, %95, %96, %97, %98 in 0 : vector<8x128xf32>, vector<8x128xf32>, vector<8x128xf32>, vector<8x128xf32>, vector<8x128xf32>, vector<8x128xf32>, vector<8x128xf32>, vector<8x128xf32>, vector<8x128xf32> -> vector<72x128xf32>
    %c0_52 = arith.constant 0 : index
    %c0_53 = arith.constant 0 : index
    %100 = vector.load %arg10[%c0_52, %c0_53] : memref<8x72xbf16, #tpu.memory_space<vmem>>, vector<8x72xbf16>
    %101 = arith.truncf %99 : vector<72x128xf32> to vector<72x128xbf16>
    %cst_54 = arith.constant dense<0.000000e+00> : vector<8x128xf32>
    %102 = tpu.matmul %100, %101, %cst_54 {dimension_numbers = #tpu.dot_dimension_numbers<[1], [0], [0], [1], [0, 0, 1, 1], [], []>} : vector<8x72xbf16>, vector<72x128xbf16>, vector<8x128xf32> -> vector<8x128xf32>
    %c0_55 = arith.constant 0 : index
    %c0_56 = arith.constant 0 : index
    %103 = vector.load %arg11[%c0_55, %c0_56] : memref<8x1xf32, #tpu.memory_space<vmem>>, vector<8x1xf32>
    %104 = vector.broadcast %103 : vector<8x1xf32> to vector<8x128xf32>
    %105 = arith.addf %102, %104 : vector<8x128xf32>
    %cst_57 = arith.constant 0.000000e+00 : f32
    %106 = vector.broadcast %cst_57 : f32 to vector<8x128xf32>
    %107 = arith.maximumf %105, %106 : vector<8x128xf32>
    %c127_i32_58 = arith.constant 127 : i32
    %108 = tpu.dynamic_rotate %107 by %c127_i32_58 dim 1 : vector<8x128xf32>, i32 -> vector<8x128xf32>
    %109 = arith.maximumf %107, %108 : vector<8x128xf32>
    %c118_i32_59 = arith.constant 118 : i32
    %110 = tpu.dynamic_rotate %107 by %c118_i32_59 dim 1 : vector<8x128xf32>, i32 -> vector<8x128xf32>
    %c117_i32_60 = arith.constant 117 : i32
    %111 = tpu.dynamic_rotate %107 by %c117_i32_60 dim 1 : vector<8x128xf32>, i32 -> vector<8x128xf32>
    %112 = arith.maximumf %110, %111 : vector<8x128xf32>
    %113 = arith.maximumf %109, %112 : vector<8x128xf32>
    %c0_61 = arith.constant 0 : index
    %c0_62 = arith.constant 0 : index
    %114 = vector.load %arg15[%c0_61, %c0_62] : memref<1x10xf32, #tpu.memory_space<vmem>>, vector<1x10xf32>
    %115 = vector.extract_strided_slice %113 {offsets = [0, 0], sizes = [1, 128], strides = [1, 1]} : vector<8x128xf32> to vector<1x128xf32>
    %116 = arith.truncf %115 : vector<1x128xf32> to vector<1x128xbf16>
    %c0_63 = arith.constant 0 : index
    %c0_64 = arith.constant 0 : index
    %c0_65 = arith.constant 0 : index
    %117 = vector.load %arg14[%c0_63, %c0_64, %c0_65] : memref<8x128x10xbf16, #tpu.memory_space<vmem>>, vector<1x128x10xbf16>
    %118 = vector.shape_cast %117 : vector<1x128x10xbf16> to vector<128x10xbf16>
    %cst_66 = arith.constant dense<0.000000e+00> : vector<1x10xf32>
    %119 = tpu.matmul %116, %118, %cst_66 {dimension_numbers = #tpu.dot_dimension_numbers<[1], [0], [0], [1], [0, 0, 1, 1], [], []>} : vector<1x128xbf16>, vector<128x10xbf16>, vector<1x10xf32> -> vector<1x10xf32>
    %120 = arith.addf %114, %119 : vector<1x10xf32>
    %121 = vector.extract_strided_slice %113 {offsets = [1, 0], sizes = [1, 128], strides = [1, 1]} : vector<8x128xf32> to vector<1x128xf32>
    %122 = arith.truncf %121 : vector<1x128xf32> to vector<1x128xbf16>
    %c1 = arith.constant 1 : index
    %c0_67 = arith.constant 0 : index
    %c0_68 = arith.constant 0 : index
    %123 = vector.load %arg14[%c1, %c0_67, %c0_68] : memref<8x128x10xbf16, #tpu.memory_space<vmem>>, vector<1x128x10xbf16>
    %124 = vector.shape_cast %123 : vector<1x128x10xbf16> to vector<128x10xbf16>
    %cst_69 = arith.constant dense<0.000000e+00> : vector<1x10xf32>
    %125 = tpu.matmul %122, %124, %cst_69 {dimension_numbers = #tpu.dot_dimension_numbers<[1], [0], [0], [1], [0, 0, 1, 1], [], []>} : vector<1x128xbf16>, vector<128x10xbf16>, vector<1x10xf32> -> vector<1x10xf32>
    %126 = arith.addf %120, %125 : vector<1x10xf32>
    %127 = vector.extract_strided_slice %113 {offsets = [2, 0], sizes = [1, 128], strides = [1, 1]} : vector<8x128xf32> to vector<1x128xf32>
    %128 = arith.truncf %127 : vector<1x128xf32> to vector<1x128xbf16>
    %c2 = arith.constant 2 : index
    %c0_70 = arith.constant 0 : index
    %c0_71 = arith.constant 0 : index
    %129 = vector.load %arg14[%c2, %c0_70, %c0_71] : memref<8x128x10xbf16, #tpu.memory_space<vmem>>, vector<1x128x10xbf16>
    %130 = vector.shape_cast %129 : vector<1x128x10xbf16> to vector<128x10xbf16>
    %cst_72 = arith.constant dense<0.000000e+00> : vector<1x10xf32>
    %131 = tpu.matmul %128, %130, %cst_72 {dimension_numbers = #tpu.dot_dimension_numbers<[1], [0], [0], [1], [0, 0, 1, 1], [], []>} : vector<1x128xbf16>, vector<128x10xbf16>, vector<1x10xf32> -> vector<1x10xf32>
    %132 = arith.addf %126, %131 : vector<1x10xf32>
    %133 = vector.extract_strided_slice %113 {offsets = [3, 0], sizes = [1, 128], strides = [1, 1]} : vector<8x128xf32> to vector<1x128xf32>
    %134 = arith.truncf %133 : vector<1x128xf32> to vector<1x128xbf16>
    %c3 = arith.constant 3 : index
    %c0_73 = arith.constant 0 : index
    %c0_74 = arith.constant 0 : index
    %135 = vector.load %arg14[%c3, %c0_73, %c0_74] : memref<8x128x10xbf16, #tpu.memory_space<vmem>>, vector<1x128x10xbf16>
    %136 = vector.shape_cast %135 : vector<1x128x10xbf16> to vector<128x10xbf16>
    %cst_75 = arith.constant dense<0.000000e+00> : vector<1x10xf32>
    %137 = tpu.matmul %134, %136, %cst_75 {dimension_numbers = #tpu.dot_dimension_numbers<[1], [0], [0], [1], [0, 0, 1, 1], [], []>} : vector<1x128xbf16>, vector<128x10xbf16>, vector<1x10xf32> -> vector<1x10xf32>
    %138 = arith.addf %132, %137 : vector<1x10xf32>
    %139 = vector.extract_strided_slice %113 {offsets = [4, 0], sizes = [1, 128], strides = [1, 1]} : vector<8x128xf32> to vector<1x128xf32>
    %140 = arith.truncf %139 : vector<1x128xf32> to vector<1x128xbf16>
    %c4 = arith.constant 4 : index
    %c0_76 = arith.constant 0 : index
    %c0_77 = arith.constant 0 : index
    %141 = vector.load %arg14[%c4, %c0_76, %c0_77] : memref<8x128x10xbf16, #tpu.memory_space<vmem>>, vector<1x128x10xbf16>
    %142 = vector.shape_cast %141 : vector<1x128x10xbf16> to vector<128x10xbf16>
    %cst_78 = arith.constant dense<0.000000e+00> : vector<1x10xf32>
    %143 = tpu.matmul %140, %142, %cst_78 {dimension_numbers = #tpu.dot_dimension_numbers<[1], [0], [0], [1], [0, 0, 1, 1], [], []>} : vector<1x128xbf16>, vector<128x10xbf16>, vector<1x10xf32> -> vector<1x10xf32>
    %144 = arith.addf %138, %143 : vector<1x10xf32>
    %145 = vector.extract_strided_slice %113 {offsets = [5, 0], sizes = [1, 128], strides = [1, 1]} : vector<8x128xf32> to vector<1x128xf32>
    %146 = arith.truncf %145 : vector<1x128xf32> to vector<1x128xbf16>
    %c5 = arith.constant 5 : index
    %c0_79 = arith.constant 0 : index
    %c0_80 = arith.constant 0 : index
    %147 = vector.load %arg14[%c5, %c0_79, %c0_80] : memref<8x128x10xbf16, #tpu.memory_space<vmem>>, vector<1x128x10xbf16>
    %148 = vector.shape_cast %147 : vector<1x128x10xbf16> to vector<128x10xbf16>
    %cst_81 = arith.constant dense<0.000000e+00> : vector<1x10xf32>
    %149 = tpu.matmul %146, %148, %cst_81 {dimension_numbers = #tpu.dot_dimension_numbers<[1], [0], [0], [1], [0, 0, 1, 1], [], []>} : vector<1x128xbf16>, vector<128x10xbf16>, vector<1x10xf32> -> vector<1x10xf32>
    %150 = arith.addf %144, %149 : vector<1x10xf32>
    %151 = vector.extract_strided_slice %113 {offsets = [6, 0], sizes = [1, 128], strides = [1, 1]} : vector<8x128xf32> to vector<1x128xf32>
    %152 = arith.truncf %151 : vector<1x128xf32> to vector<1x128xbf16>
    %c6 = arith.constant 6 : index
    %c0_82 = arith.constant 0 : index
    %c0_83 = arith.constant 0 : index
    %153 = vector.load %arg14[%c6, %c0_82, %c0_83] : memref<8x128x10xbf16, #tpu.memory_space<vmem>>, vector<1x128x10xbf16>
    %154 = vector.shape_cast %153 : vector<1x128x10xbf16> to vector<128x10xbf16>
    %cst_84 = arith.constant dense<0.000000e+00> : vector<1x10xf32>
    %155 = tpu.matmul %152, %154, %cst_84 {dimension_numbers = #tpu.dot_dimension_numbers<[1], [0], [0], [1], [0, 0, 1, 1], [], []>} : vector<1x128xbf16>, vector<128x10xbf16>, vector<1x10xf32> -> vector<1x10xf32>
    %156 = arith.addf %150, %155 : vector<1x10xf32>
    %157 = vector.extract_strided_slice %113 {offsets = [7, 0], sizes = [1, 128], strides = [1, 1]} : vector<8x128xf32> to vector<1x128xf32>
    %158 = arith.truncf %157 : vector<1x128xf32> to vector<1x128xbf16>
    %c7 = arith.constant 7 : index
    %c0_85 = arith.constant 0 : index
    %c0_86 = arith.constant 0 : index
    %159 = vector.load %arg14[%c7, %c0_85, %c0_86] : memref<8x128x10xbf16, #tpu.memory_space<vmem>>, vector<1x128x10xbf16>
    %160 = vector.shape_cast %159 : vector<1x128x10xbf16> to vector<128x10xbf16>
    %cst_87 = arith.constant dense<0.000000e+00> : vector<1x10xf32>
    %161 = tpu.matmul %158, %160, %cst_87 {dimension_numbers = #tpu.dot_dimension_numbers<[1], [0], [0], [1], [0, 0, 1, 1], [], []>} : vector<1x128xbf16>, vector<128x10xbf16>, vector<1x10xf32> -> vector<1x10xf32>
    %162 = arith.addf %156, %161 : vector<1x10xf32>
    %163 = vector.shape_cast %162 : vector<1x10xf32> to vector<1x1x10xf32>
    %c0_88 = arith.constant 0 : index
    %c0_89 = arith.constant 0 : index
    %c0_90 = arith.constant 0 : index
    %164 = vector.load %arg18[%c0_88, %c0_89, %c0_90] : memref<1x1x10xf32, #tpu.memory_space<vmem>>, vector<1x1x10xf32>
    tpu.vector_store %arg18[%c0_88, %c0_89, %c0_90], %163 {strides = array<i32>} : memref<1x1x10xf32, #tpu.memory_space<vmem>>, vector<1x1x10xf32>,
    return
  }
  func.func @transform_0(%arg0: i32) -> (i32, i32, i32) {
    %c0_i32 = arith.constant 0 : i32
    %c0_i32_0 = arith.constant 0 : i32
    %c0_i32_1 = arith.constant 0 : i32
    return %arg0, %c0_i32, %c0_i32_0 : i32, i32, i32
  }
  func.func @transform_1(%arg0: i32) -> (i32, i32) {
    %c0_i32 = arith.constant 0 : i32
    %c0_i32_0 = arith.constant 0 : i32
    %c0_i32_1 = arith.constant 0 : i32
    return %c0_i32, %c0_i32_0 : i32, i32
  }
  func.func @transform_2(%arg0: i32) -> (i32, i32) {
    %c0_i32 = arith.constant 0 : i32
    %c0_i32_0 = arith.constant 0 : i32
    %c0_i32_1 = arith.constant 0 : i32
    return %c0_i32, %c0_i32_0 : i32, i32
  }
  func.func @transform_3(%arg0: i32) -> (i32, i32) {
    %c0_i32 = arith.constant 0 : i32
    %c0_i32_0 = arith.constant 0 : i32
    %c0_i32_1 = arith.constant 0 : i32
    return %c0_i32, %c0_i32_0 : i32, i32
  }
  func.func @transform_4(%arg0: i32) -> (i32, i32) {
    %c0_i32 = arith.constant 0 : i32
    %c0_i32_0 = arith.constant 0 : i32
    %c0_i32_1 = arith.constant 0 : i32
    return %c0_i32, %c0_i32_0 : i32, i32
  }
  func.func @transform_5(%arg0: i32) -> (i32, i32) {
    %c0_i32 = arith.constant 0 : i32
    %c0_i32_0 = arith.constant 0 : i32
    %c0_i32_1 = arith.constant 0 : i32
    return %c0_i32, %c0_i32_0 : i32, i32
  }
  func.func @transform_6(%arg0: i32) -> (i32, i32) {
    %c0_i32 = arith.constant 0 : i32
    %c0_i32_0 = arith.constant 0 : i32
    %c0_i32_1 = arith.constant 0 : i32
    return %c0_i32, %c0_i32_0 : i32, i32
  }
  func.func @transform_7(%arg0: i32) -> (i32, i32) {
    %c0_i32 = arith.constant 0 : i32
    %c0_i32_0 = arith.constant 0 : i32
    %c0_i32_1 = arith.constant 0 : i32
    return %c0_i32, %c0_i32_0 : i32, i32
  }
  func.func @transform_8(%arg0: i32) -> (i32, i32) {
    %c0_i32 = arith.constant 0 : i32
    %c0_i32_0 = arith.constant 0 : i32
    %c0_i32_1 = arith.constant 0 : i32
    return %c0_i32, %c0_i32_0 : i32, i32
  }
  func.func @transform_9(%arg0: i32) -> (i32, i32) {
    %c0_i32 = arith.constant 0 : i32
    %c0_i32_0 = arith.constant 0 : i32
    %c0_i32_1 = arith.constant 0 : i32
    return %c0_i32, %c0_i32_0 : i32, i32
  }
  func.func @transform_10(%arg0: i32) -> (i32, i32) {
    %c0_i32 = arith.constant 0 : i32
    %c0_i32_0 = arith.constant 0 : i32
    %c0_i32_1 = arith.constant 0 : i32
    return %c0_i32, %c0_i32_0 : i32, i32
  }
  func.func @transform_11(%arg0: i32) -> (i32, i32) {
    %c0_i32 = arith.constant 0 : i32
    %c0_i32_0 = arith.constant 0 : i32
    %c0_i32_1 = arith.constant 0 : i32
    return %c0_i32, %c0_i32_0 : i32, i32
  }
  func.func @transform_12(%arg0: i32) -> (i32, i32) {
    %c0_i32 = arith.constant 0 : i32
    %c0_i32_0 = arith.constant 0 : i32
    %c0_i32_1 = arith.constant 0 : i32
    return %c0_i32, %c0_i32_0 : i32, i32
  }
  func.func @transform_13(%arg0: i32) -> (i32, i32, i32) {
    %c0_i32 = arith.constant 0 : i32
    %c0_i32_0 = arith.constant 0 : i32
    %c0_i32_1 = arith.constant 0 : i32
    %c0_i32_2 = arith.constant 0 : i32
    return %c0_i32, %c0_i32_0, %c0_i32_1 : i32, i32, i32
  }
  func.func @transform_14(%arg0: i32) -> (i32, i32) {
    %c0_i32 = arith.constant 0 : i32
    %c0_i32_0 = arith.constant 0 : i32
    %c0_i32_1 = arith.constant 0 : i32
    return %c0_i32, %c0_i32_0 : i32, i32
  }
  func.func @transform_15(%arg0: i32) -> (i32, i32) {
    %c0_i32 = arith.constant 0 : i32
    %c0_i32_0 = arith.constant 0 : i32
    %c0_i32_1 = arith.constant 0 : i32
    return %c0_i32, %c0_i32_0 : i32, i32
  }
  func.func @transform_16(%arg0: i32) -> (i32, i32) {
    %c0_i32 = arith.constant 0 : i32
    %c0_i32_0 = arith.constant 0 : i32
    %c0_i32_1 = arith.constant 0 : i32
    return %c0_i32, %c0_i32_0 : i32, i32
  }
  func.func @transform_17(%arg0: i32) -> (i32, i32, i32) {
    %c0_i32 = arith.constant 0 : i32
    %c0_i32_0 = arith.constant 0 : i32
    %c0_i32_1 = arith.constant 0 : i32
    return %arg0, %c0_i32, %c0_i32_0 : i32, i32, i32
  }
}

</mosaic_0001>

<llo_original>
// kernel: fashion_mnist_forward.1
$region0: #{fashion_mnist_forward.1}
  #allocation0 [shape = 'u32[]', space=smem, size = 0x4, offset = 0x4, fixed_abs, tag = 'smem constant byte address 0x4 - core index']
  #allocation1 [shape = 'u32[144,128]{1,0:T(1,128)}', space=vmem, size = 0x12000, scoped, tag = 'internal scratch']
  %s0 = inlined_call_operand.vmem [shape: f32[2,8,1024], index: 0, kind: input, shape index: {}]
  %s1 = inlined_call_operand.vmem [shape: bf16[8,72], index: 1, kind: input, shape index: {}]
  %s2 = inlined_call_operand.vmem [shape: f32[8,1], index: 2, kind: input, shape index: {}]
  %s3 = inlined_call_operand.vmem [shape: bf16[8,72], index: 3, kind: input, shape index: {}]
  %s4 = inlined_call_operand.vmem [shape: f32[8,1], index: 4, kind: input, shape index: {}]
  %s5 = inlined_call_operand.vmem [shape: bf16[8,72], index: 5, kind: input, shape index: {}]
  %s6 = inlined_call_operand.vmem [shape: f32[8,1], index: 6, kind: input, shape index: {}]
  %s7 = inlined_call_operand.vmem [shape: bf16[8,32], index: 7, kind: input, shape index: {}]
  %s8 = inlined_call_operand.vmem [shape: f32[8,1], index: 8, kind: input, shape index: {}]
  %s9 = inlined_call_operand.vmem [shape: bf16[8,72], index: 9, kind: input, shape index: {}]
  %s10 = inlined_call_operand.vmem [shape: f32[8,1], index: 10, kind: input, shape index: {}]
  %s11 = inlined_call_operand.vmem [shape: bf16[1024,256], index: 11, kind: input, shape index: {}]
  %s12 = inlined_call_operand.vmem [shape: bf16[256,128], index: 12, kind: input, shape index: {}]
  %s13 = inlined_call_operand.vmem [shape: bf16[8,128,10], index: 13, kind: input, shape index: {}]
  %s14 = inlined_call_operand.vmem [shape: f32[1,10], index: 14, kind: input, shape index: {}]
  %s15 = inlined_call_operand.vmem [shape: f32[1,1024], index: 15, kind: input, shape index: {}]
  %s16 = inlined_call_operand.vmem [shape: f32[1,128], index: 16, kind: input, shape index: {}]
  %s17 = inlined_call_operand.hbm [shape: f32[2,1,10], index: 17, kind: output, shape index: {}]
  %s18 = sld [smem:[#allocation0]]
  $region101: #{fashion_mnist_forward.1} parent=0
    _
  %s20 = ssub.s32 1, %s18
  %s21 = scalar_select 0, %s20, %s18
  $region1: #{fashion_mnist_forward.1} parent=0
    #allocation2 [shape = 'u8[1024]{0}', space=vmem, size = 0x400, scoped, tag = 'output window, operand 0']
    #allocation3 [shape = 's32[2]{0}', space=sflag, size = 0x8, scoped, tag = 'scoped memory for fashion_mnist_forward.1']
    %22 = vsyncpa [#allocation3], 0
    %s23 = scalar_lea.sflag [#allocation3], 1
    %24 = vsyncpa %s23, 0
    loop: start=0, step=1, limit=4
    $region2: #{fashion_mnist_forward.1} parent=1 // loop_pre_header
      _
    $region3: #{fashion_mnist_forward.1} parent=1 // loop_header
      %s26 = sphi 0, %s30
      %p27 = scmp.ge.s32.totalorder %s26, 4
      %s36 = sphi 0, %s38
      %s39 = sphi 0, %s36
      %s40 = sphi 0, %s39
      %s56 = sphi 0, %s40
      %s60 = sphi 0, %s60
      %s62 = sphi 0, %s60
      %s63 = sphi 0, %s62
      %s77 = sphi 0, %s63
      %s81 = sphi 0, %s81
      %s83 = sphi 0, %s81
      %s84 = sphi 0, %s83
      %s98 = sphi 0, %s84
      %s102 = sphi 0, %s102
      %s104 = sphi 0, %s102
      %s105 = sphi 0, %s104
      %s119 = sphi 0, %s105
      %s123 = sphi 0, %s123
      %s125 = sphi 0, %s123
      %s126 = sphi 0, %s125
      %s140 = sphi 0, %s126
      %s144 = sphi 0, %s144
      %s146 = sphi 0, %s144
      %s147 = sphi 0, %s146
      %s161 = sphi 0, %s147
      %s165 = sphi 0, %s165
      %s167 = sphi 0, %s165
      %s168 = sphi 0, %s167
      %s182 = sphi 0, %s168
      %s186 = sphi 0, %s186
      %s188 = sphi 0, %s186
      %s189 = sphi 0, %s188
      %s203 = sphi 0, %s189
      %s207 = sphi 0, %s207
      %s209 = sphi 0, %s207
      %s210 = sphi 0, %s209
      %s224 = sphi 0, %s210
      %s228 = sphi 0, %s228
      %s230 = sphi 0, %s228
      %s231 = sphi 0, %s230
      %s245 = sphi 0, %s231
      %s249 = sphi 0, %s249
      %s251 = sphi 0, %s249
      %s252 = sphi 0, %s251
      %s266 = sphi 0, %s252
      %s270 = sphi 0, %s270
      %s272 = sphi 0, %s270
      %s273 = sphi 0, %s272
      %s287 = sphi 0, %s273
      %s291 = sphi 0, %s291
      %s293 = sphi 0, %s291
      %s294 = sphi 0, %s293
      %s308 = sphi 0, %s294
      %s312 = sphi 0, %s312
      %s314 = sphi 0, %s312
      %s315 = sphi 0, %s314
      %s329 = sphi 0, %s315
      %s333 = sphi 0, %s333
      %s335 = sphi 0, %s333
      %s336 = sphi 0, %s335
      %s350 = sphi 0, %s336
      %s354 = sphi 0, %s354
      %s356 = sphi 0, %s354
      %s357 = sphi 0, %s356
      %s371 = sphi 0, %s357
      %s375 = sphi 0, %s375
      %s377 = sphi 0, %s375
      %s378 = sphi 0, %s377
      %s392 = sphi 0, %s378
      %s398 = sphi 0, %s400
      %s401 = sphi 0, %s398
      %s402 = sphi 0, %s401
      %s418 = sphi 0, %s402
    $region4: #{fashion_mnist_forward.1} parent=1 // loop_header_branch
      %29 = sbr.rel (%p27) target = $region8
    $region5: #{fashion_mnist_forward.1} parent=1 // loop_body
      %s31 = ssub.s32 %s26, 1
      %s32 = ssub.s32 %s26, 2
      %s33 = sadd.s32 %s26, 1
      %s34 = ssub.s32 %s26, %s33
      %p35 = scmp.eq.s32.totalorder %s34, 0
      %s37 = sadd.s32 %s36, 1
      %s38 = scalar_select %p35, %s36, %s37
      %p41 = pneg %p35
      %p42 = scmp.eq.s32.totalorder %s26, 1
      %p43 = por %p41, %p42
      %p44 = scmp.ne.s32.totalorder %s36, %s39
      %p45 = scmp.eq.s32.totalorder %s26, 0
      %p46 = por %p44, %p45
      %p47 = scmp.ne.s32.totalorder %s36, %s39
      %p48 = scmp.eq.s32.totalorder %s31, 1
      %p49 = por %p47, %p48
      %p50 = scmp.ne.s32.totalorder %s39, %s40
      %p51 = scmp.eq.s32.totalorder %s31, 0
      %p52 = por %p50, %p51
      %p53 = scmp.ne.s32.totalorder %s39, %s40
      %p54 = scmp.eq.s32.totalorder %s32, 1
      %p55 = por %p53, %p54
      %p57 = scmp.ne.s32.totalorder %s40, %s56
      %p58 = scmp.eq.s32.totalorder %s32, 0
      %p59 = por %p57, %p58
      %s61 = sadd.s32 %s60, 1
      %p64 = scmp.eq.s32.totalorder %s26, 1
      %p65 = scmp.ne.s32.totalorder %s60, %s62
      %p66 = scmp.eq.s32.totalorder %s26, 0
      %p67 = por %p65, %p66
      %p68 = scmp.ne.s32.totalorder %s60, %s62
      %p69 = scmp.eq.s32.totalorder %s31, 1
      %p70 = por %p68, %p69
      %p71 = scmp.ne.s32.totalorder %s62, %s63
      %p72 = scmp.eq.s32.totalorder %s31, 0
      %p73 = por %p71, %p72
      %p74 = scmp.ne.s32.totalorder %s62, %s63
      %p75 = scmp.eq.s32.totalorder %s32, 1
      %p76 = por %p74, %p75
      %p78 = scmp.ne.s32.totalorder %s63, %s77
      %p79 = scmp.eq.s32.totalorder %s32, 0
      %p80 = por %p78, %p79
      %s82 = sadd.s32 %s81, 1
      %p85 = scmp.eq.s32.totalorder %s26, 1
      %p86 = scmp.ne.s32.totalorder %s81, %s83
      %p87 = scmp.eq.s32.totalorder %s26, 0
      %p88 = por %p86, %p87
      %p89 = scmp.ne.s32.totalorder %s81, %s83
      %p90 = scmp.eq.s32.totalorder %s31, 1
      %p91 = por %p89, %p90
      %p92 = scmp.ne.s32.totalorder %s83, %s84
      %p93 = scmp.eq.s32.totalorder %s31, 0
      %p94 = por %p92, %p93
      %p95 = scmp.ne.s32.totalorder %s83, %s84
      %p96 = scmp.eq.s32.totalorder %s32, 1
      %p97 = por %p95, %p96
      %p99 = scmp.ne.s32.totalorder %s84, %s98
      %p100 = scmp.eq.s32.totalorder %s32, 0
      %p101 = por %p99, %p100
      %s103 = sadd.s32 %s102, 1
      %p106 = scmp.eq.s32.totalorder %s26, 1
      %p107 = scmp.ne.s32.totalorder %s102, %s104
      %p108 = scmp.eq.s32.totalorder %s26, 0
      %p109 = por %p107, %p108
      %p110 = scmp.ne.s32.totalorder %s102, %s104
      %p111 = scmp.eq.s32.totalorder %s31, 1
      %p112 = por %p110, %p111
      %p113 = scmp.ne.s32.totalorder %s104, %s105
      %p114 = scmp.eq.s32.totalorder %s31, 0
      %p115 = por %p113, %p114
      %p116 = scmp.ne.s32.totalorder %s104, %s105
      %p117 = scmp.eq.s32.totalorder %s32, 1
      %p118 = por %p116, %p117
      %p120 = scmp.ne.s32.totalorder %s105, %s119
      %p121 = scmp.eq.s32.totalorder %s32, 0
      %p122 = por %p120, %p121
      %s124 = sadd.s32 %s123, 1
      %p127 = scmp.eq.s32.totalorder %s26, 1
      %p128 = scmp.ne.s32.totalorder %s123, %s125
      %p129 = scmp.eq.s32.totalorder %s26, 0
      %p130 = por %p128, %p129
      %p131 = scmp.ne.s32.totalorder %s123, %s125
      %p132 = scmp.eq.s32.totalorder %s31, 1
      %p133 = por %p131, %p132
      %p134 = scmp.ne.s32.totalorder %s125, %s126
      %p135 = scmp.eq.s32.totalorder %s31, 0
      %p136 = por %p134, %p135
      %p137 = scmp.ne.s32.totalorder %s125, %s126
      %p138 = scmp.eq.s32.totalorder %s32, 1
      %p139 = por %p137, %p138
      %p141 = scmp.ne.s32.totalorder %s126, %s140
      %p142 = scmp.eq.s32.totalorder %s32, 0
      %p143 = por %p141, %p142
      %s145 = sadd.s32 %s144, 1
      %p148 = scmp.eq.s32.totalorder %s26, 1
      %p149 = scmp.ne.s32.totalorder %s144, %s146
      %p150 = scmp.eq.s32.totalorder %s26, 0
      %p151 = por %p149, %p150
      %p152 = scmp.ne.s32.totalorder %s144, %s146
      %p153 = scmp.eq.s32.totalorder %s31, 1
      %p154 = por %p152, %p153
      %p155 = scmp.ne.s32.totalorder %s146, %s147
      %p156 = scmp.eq.s32.totalorder %s31, 0
      %p157 = por %p155, %p156
      %p158 = scmp.ne.s32.totalorder %s146, %s147
      %p159 = scmp.eq.s32.totalorder %s32, 1
      %p160 = por %p158, %p159
      %p162 = scmp.ne.s32.totalorder %s147, %s161
      %p163 = scmp.eq.s32.totalorder %s32, 0
      %p164 = por %p162, %p163
      %s166 = sadd.s32 %s165, 1
      %p169 = scmp.eq.s32.totalorder %s26, 1
      %p170 = scmp.ne.s32.totalorder %s165, %s167
      %p171 = scmp.eq.s32.totalorder %s26, 0
      %p172 = por %p170, %p171
      %p173 = scmp.ne.s32.totalorder %s165, %s167
      %p174 = scmp.eq.s32.totalorder %s31, 1
      %p175 = por %p173, %p174
      %p176 = scmp.ne.s32.totalorder %s167, %s168
      %p177 = scmp.eq.s32.totalorder %s31, 0
      %p178 = por %p176, %p177
      %p179 = scmp.ne.s32.totalorder %s167, %s168
      %p180 = scmp.eq.s32.totalorder %s32, 1
      %p181 = por %p179, %p180
      %p183 = scmp.ne.s32.totalorder %s168, %s182
      %p184 = scmp.eq.s32.totalorder %s32, 0
      %p185 = por %p183, %p184
      %s187 = sadd.s32 %s186, 1
      %p190 = scmp.eq.s32.totalorder %s26, 1
      %p191 = scmp.ne.s32.totalorder %s186, %s188
      %p192 = scmp.eq.s32.totalorder %s26, 0
      %p193 = por %p191, %p192
      %p194 = scmp.ne.s32.totalorder %s186, %s188
      %p195 = scmp.eq.s32.totalorder %s31, 1
      %p196 = por %p194, %p195
      %p197 = scmp.ne.s32.totalorder %s188, %s189
      %p198 = scmp.eq.s32.totalorder %s31, 0
      %p199 = por %p197, %p198
      %p200 = scmp.ne.s32.totalorder %s188, %s189
      %p201 = scmp.eq.s32.totalorder %s32, 1
      %p202 = por %p200, %p201
      %p204 = scmp.ne.s32.totalorder %s189, %s203
      %p205 = scmp.eq.s32.totalorder %s32, 0
      %p206 = por %p204, %p205
      %s208 = sadd.s32 %s207, 1
      %p211 = scmp.eq.s32.totalorder %s26, 1
      %p212 = scmp.ne.s32.totalorder %s207, %s209
      %p213 = scmp.eq.s32.totalorder %s26, 0
      %p214 = por %p212, %p213
      %p215 = scmp.ne.s32.totalorder %s207, %s209
      %p216 = scmp.eq.s32.totalorder %s31, 1
      %p217 = por %p215, %p216
      %p218 = scmp.ne.s32.totalorder %s209, %s210
      %p219 = scmp.eq.s32.totalorder %s31, 0
      %p220 = por %p218, %p219
      %p221 = scmp.ne.s32.totalorder %s209, %s210
      %p222 = scmp.eq.s32.totalorder %s32, 1
      %p223 = por %p221, %p222
      %p225 = scmp.ne.s32.totalorder %s210, %s224
      %p226 = scmp.eq.s32.totalorder %s32, 0
      %p227 = por %p225, %p226
      %s229 = sadd.s32 %s228, 1
      %p232 = scmp.eq.s32.totalorder %s26, 1
      %p233 = scmp.ne.s32.totalorder %s228, %s230
      %p234 = scmp.eq.s32.totalorder %s26, 0
      %p235 = por %p233, %p234
      %p236 = scmp.ne.s32.totalorder %s228, %s230
      %p237 = scmp.eq.s32.totalorder %s31, 1
      %p238 = por %p236, %p237
      %p239 = scmp.ne.s32.totalorder %s230, %s231
      %p240 = scmp.eq.s32.totalorder %s31, 0
      %p241 = por %p239, %p240
      %p242 = scmp.ne.s32.totalorder %s230, %s231
      %p243 = scmp.eq.s32.totalorder %s32, 1
      %p244 = por %p242, %p243
      %p246 = scmp.ne.s32.totalorder %s231, %s245
      %p247 = scmp.eq.s32.totalorder %s32, 0
      %p248 = por %p246, %p247
      %s250 = sadd.s32 %s249, 1
      %p253 = scmp.eq.s32.totalorder %s26, 1
      %p254 = scmp.ne.s32.totalorder %s249, %s251
      %p255 = scmp.eq.s32.totalorder %s26, 0
      %p256 = por %p254, %p255
      %p257 = scmp.ne.s32.totalorder %s249, %s251
      %p258 = scmp.eq.s32.totalorder %s31, 1
      %p259 = por %p257, %p258
      %p260 = scmp.ne.s32.totalorder %s251, %s252
      %p261 = scmp.eq.s32.totalorder %s31, 0
      %p262 = por %p260, %p261
      %p263 = scmp.ne.s32.totalorder %s251, %s252
      %p264 = scmp.eq.s32.totalorder %s32, 1
      %p265 = por %p263, %p264
      %p267 = scmp.ne.s32.totalorder %s252, %s266
      %p268 = scmp.eq.s32.totalorder %s32, 0
      %p269 = por %p267, %p268
      %s271 = sadd.s32 %s270, 1
      %p274 = scmp.eq.s32.totalorder %s26, 1
      %p275 = scmp.ne.s32.totalorder %s270, %s272
      %p276 = scmp.eq.s32.totalorder %s26, 0
      %p277 = por %p275, %p276
      %p278 = scmp.ne.s32.totalorder %s270, %s272
      %p279 = scmp.eq.s32.totalorder %s31, 1
      %p280 = por %p278, %p279
      %p281 = scmp.ne.s32.totalorder %s272, %s273
      %p282 = scmp.eq.s32.totalorder %s31, 0
      %p283 = por %p281, %p282
      %p284 = scmp.ne.s32.totalorder %s272, %s273
      %p285 = scmp.eq.s32.totalorder %s32, 1
      %p286 = por %p284, %p285
      %p288 = scmp.ne.s32.totalorder %s273, %s287
      %p289 = scmp.eq.s32.totalorder %s32, 0
      %p290 = por %p288, %p289
      %s292 = sadd.s32 %s291, 1
      %p295 = scmp.eq.s32.totalorder %s26, 1
      %p296 = scmp.ne.s32.totalorder %s291, %s293
      %p297 = scmp.eq.s32.totalorder %s26, 0
      %p298 = por %p296, %p297
      %p299 = scmp.ne.s32.totalorder %s291, %s293
      %p300 = scmp.eq.s32.totalorder %s31, 1
      %p301 = por %p299, %p300
      %p302 = scmp.ne.s32.totalorder %s293, %s294
      %p303 = scmp.eq.s32.totalorder %s31, 0
      %p304 = por %p302, %p303
      %p305 = scmp.ne.s32.totalorder %s293, %s294
      %p306 = scmp.eq.s32.totalorder %s32, 1
      %p307 = por %p305, %p306
      %p309 = scmp.ne.s32.totalorder %s294, %s308
      %p310 = scmp.eq.s32.totalorder %s32, 0
      %p311 = por %p309, %p310
      %s313 = sadd.s32 %s312, 1
      %p316 = scmp.eq.s32.totalorder %s26, 1
      %p317 = scmp.ne.s32.totalorder %s312, %s314
      %p318 = scmp.eq.s32.totalorder %s26, 0
      %p319 = por %p317, %p318
      %p320 = scmp.ne.s32.totalorder %s312, %s314
      %p321 = scmp.eq.s32.totalorder %s31, 1
      %p322 = por %p320, %p321
      %p323 = scmp.ne.s32.totalorder %s314, %s315
      %p324 = scmp.eq.s32.totalorder %s31, 0
      %p325 = por %p323, %p324
      %p326 = scmp.ne.s32.totalorder %s314, %s315
      %p327 = scmp.eq.s32.totalorder %s32, 1
      %p328 = por %p326, %p327
      %p330 = scmp.ne.s32.totalorder %s315, %s329
      %p331 = scmp.eq.s32.totalorder %s32, 0
      %p332 = por %p330, %p331
      %s334 = sadd.s32 %s333, 1
      %p337 = scmp.eq.s32.totalorder %s26, 1
      %p338 = scmp.ne.s32.totalorder %s333, %s335
      %p339 = scmp.eq.s32.totalorder %s26, 0
      %p340 = por %p338, %p339
      %p341 = scmp.ne.s32.totalorder %s333, %s335
      %p342 = scmp.eq.s32.totalorder %s31, 1
      %p343 = por %p341, %p342
      %p344 = scmp.ne.s32.totalorder %s335, %s336
      %p345 = scmp.eq.s32.totalorder %s31, 0
      %p346 = por %p344, %p345
      %p347 = scmp.ne.s32.totalorder %s335, %s336
      %p348 = scmp.eq.s32.totalorder %s32, 1
      %p349 = por %p347, %p348
      %p351 = scmp.ne.s32.totalorder %s336, %s350
      %p352 = scmp.eq.s32.totalorder %s32, 0
      %p353 = por %p351, %p352
      %s355 = sadd.s32 %s354, 1
      %p358 = scmp.eq.s32.totalorder %s26, 1
      %p359 = scmp.ne.s32.totalorder %s354, %s356
      %p360 = scmp.eq.s32.totalorder %s26, 0
      %p361 = por %p359, %p360
      %p362 = scmp.ne.s32.totalorder %s354, %s356
      %p363 = scmp.eq.s32.totalorder %s31, 1
      %p364 = por %p362, %p363
      %p365 = scmp.ne.s32.totalorder %s356, %s357
      %p366 = scmp.eq.s32.totalorder %s31, 0
      %p367 = por %p365, %p366
      %p368 = scmp.ne.s32.totalorder %s356, %s357
      %p369 = scmp.eq.s32.totalorder %s32, 1
      %p370 = por %p368, %p369
      %p372 = scmp.ne.s32.totalorder %s357, %s371
      %p373 = scmp.eq.s32.totalorder %s32, 0
      %p374 = por %p372, %p373
      %s376 = sadd.s32 %s375, 1
      %p379 = scmp.eq.s32.totalorder %s26, 1
      %p380 = scmp.ne.s32.totalorder %s375, %s377
      %p381 = scmp.eq.s32.totalorder %s26, 0
      %p382 = por %p380, %p381
      %p383 = scmp.ne.s32.totalorder %s375, %s377
      %p384 = scmp.eq.s32.totalorder %s31, 1
      %p385 = por %p383, %p384
      %p386 = scmp.ne.s32.totalorder %s377, %s378
      %p387 = scmp.eq.s32.totalorder %s31, 0
      %p388 = por %p386, %p387
      %p389 = scmp.ne.s32.totalorder %s377, %s378
      %p390 = scmp.eq.s32.totalorder %s32, 1
      %p391 = por %p389, %p390
      %p393 = scmp.ne.s32.totalorder %s378, %s392
      %p394 = scmp.eq.s32.totalorder %s32, 0
      %p395 = por %p393, %p394
      %s396 = ssub.s32 %s26, %s33
      %p397 = scmp.eq.s32.totalorder %s396, 0
      %s399 = sadd.s32 %s398, 1
      %s400 = scalar_select %p397, %s398, %s399
      %p403 = pneg %p397
      %p404 = scmp.eq.s32.totalorder %s26, 1
      %p405 = por %p403, %p404
      %p406 = scmp.ne.s32.totalorder %s398, %s401
      %p407 = scmp.eq.s32.totalorder %s26, 0
      %p408 = por %p406, %p407
      %p409 = scmp.ne.s32.totalorder %s398, %s401
      %p410 = scmp.eq.s32.totalorder %s31, 1
      %p411 = por %p409, %p410
      %p412 = scmp.ne.s32.totalorder %s401, %s402
      %p413 = scmp.eq.s32.totalorder %s31, 0
      %p414 = por %p412, %p413
      %p415 = scmp.ne.s32.totalorder %s401, %s402
      %p416 = scmp.eq.s32.totalorder %s32, 1
      %p417 = por %p415, %p416
      %p419 = scmp.ne.s32.totalorder %s402, %s418
      %p420 = scmp.eq.s32.totalorder %s32, 0
      %p421 = por %p419, %p420
      %p422 = scmp.le.s32.totalorder 1, %s26
      %p423 = scmp.lt.s32.totalorder %s26, 3
      %p424 = pnand %p422, %p423
      %p425 = pneg %p424
      // Predicated region
      $region9: #{fashion_mnist_forward.1} parent=5 // pred_check
        _
      $region10: #{fashion_mnist_forward.1} parent=5 // pred_check_branch
        %427 = sbr.rel (%p424) target = $region12
      $region11: #{fashion_mnist_forward.1} parent=5 // pred_region
        %s428 = ssub.s32 %s26, 1
        // Predicated region
        $region13: #{fashion_mnist_forward.1} parent=11 // pred_check
          %p429 = pneg %p73
        $region14: #{fashion_mnist_forward.1} parent=11 // pred_check_branch
          %431 = sbr.rel (%p429) target = $region16
        $region15: #{fashion_mnist_forward.1} parent=11 // pred_region
          _
        $region16: #{fashion_mnist_forward.1} parent=11 // pred_fallthru
          _
        // Predicated region
        $region17: #{fashion_mnist_forward.1} parent=11 // pred_check
          %p432 = pneg %p94
        $region18: #{fashion_mnist_forward.1} parent=11 // pred_check_branch
          %434 = sbr.rel (%p432) target = $region20
        $region19: #{fashion_mnist_forward.1} parent=11 // pred_region
          _
        $region20: #{fashion_mnist_forward.1} parent=11 // pred_fallthru
          _
        // Predicated region
        $region21: #{fashion_mnist_forward.1} parent=11 // pred_check
          %p435 = pneg %p115
        $region22: #{fashion_mnist_forward.1} parent=11 // pred_check_branch
          %437 = sbr.rel (%p435) target = $region24
        $region23: #{fashion_mnist_forward.1} parent=11 // pred_region
          _
        $region24: #{fashion_mnist_forward.1} parent=11 // pred_fallthru
          _
        // Predicated region
        $region25: #{fashion_mnist_forward.1} parent=11 // pred_check
          %p438 = pneg %p136
        $region26: #{fashion_mnist_forward.1} parent=11 // pred_check_branch
          %440 = sbr.rel (%p438) target = $region28
        $region27: #{fashion_mnist_forward.1} parent=11 // pred_region
          _
        $region28: #{fashion_mnist_forward.1} parent=11 // pred_fallthru
          _
        // Predicated region
        $region29: #{fashion_mnist_forward.1} parent=11 // pred_check
          %p441 = pneg %p157
        $region30: #{fashion_mnist_forward.1} parent=11 // pred_check_branch
          %443 = sbr.rel (%p441) target = $region32
        $region31: #{fashion_mnist_forward.1} parent=11 // pred_region
          _
        $region32: #{fashion_mnist_forward.1} parent=11 // pred_fallthru
          _
        // Predicated region
        $region33: #{fashion_mnist_forward.1} parent=11 // pred_check
          %p444 = pneg %p178
        $region34: #{fashion_mnist_forward.1} parent=11 // pred_check_branch
          %446 = sbr.rel (%p444) target = $region36
        $region35: #{fashion_mnist_forward.1} parent=11 // pred_region
          _
        $region36: #{fashion_mnist_forward.1} parent=11 // pred_fallthru
          _
        // Predicated region
        $region37: #{fashion_mnist_forward.1} parent=11 // pred_check
          %p447 = pneg %p199
        $region38: #{fashion_mnist_forward.1} parent=11 // pred_check_branch
          %449 = sbr.rel (%p447) target = $region40
        $region39: #{fashion_mnist_forward.1} parent=11 // pred_region
          _
        $region40: #{fashion_mnist_forward.1} parent=11 // pred_fallthru
          _
        // Predicated region
        $region41: #{fashion_mnist_forward.1} parent=11 // pred_check
          %p450 = pneg %p220
        $region42: #{fashion_mnist_forward.1} parent=11 // pred_check_branch
          %452 = sbr.rel (%p450) target = $region44
        $region43: #{fashion_mnist_forward.1} parent=11 // pred_region
          _
        $region44: #{fashion_mnist_forward.1} parent=11 // pred_fallthru
          _
        // Predicated region
        $region45: #{fashion_mnist_forward.1} parent=11 // pred_check
          %p453 = pneg %p241
        $region46: #{fashion_mnist_forward.1} parent=11 // pred_check_branch
          %455 = sbr.rel (%p453) target = $region48
        $region47: #{fashion_mnist_forward.1} parent=11 // pred_region
          _
        $region48: #{fashion_mnist_forward.1} parent=11 // pred_fallthru
          _
        // Predicated region
        $region49: #{fashion_mnist_forward.1} parent=11 // pred_check
          %p456 = pneg %p262
        $region50: #{fashion_mnist_forward.1} parent=11 // pred_check_branch
          %458 = sbr.rel (%p456) target = $region52
        $region51: #{fashion_mnist_forward.1} parent=11 // pred_region
          _
        $region52: #{fashion_mnist_forward.1} parent=11 // pred_fallthru
          _
        // Predicated region
        $region53: #{fashion_mnist_forward.1} parent=11 // pred_check
          %p459 = pneg %p283
        $region54: #{fashion_mnist_forward.1} parent=11 // pred_check_branch
          %461 = sbr.rel (%p459) target = $region56
        $region55: #{fashion_mnist_forward.1} parent=11 // pred_region
          _
        $region56: #{fashion_mnist_forward.1} parent=11 // pred_fallthru
          _
        // Predicated region
        $region57: #{fashion_mnist_forward.1} parent=11 // pred_check
          %p462 = pneg %p304
        $region58: #{fashion_mnist_forward.1} parent=11 // pred_check_branch
          %464 = sbr.rel (%p462) target = $region60
        $region59: #{fashion_mnist_forward.1} parent=11 // pred_region
          _
        $region60: #{fashion_mnist_forward.1} parent=11 // pred_fallthru
          _
        // Predicated region
        $region61: #{fashion_mnist_forward.1} parent=11 // pred_check
          %p465 = pneg %p325
        $region62: #{fashion_mnist_forward.1} parent=11 // pred_check_branch
          %467 = sbr.rel (%p465) target = $region64
        $region63: #{fashion_mnist_forward.1} parent=11 // pred_region
          _
        $region64: #{fashion_mnist_forward.1} parent=11 // pred_fallthru
          _
        // Predicated region
        $region65: #{fashion_mnist_forward.1} parent=11 // pred_check
          %p468 = pneg %p346
        $region66: #{fashion_mnist_forward.1} parent=11 // pred_check_branch
          %470 = sbr.rel (%p468) target = $region68
        $region67: #{fashion_mnist_forward.1} parent=11 // pred_region
          _
        $region68: #{fashion_mnist_forward.1} parent=11 // pred_fallthru
          _
        // Predicated region
        $region69: #{fashion_mnist_forward.1} parent=11 // pred_check
          %p471 = pneg %p367
        $region70: #{fashion_mnist_forward.1} parent=11 // pred_check_branch
          %473 = sbr.rel (%p471) target = $region72
        $region71: #{fashion_mnist_forward.1} parent=11 // pred_region
          _
        $region72: #{fashion_mnist_forward.1} parent=11 // pred_fallthru
          _
        // Predicated region
        $region73: #{fashion_mnist_forward.1} parent=11 // pred_check
          %p474 = pneg %p388
        $region74: #{fashion_mnist_forward.1} parent=11 // pred_check_branch
          %476 = sbr.rel (%p474) target = $region76
        $region75: #{fashion_mnist_forward.1} parent=11 // pred_region
          _
        $region76: #{fashion_mnist_forward.1} parent=11 // pred_fallthru
          _
      $region12: #{fashion_mnist_forward.1} parent=5 // pred_fallthru
        _
      %p477 = scmp.lt.s32.totalorder %s26, 2
      // Predicated region
      $region77: #{fashion_mnist_forward.1} parent=5 // pred_check
        %p478 = pneg %p477
      $region78: #{fashion_mnist_forward.1} parent=5 // pred_check_branch
        %480 = sbr.rel (%p478) target = $region80
      $region79: #{fashion_mnist_forward.1} parent=5 // pred_region
        // Predicated region
        $region81: #{fashion_mnist_forward.1} parent=79 // pred_check
          %p481 = pneg %p46
        $region82: #{fashion_mnist_forward.1} parent=79 // pred_check_branch
          %483 = sbr.rel (%p481) target = $region84
        $region83: #{fashion_mnist_forward.1} parent=79 // pred_region
          %p484 = scmp.lt.s32.totalorder %s26, 1
          %s485 = scalar_select %p484, %s26, 1
          %s486 = smul.addr %s485, 8
          %s487 = smul.addr %s486, 8
          %s488 = scalar_lea.vmem %s0, %s487
        $region84: #{fashion_mnist_forward.1} parent=79 // pred_fallthru
          _
      $region80: #{fashion_mnist_forward.1} parent=5 // pred_fallthru
        _
      %p489 = scmp.le.s32.totalorder 1, %s26
      %p490 = scmp.lt.s32.totalorder %s26, 3
      %p491 = pnand %p489, %p490
      %p492 = pneg %p491
      // Predicated region
      $region85: #{fashion_mnist_forward.1} parent=5 // pred_check
        _
      $region86: #{fashion_mnist_forward.1} parent=5 // pred_check_branch
        %494 = sbr.rel (%p491) target = $region88
      $region87: #{fashion_mnist_forward.1} parent=5 // pred_region
        %s495 = ssub.s32 %s26, 1
        %p496 = scmp.lt.s32.totalorder %s31, 1
        %s497 = scalar_select %p496, %s31, 1
        %s498 = smul.addr %s497, 8
        %s499 = smul.addr %s498, 8
        %s500 = scalar_lea.vmem %s0, %s499
        %p501 = pneg %p52
        %p502 = pneg %p49
        %p503 = pneg %p73
        %p504 = pneg %p70
        %p505 = pneg %p94
        %p506 = pneg %p91
        %p507 = pneg %p115
        %p508 = pneg %p112
        %p509 = pneg %p136
        %p510 = pneg %p133
        %p511 = pneg %p157
        %p512 = pneg %p154
        %p513 = pneg %p178
        %p514 = pneg %p175
        %p515 = pneg %p199
        %p516 = pneg %p196
        %p517 = pneg %p220
        %p518 = pneg %p217
        %p519 = pneg %p241
        %p520 = pneg %p238
        %p521 = pneg %p262
        %p522 = pneg %p259
        %p523 = pneg %p283
        %p524 = pneg %p280
        %p525 = pneg %p304
        %p526 = pneg %p301
        %p527 = pneg %p325
        %p528 = pneg %p322
        %p529 = pneg %p346
        %p530 = pneg %p343
        %p531 = pneg %p367
        %p532 = pneg %p364
        %p533 = pneg %p388
        %p534 = pneg %p385
        %p535 = pneg %p414
        %p536 = pneg %p411
        %s537 = sand.u32 %s401, 1
        %s538 = scalar_lea.sflag [#allocation3], %s537
        %s539 = sand.u32 %s401, 1
        %s540 = scalar_lea.vmem [#allocation2], %s539
        %p541 = scmp.lt.s32.totalorder %s31, 1
        %s542 = scalar_select %p541, %s31, 1
        %s543 = smul.addr %s542, 8
        %s544 = smul.addr %s543, 8
        %s545 = scalar_lea.vmem %s0, %s544
        %v547 = vld [vmem:[%s545] sm:$0xff]
        %v548 = vld [vmem:[%s545 + $0x8] sm:$0xff]
        %v549 = vld [vmem:[%s545 + $0x10] sm:$0xff]
        %v550 = vld [vmem:[%s545 + $0x18] sm:$0xff]
        %v551 = vld [vmem:[%s545 + $0x20] sm:$0xff]
        %v552 = vld [vmem:[%s545 + $0x28] sm:$0xff]
        %v553 = vld [vmem:[%s545 + $0x30] sm:$0xff]
        %v554 = vld [vmem:[%s545 + $0x38] sm:$0xff]
        %555 = vrot.lane.b32.xlu0 %v547, 127
        %v556 = vpop.permute.xlu0 %555
        %557 = vrot.lane.b32.xlu0 %v548, 127
        %v558 = vpop.permute.xlu0 %557
        %559 = vrot.lane.b32.xlu0 %v549, 127
        %v560 = vpop.permute.xlu0 %559
        %561 = vrot.lane.b32.xlu0 %v550, 127
        %v562 = vpop.permute.xlu0 %561
        %563 = vrot.lane.b32.xlu0 %v551, 127
        %v564 = vpop.permute.xlu0 %563
        %565 = vrot.lane.b32.xlu0 %v552, 127
        %v566 = vpop.permute.xlu0 %565
        %567 = vrot.lane.b32.xlu0 %v553, 127
        %v568 = vpop.permute.xlu0 %567
        %569 = vrot.lane.b32.xlu0 %v554, 127
        %v570 = vpop.permute.xlu0 %569
        %v571 = vlaneseq
        %v572 = vand.u32 %v571, 127
        %vm573 = vcmp.lt.s32.totalorder %v572, 127
        %v574 = vsel %vm573, %v568, %v570
        %v575 = vsel %vm573, %v566, %v568
        %v576 = vsel %vm573, %v564, %v566
        %v577 = vsel %vm573, %v562, %v564
        %v578 = vsel %vm573, %v560, %v562
        %v579 = vsel %vm573, %v558, %v560
        %v580 = vsel %vm573, %v556, %v558
        %v581 = vsel %vm573, %v570, %v556
        %582 = vrot.lane.b32.xlu0 %v547, 126
        %v583 = vpop.permute.xlu0 %582
        %584 = vrot.lane.b32.xlu0 %v548, 126
        %v585 = vpop.permute.xlu0 %584
        %586 = vrot.lane.b32.xlu0 %v549, 126
        %v587 = vpop.permute.xlu0 %586
        %588 = vrot.lane.b32.xlu0 %v550, 126
        %v589 = vpop.permute.xlu0 %588
        %590 = vrot.lane.b32.xlu0 %v551, 126
        %v591 = vpop.permute.xlu0 %590
        %592 = vrot.lane.b32.xlu0 %v552, 126
        %v593 = vpop.permute.xlu0 %592
        %594 = vrot.lane.b32.xlu0 %v553, 126
        %v595 = vpop.permute.xlu0 %594
        %596 = vrot.lane.b32.xlu0 %v554, 126
        %v597 = vpop.permute.xlu0 %596
        %vm598 = vcmp.lt.s32.totalorder %v572, 126
        %v599 = vsel %vm598, %v595, %v597
        %v600 = vsel %vm598, %v593, %v595
        %v601 = vsel %vm598, %v591, %v593
        %v602 = vsel %vm598, %v589, %v591
        %v603 = vsel %vm598, %v587, %v589
        %v604 = vsel %vm598, %v585, %v587
        %v605 = vsel %vm598, %v583, %v585
        %v606 = vsel %vm598, %v597, %v583
        %607 = vrot.lane.b32.xlu0 %v547, 98
        %v608 = vpop.permute.xlu0 %607
        %609 = vrot.lane.b32.xlu0 %v548, 98
        %v610 = vpop.permute.xlu0 %609
        %611 = vrot.lane.b32.xlu0 %v549, 98
        %v612 = vpop.permute.xlu0 %611
        %613 = vrot.lane.b32.xlu0 %v550, 98
        %v614 = vpop.permute.xlu0 %613
        %615 = vrot.lane.b32.xlu0 %v551, 98
        %v616 = vpop.permute.xlu0 %615
        %617 = vrot.lane.b32.xlu0 %v552, 98
        %v618 = vpop.permute.xlu0 %617
        %619 = vrot.lane.b32.xlu0 %v553, 98
        %v620 = vpop.permute.xlu0 %619
        %621 = vrot.lane.b32.xlu0 %v554, 98
        %v622 = vpop.permute.xlu0 %621
        %vm623 = vcmp.lt.s32.totalorder %v572, 98
        %v624 = vsel %vm623, %v620, %v622
        %v625 = vsel %vm623, %v618, %v620
        %v626 = vsel %vm623, %v616, %v618
        %v627 = vsel %vm623, %v614, %v616
        %v628 = vsel %vm623, %v612, %v614
        %v629 = vsel %vm623, %v610, %v612
        %v630 = vsel %vm623, %v608, %v610
        %v631 = vsel %vm623, %v622, %v608
        %632 = vrot.lane.b32.xlu0 %v547, 97
        %v633 = vpop.permute.xlu0 %632
        %634 = vrot.lane.b32.xlu0 %v548, 97
        %v635 = vpop.permute.xlu0 %634
        %636 = vrot.lane.b32.xlu0 %v549, 97
        %v637 = vpop.permute.xlu0 %636
        %638 = vrot.lane.b32.xlu0 %v550, 97
        %v639 = vpop.permute.xlu0 %638
        %640 = vrot.lane.b32.xlu0 %v551, 97
        %v641 = vpop.permute.xlu0 %640
        %642 = vrot.lane.b32.xlu0 %v552, 97
        %v643 = vpop.permute.xlu0 %642
        %644 = vrot.lane.b32.xlu0 %v553, 97
        %v645 = vpop.permute.xlu0 %644
        %646 = vrot.lane.b32.xlu0 %v554, 97
        %v647 = vpop.permute.xlu0 %646
        %vm648 = vcmp.lt.s32.totalorder %v572, 97
        %v649 = vsel %vm648, %v645, %v647
        %v650 = vsel %vm648, %v643, %v645
        %v651 = vsel %vm648, %v641, %v643
        %v652 = vsel %vm648, %v639, %v641
        %v653 = vsel %vm648, %v637, %v639
        %v654 = vsel %vm648, %v635, %v637
        %v655 = vsel %vm648, %v633, %v635
        %v656 = vsel %vm648, %v647, %v633
        %657 = vrot.lane.b32.xlu0 %v547, 96
        %v658 = vpop.permute.xlu0 %657
        %659 = vrot.lane.b32.xlu0 %v548, 96
        %v660 = vpop.permute.xlu0 %659
        %661 = vrot.lane.b32.xlu0 %v549, 96
        %v662 = vpop.permute.xlu0 %661
        %663 = vrot.lane.b32.xlu0 %v550, 96
        %v664 = vpop.permute.xlu0 %663
        %665 = vrot.lane.b32.xlu0 %v551, 96
        %v666 = vpop.permute.xlu0 %665
        %667 = vrot.lane.b32.xlu0 %v552, 96
        %v668 = vpop.permute.xlu0 %667
        %669 = vrot.lane.b32.xlu0 %v553, 96
        %v670 = vpop.permute.xlu0 %669
        %671 = vrot.lane.b32.xlu0 %v554, 96
        %v672 = vpop.permute.xlu0 %671
        %vm673 = vcmp.lt.s32.totalorder %v572, 96
        %v674 = vsel %vm673, %v670, %v672
        %v675 = vsel %vm673, %v668, %v670
        %v676 = vsel %vm673, %v666, %v668
        %v677 = vsel %vm673, %v664, %v666
        %v678 = vsel %vm673, %v662, %v664
        %v679 = vsel %vm673, %v660, %v662
        %v680 = vsel %vm673, %v658, %v660
        %v681 = vsel %vm673, %v672, %v658
        %682 = vrot.lane.b32.xlu0 %v547, 68
        %v683 = vpop.permute.xlu0 %682
        %684 = vrot.lane.b32.xlu0 %v548, 68
        %v685 = vpop.permute.xlu0 %684
        %686 = vrot.lane.b32.xlu0 %v549, 68
        %v687 = vpop.permute.xlu0 %686
        %688 = vrot.lane.b32.xlu0 %v550, 68
        %v689 = vpop.permute.xlu0 %688
        %690 = vrot.lane.b32.xlu0 %v551, 68
        %v691 = vpop.permute.xlu0 %690
        %692 = vrot.lane.b32.xlu0 %v552, 68
        %v693 = vpop.permute.xlu0 %692
        %694 = vrot.lane.b32.xlu0 %v553, 68
        %v695 = vpop.permute.xlu0 %694
        %696 = vrot.lane.b32.xlu0 %v554, 68
        %v697 = vpop.permute.xlu0 %696
        %vm698 = vcmp.lt.s32.totalorder %v572, 68
        %v699 = vsel %vm698, %v695, %v697
        %v700 = vsel %vm698, %v693, %v695
        %v701 = vsel %vm698, %v691, %v693
        %v702 = vsel %vm698, %v689, %v691
        %v703 = vsel %vm698, %v687, %v689
        %v704 = vsel %vm698, %v685, %v687
        %v705 = vsel %vm698, %v683, %v685
        %v706 = vsel %vm698, %v697, %v683
        %707 = vrot.lane.b32.xlu0 %v547, 67
        %v708 = vpop.permute.xlu0 %707
        %709 = vrot.lane.b32.xlu0 %v548, 67
        %v710 = vpop.permute.xlu0 %709
        %711 = vrot.lane.b32.xlu0 %v549, 67
        %v712 = vpop.permute.xlu0 %711
        %713 = vrot.lane.b32.xlu0 %v550, 67
        %v714 = vpop.permute.xlu0 %713
        %715 = vrot.lane.b32.xlu0 %v551, 67
        %v716 = vpop.permute.xlu0 %715
        %717 = vrot.lane.b32.xlu0 %v552, 67
        %v718 = vpop.permute.xlu0 %717
        %719 = vrot.lane.b32.xlu0 %v553, 67
        %v720 = vpop.permute.xlu0 %719
        %721 = vrot.lane.b32.xlu0 %v554, 67
        %v722 = vpop.permute.xlu0 %721
        %vm723 = vcmp.lt.s32.totalorder %v572, 67
        %v724 = vsel %vm723, %v720, %v722
        %v725 = vsel %vm723, %v718, %v720
        %v726 = vsel %vm723, %v716, %v718
        %v727 = vsel %vm723, %v714, %v716
        %v728 = vsel %vm723, %v712, %v714
        %v729 = vsel %vm723, %v710, %v712
        %v730 = vsel %vm723, %v708, %v710
        %v731 = vsel %vm723, %v722, %v708
        %732 = vrot.lane.b32.xlu0 %v547, 66
        %v733 = vpop.permute.xlu0 %732
        %734 = vrot.lane.b32.xlu0 %v548, 66
        %v735 = vpop.permute.xlu0 %734
        %736 = vrot.lane.b32.xlu0 %v549, 66
        %v737 = vpop.permute.xlu0 %736
        %738 = vrot.lane.b32.xlu0 %v550, 66
        %v739 = vpop.permute.xlu0 %738
        %740 = vrot.lane.b32.xlu0 %v551, 66
        %v741 = vpop.permute.xlu0 %740
        %742 = vrot.lane.b32.xlu0 %v552, 66
        %v743 = vpop.permute.xlu0 %742
        %744 = vrot.lane.b32.xlu0 %v553, 66
        %v745 = vpop.permute.xlu0 %744
        %746 = vrot.lane.b32.xlu0 %v554, 66
        %v747 = vpop.permute.xlu0 %746
        %vm748 = vcmp.lt.s32.totalorder %v572, 66
        %v749 = vsel %vm748, %v745, %v747
        %v750 = vsel %vm748, %v743, %v745
        %v751 = vsel %vm748, %v741, %v743
        %v752 = vsel %vm748, %v739, %v741
        %v753 = vsel %vm748, %v737, %v739
        %v754 = vsel %vm748, %v735, %v737
        %v755 = vsel %vm748, %v733, %v735
        %v756 = vsel %vm748, %v747, %v733
        %v757 = vld [vmem:[%s1] sm:$0xf]
        %v758 = vpack.c.bf16 %v580, %v547
        %v759 = vpack.c.bf16 %v579, %v548
        %v760 = vpack.c.bf16 %v578, %v549
        %v761 = vpack.c.bf16 %v577, %v550
        %v762 = vpack.c.bf16 %v576, %v551
        %v763 = vpack.c.bf16 %v575, %v552
        %v764 = vpack.c.bf16 %v574, %v553
        %v765 = vpack.c.bf16 %v581, %v554
        %v766 = vpack.c.bf16 %v630, %v605
        %v767 = vpack.c.bf16 %v629, %v604
        %v768 = vpack.c.bf16 %v628, %v603
        %v769 = vpack.c.bf16 %v627, %v602
        %v770 = vpack.c.bf16 %v626, %v601
        %v771 = vpack.c.bf16 %v625, %v600
        %v772 = vpack.c.bf16 %v624, %v599
        %v773 = vpack.c.bf16 %v631, %v606
        %v774 = vpack.c.bf16 %v680, %v655
        %v775 = vpack.c.bf16 %v679, %v654
        %v776 = vpack.c.bf16 %v678, %v653
        %v777 = vpack.c.bf16 %v677, %v652
        %v778 = vpack.c.bf16 %v676, %v651
        %v779 = vpack.c.bf16 %v675, %v650
        %v780 = vpack.c.bf16 %v674, %v649
        %v781 = vpack.c.bf16 %v681, %v656
        %v782 = vpack.c.bf16 %v730, %v705
        %v783 = vpack.c.bf16 %v729, %v704
        %v784 = vpack.c.bf16 %v728, %v703
        %v785 = vpack.c.bf16 %v727, %v702
        %v786 = vpack.c.bf16 %v726, %v701
        %v787 = vpack.c.bf16 %v725, %v700
        %v788 = vpack.c.bf16 %v724, %v699
        %v789 = vpack.c.bf16 %v731, %v706
        %v790 = vpack.c.bf16 %v755, %v755
        %v791 = vpack.c.bf16 %v754, %v754
        %v792 = vpack.c.bf16 %v753, %v753
        %v793 = vpack.c.bf16 %v752, %v752
        %v794 = vpack.c.bf16 %v751, %v751
        %v795 = vpack.c.bf16 %v750, %v750
        %v796 = vpack.c.bf16 %v749, %v749
        %v797 = vpack.c.bf16 %v756, %v756
        %v798 = vld [vmem:[%s2] sm:$0xff]
        %800 = vset.pattern.permute.xlu0 0
        %801 = vperm.xlu0 %800, %v798
        %v802 = vpop.permute.xlu0 %801
        %vm804 = vcmask 588800
        %v806 = vsel %vm804, %v757, 0
        %vm808 = vcmask 1043456
        %v810 = vsel %vm808, %v790, 0
        %v813 = vsel %vm808, %v791, 0
        %v816 = vsel %vm808, %v792, 0
        %v819 = vsel %vm808, %v793, 0
        %v822 = vsel %vm808, %v794, 0
        %v825 = vsel %vm808, %v795, 0
        %v828 = vsel %vm808, %v796, 0
        %v831 = vsel %vm808, %v797, 0
        %833 = vmatprep.subr.bf16.mxu0 %v759
        %834 = vmatpush1.bf16.msra.mxu0 %v758
        %835 = vmatprep.subr.bf16.mxu0 %v767
        %836 = vmatpush1.bf16.msra.mxu0 %v766
        %837 = vmatprep.subr.bf16.mxu0 %v775
        %838 = vmatpush1.bf16.msra.mxu0 %v774
        %839 = vmatprep.subr.bf16.mxu0 %v783
        %840 = vmatpush1.bf16.msra.mxu0 %v782
        %841 = vmatprep.subr.bf16.mxu0 %v813
        %842 = vmatpush1.bf16.msra.mxu0 %v810
        %843 = vmatprep.subr.bf16.mxu0 0
        %844 = vmatpush1.bf16.msra.mxu0 0
        %845 = vmatprep.subr.bf16.mxu0 0
        %846 = vmatpush1.bf16.msra.mxu0 0
        %847 = vmatprep.subr.bf16.mxu0 0
        %848 = vmatpush1.bf16.msra.mxu0 0
        %849 = vmatprep.subr.bf16.mxu0 0
        %850 = vmatpush1.bf16.msra.mxu0 0
        %851 = vmatprep.subr.bf16.mxu0 0
        %852 = vmatpush1.bf16.msra.mxu0 0
        %853 = vmatprep.subr.bf16.mxu0 0
        %854 = vmatpush1.bf16.msra.mxu0 0
        %855 = vmatprep.subr.bf16.mxu0 0
        %856 = vmatpush1.bf16.msra.mxu0 0
        %857 = vmatprep.subr.bf16.mxu0 0
        %858 = vmatpush1.bf16.msra.mxu0 0
        %859 = vmatprep.subr.bf16.mxu0 0
        %860 = vmatpush1.bf16.msra.mxu0 0
        %861 = vmatprep.subr.bf16.mxu0 0
        %862 = vmatpush1.bf16.msra.mxu0 0
        %863 = vmatprep.subr.bf16.mxu0 0
        %864 = vmatpush1.bf16.msra.mxu0 0
        %865 = vmatprep.mubr.bf16.mxu0 0
        %866 = vmatmul.mubr.bf16.gmra.mrb[0].mxu0 %v806
        %v867 = vpop.f32.mrb[0].mxu0
        %v868 = vadd.f32 %v802, %v867
        %v869 = vpop.f32.mrb[0].mxu0
        %v870 = vadd.f32 %v802, %v869
        %v871 = vpop.f32.mrb[0].mxu0
        %v872 = vpop.f32.mrb[0].mxu0
        %873 = vdwg.mxu0
        %874 = vmatprep.subr.bf16.mxu0 %v761
        %875 = vmatpush1.bf16.msra.mxu0 %v760
        %876 = vmatprep.subr.bf16.mxu0 %v769
        %877 = vmatpush1.bf16.msra.mxu0 %v768
        %878 = vmatprep.subr.bf16.mxu0 %v777
        %879 = vmatpush1.bf16.msra.mxu0 %v776
        %880 = vmatprep.subr.bf16.mxu0 %v785
        %881 = vmatpush1.bf16.msra.mxu0 %v784
        %882 = vmatprep.subr.bf16.mxu0 %v819
        %883 = vmatpush1.bf16.msra.mxu0 %v816
        %884 = vmatprep.subr.bf16.mxu0 0
        %885 = vmatpush1.bf16.msra.mxu0 0
        %886 = vmatprep.subr.bf16.mxu0 0
        %887 = vmatpush1.bf16.msra.mxu0 0
        %888 = vmatprep.subr.bf16.mxu0 0
        %889 = vmatpush1.bf16.msra.mxu0 0
        %890 = vmatprep.subr.bf16.mxu0 0
        %891 = vmatpush1.bf16.msra.mxu0 0
        %892 = vmatprep.subr.bf16.mxu0 0
        %893 = vmatpush1.bf16.msra.mxu0 0
        %894 = vmatprep.subr.bf16.mxu0 0
        %895 = vmatpush1.bf16.msra.mxu0 0
        %896 = vmatprep.subr.bf16.mxu0 0
        %897 = vmatpush1.bf16.msra.mxu0 0
        %898 = vmatprep.subr.bf16.mxu0 0
        %899 = vmatpush1.bf16.msra.mxu0 0
        %900 = vmatprep.subr.bf16.mxu0 0
        %901 = vmatpush1.bf16.msra.mxu0 0
        %902 = vmatprep.subr.bf16.mxu0 0
        %903 = vmatpush1.bf16.msra.mxu0 0
        %904 = vmatprep.subr.bf16.mxu0 0
        %905 = vmatpush1.bf16.msra.mxu0 0
        %906 = vmatprep.mubr.bf16.mxu0 0
        %907 = vmatmul.mubr.bf16.gmra.mrb[0].mxu0 %v806
        %v908 = vpop.f32.mrb[0].mxu0
        %v909 = vadd.f32 %v802, %v908
        %v910 = vpop.f32.mrb[0].mxu0
        %v911 = vadd.f32 %v802, %v910
        %v912 = vpop.f32.mrb[0].mxu0
        %v913 = vpop.f32.mrb[0].mxu0
        %914 = vdwg.mxu0
        %915 = vmatprep.subr.bf16.mxu0 %v763
        %916 = vmatpush1.bf16.msra.mxu0 %v762
        %917 = vmatprep.subr.bf16.mxu0 %v771
        %918 = vmatpush1.bf16.msra.mxu0 %v770
        %919 = vmatprep.subr.bf16.mxu0 %v779
        %920 = vmatpush1.bf16.msra.mxu0 %v778
        %921 = vmatprep.subr.bf16.mxu0 %v787
        %922 = vmatpush1.bf16.msra.mxu0 %v786
        %923 = vmatprep.subr.bf16.mxu0 %v825
        %924 = vmatpush1.bf16.msra.mxu0 %v822
        %925 = vmatprep.subr.bf16.mxu0 0
        %926 = vmatpush1.bf16.msra.mxu0 0
        %927 = vmatprep.subr.bf16.mxu0 0
        %928 = vmatpush1.bf16.msra.mxu0 0
        %929 = vmatprep.subr.bf16.mxu0 0
        %930 = vmatpush1.bf16.msra.mxu0 0
        %931 = vmatprep.subr.bf16.mxu0 0
        %932 = vmatpush1.bf16.msra.mxu0 0
        %933 = vmatprep.subr.bf16.mxu0 0
        %934 = vmatpush1.bf16.msra.mxu0 0
        %935 = vmatprep.subr.bf16.mxu0 0
        %936 = vmatpush1.bf16.msra.mxu0 0
        %937 = vmatprep.subr.bf16.mxu0 0
        %938 = vmatpush1.bf16.msra.mxu0 0
        %939 = vmatprep.subr.bf16.mxu0 0
        %940 = vmatpush1.bf16.msra.mxu0 0
        %941 = vmatprep.subr.bf16.mxu0 0
        %942 = vmatpush1.bf16.msra.mxu0 0
        %943 = vmatprep.subr.bf16.mxu0 0
        %944 = vmatpush1.bf16.msra.mxu0 0
        %945 = vmatprep.subr.bf16.mxu0 0
        %946 = vmatpush1.bf16.msra.mxu0 0
        %947 = vmatprep.mubr.bf16.mxu0 0
        %948 = vmatmul.mubr.bf16.gmra.mrb[0].mxu0 %v806
        %v949 = vpop.f32.mrb[0].mxu0
        %v950 = vadd.f32 %v802, %v949
        %v951 = vpop.f32.mrb[0].mxu0
        %v952 = vadd.f32 %v802, %v951
        %v953 = vpop.f32.mrb[0].mxu0
        %v954 = vpop.f32.mrb[0].mxu0
        %955 = vdwg.mxu0
        %956 = vmatprep.subr.bf16.mxu0 %v765
        %957 = vmatpush1.bf16.msra.mxu0 %v764
        %958 = vmatprep.subr.bf16.mxu0 %v773
        %959 = vmatpush1.bf16.msra.mxu0 %v772
        %960 = vmatprep.subr.bf16.mxu0 %v781
        %961 = vmatpush1.bf16.msra.mxu0 %v780
        %962 = vmatprep.subr.bf16.mxu0 %v789
        %963 = vmatpush1.bf16.msra.mxu0 %v788
        %964 = vmatprep.subr.bf16.mxu0 %v831
        %965 = vmatpush1.bf16.msra.mxu0 %v828
        %966 = vmatprep.subr.bf16.mxu0 0
        %967 = vmatpush1.bf16.msra.mxu0 0
        %968 = vmatprep.subr.bf16.mxu0 0
        %969 = vmatpush1.bf16.msra.mxu0 0
        %970 = vmatprep.subr.bf16.mxu0 0
        %971 = vmatpush1.bf16.msra.mxu0 0
        %972 = vmatprep.subr.bf16.mxu0 0
        %973 = vmatpush1.bf16.msra.mxu0 0
        %974 = vmatprep.subr.bf16.mxu0 0
        %975 = vmatpush1.bf16.msra.mxu0 0
        %976 = vmatprep.subr.bf16.mxu0 0
        %977 = vmatpush1.bf16.msra.mxu0 0
        %978 = vmatprep.subr.bf16.mxu0 0
        %979 = vmatpush1.bf16.msra.mxu0 0
        %980 = vmatprep.subr.bf16.mxu0 0
        %981 = vmatpush1.bf16.msra.mxu0 0
        %982 = vmatprep.subr.bf16.mxu0 0
        %983 = vmatpush1.bf16.msra.mxu0 0
        %984 = vmatprep.subr.bf16.mxu0 0
        %985 = vmatpush1.bf16.msra.mxu0 0
        %986 = vmatprep.subr.bf16.mxu0 0
        %987 = vmatpush1.bf16.msra.mxu0 0
        %988 = vmatprep.mubr.bf16.mxu0 0
        %989 = vmatmul.mubr.bf16.gmra.mrb[0].mxu0 %v806
        %v990 = vpop.f32.mrb[0].mxu0
        %v991 = vadd.f32 %v802, %v990
        %v992 = vpop.f32.mrb[0].mxu0
        %v993 = vadd.f32 %v802, %v992
        %v994 = vpop.f32.mrb[0].mxu0
        %v995 = vpop.f32.mrb[0].mxu0
        %996 = vdwg.mxu0
        %v997 = vmax.f32 %v868, 0.0
        %v998 = vmax.f32 %v870, 0.0
        %v999 = vmax.f32 %v909, 0.0
        %v1000 = vmax.f32 %v911, 0.0
        %v1001 = vmax.f32 %v950, 0.0
        %v1002 = vmax.f32 %v952, 0.0
        %v1003 = vmax.f32 %v991, 0.0
        %v1004 = vmax.f32 %v993, 0.0
        %v1005 = vld [vmem:[%s15] sm:$0xff]
        %v1007 = vlaneseq
        %v1008 = vshrl.u32 %v1007, 7
        %v1009 = vsub.s32 0, %v1008
        %v1010 = vrot.slane %v1005, %v1009
        %v1011 = vlaneseq
        %v1012 = vshrl.u32 %v1011, 7
        %v1013 = vsub.s32 1, %v1012
        %v1014 = vrot.slane %v1005, %v1013
        %v1015 = vlaneseq
        %v1016 = vshrl.u32 %v1015, 7
        %v1017 = vsub.s32 2, %v1016
        %v1018 = vrot.slane %v1005, %v1017
        %v1019 = vlaneseq
        %v1020 = vshrl.u32 %v1019, 7
        %v1021 = vsub.s32 3, %v1020
        %v1022 = vrot.slane %v1005, %v1021
        %v1023 = vlaneseq
        %v1024 = vshrl.u32 %v1023, 7
        %v1025 = vsub.s32 4, %v1024
        %v1026 = vrot.slane %v1005, %v1025
        %v1027 = vlaneseq
        %v1028 = vshrl.u32 %v1027, 7
        %v1029 = vsub.s32 5, %v1028
        %v1030 = vrot.slane %v1005, %v1029
        %v1031 = vlaneseq
        %v1032 = vshrl.u32 %v1031, 7
        %v1033 = vsub.s32 6, %v1032
        %v1034 = vrot.slane %v1005, %v1033
        %v1035 = vlaneseq
        %v1036 = vshrl.u32 %v1035, 7
        %v1037 = vsub.s32 7, %v1036
        %v1038 = vrot.slane %v1005, %v1037
        %v1047 = vmul.f32 %v997, %v1010
        %v1048 = vmul.f32 %v998, %v1014
        %v1049 = vmul.f32 %v999, %v1018
        %v1050 = vmul.f32 %v1000, %v1022
        %v1051 = vmul.f32 %v1001, %v1026
        %v1052 = vmul.f32 %v1002, %v1030
        %v1053 = vmul.f32 %v1003, %v1034
        %v1054 = vmul.f32 %v1004, %v1038
        %1055 = vrot.lane.b32.xlu0 %v1047, 31
        %v1056 = vpop.permute.xlu0 %1055
        %1057 = vrot.lane.b32.xlu0 %v1048, 31
        %v1058 = vpop.permute.xlu0 %1057
        %1059 = vrot.lane.b32.xlu0 %v1049, 31
        %v1060 = vpop.permute.xlu0 %1059
        %1061 = vrot.lane.b32.xlu0 %v1050, 31
        %v1062 = vpop.permute.xlu0 %1061
        %1063 = vrot.lane.b32.xlu0 %v1051, 31
        %v1064 = vpop.permute.xlu0 %1063
        %1065 = vrot.lane.b32.xlu0 %v1052, 31
        %v1066 = vpop.permute.xlu0 %1065
        %1067 = vrot.lane.b32.xlu0 %v1053, 31
        %v1068 = vpop.permute.xlu0 %1067
        %1069 = vrot.lane.b32.xlu0 %v1054, 31
        %v1070 = vpop.permute.xlu0 %1069
        %vm1071 = vcmp.lt.s32.totalorder %v572, 31
        %v1072 = vsel %vm1071, %v1068, %v1070
        %v1073 = vsel %vm1071, %v1066, %v1068
        %v1074 = vsel %vm1071, %v1064, %v1066
        %v1075 = vsel %vm1071, %v1062, %v1064
        %v1076 = vsel %vm1071, %v1060, %v1062
        %v1077 = vsel %vm1071, %v1058, %v1060
        %v1078 = vsel %vm1071, %v1056, %v1058
        %v1079 = vsel %vm1071, %v1070, %v1056
        %1080 = vrot.lane.b32.xlu0 %v1079, 127
        %v1081 = vpop.permute.xlu0 %1080
        %1082 = vrot.lane.b32.xlu0 %v1078, 127
        %v1083 = vpop.permute.xlu0 %1082
        %1084 = vrot.lane.b32.xlu0 %v1077, 127
        %v1085 = vpop.permute.xlu0 %1084
        %1086 = vrot.lane.b32.xlu0 %v1076, 127
        %v1087 = vpop.permute.xlu0 %1086
        %1088 = vrot.lane.b32.xlu0 %v1075, 127
        %v1089 = vpop.permute.xlu0 %1088
        %1090 = vrot.lane.b32.xlu0 %v1074, 127
        %v1091 = vpop.permute.xlu0 %1090
        %1092 = vrot.lane.b32.xlu0 %v1073, 127
        %v1093 = vpop.permute.xlu0 %1092
        %1094 = vrot.lane.b32.xlu0 %v1072, 127
        %v1095 = vpop.permute.xlu0 %1094
        %v1096 = vsel %vm573, %v1093, %v1095
        %v1097 = vsel %vm573, %v1091, %v1093
        %v1098 = vsel %vm573, %v1089, %v1091
        %v1099 = vsel %vm573, %v1087, %v1089
        %v1100 = vsel %vm573, %v1085, %v1087
        %v1101 = vsel %vm573, %v1083, %v1085
        %v1102 = vsel %vm573, %v1081, %v1083
        %v1103 = vsel %vm573, %v1095, %v1081
        %1104 = vrot.lane.b32.xlu0 %v1079, 126
        %v1105 = vpop.permute.xlu0 %1104
        %1106 = vrot.lane.b32.xlu0 %v1078, 126
        %v1107 = vpop.permute.xlu0 %1106
        %1108 = vrot.lane.b32.xlu0 %v1077, 126
        %v1109 = vpop.permute.xlu0 %1108
        %1110 = vrot.lane.b32.xlu0 %v1076, 126
        %v1111 = vpop.permute.xlu0 %1110
        %1112 = vrot.lane.b32.xlu0 %v1075, 126
        %v1113 = vpop.permute.xlu0 %1112
        %1114 = vrot.lane.b32.xlu0 %v1074, 126
        %v1115 = vpop.permute.xlu0 %1114
        %1116 = vrot.lane.b32.xlu0 %v1073, 126
        %v1117 = vpop.permute.xlu0 %1116
        %1118 = vrot.lane.b32.xlu0 %v1072, 126
        %v1119 = vpop.permute.xlu0 %1118
        %v1120 = vsel %vm598, %v1117, %v1119
        %v1121 = vsel %vm598, %v1115, %v1117
        %v1122 = vsel %vm598, %v1113, %v1115
        %v1123 = vsel %vm598, %v1111, %v1113
        %v1124 = vsel %vm598, %v1109, %v1111
        %v1125 = vsel %vm598, %v1107, %v1109
        %v1126 = vsel %vm598, %v1105, %v1107
        %v1127 = vsel %vm598, %v1119, %v1105
        %1128 = vrot.lane.b32.xlu0 %v1079, 98
        %v1129 = vpop.permute.xlu0 %1128
        %1130 = vrot.lane.b32.xlu0 %v1078, 98
        %v1131 = vpop.permute.xlu0 %1130
        %1132 = vrot.lane.b32.xlu0 %v1077, 98
        %v1133 = vpop.permute.xlu0 %1132
        %1134 = vrot.lane.b32.xlu0 %v1076, 98
        %v1135 = vpop.permute.xlu0 %1134
        %1136 = vrot.lane.b32.xlu0 %v1075, 98
        %v1137 = vpop.permute.xlu0 %1136
        %1138 = vrot.lane.b32.xlu0 %v1074, 98
        %v1139 = vpop.permute.xlu0 %1138
        %1140 = vrot.lane.b32.xlu0 %v1073, 98
        %v1141 = vpop.permute.xlu0 %1140
        %1142 = vrot.lane.b32.xlu0 %v1072, 98
        %v1143 = vpop.permute.xlu0 %1142
        %v1144 = vsel %vm623, %v1141, %v1143
        %v1145 = vsel %vm623, %v1139, %v1141
        %v1146 = vsel %vm623, %v1137, %v1139
        %v1147 = vsel %vm623, %v1135, %v1137
        %v1148 = vsel %vm623, %v1133, %v1135
        %v1149 = vsel %vm623, %v1131, %v1133
        %v1150 = vsel %vm623, %v1129, %v1131
        %v1151 = vsel %vm623, %v1143, %v1129
        %1152 = vrot.lane.b32.xlu0 %v1079, 97
        %v1153 = vpop.permute.xlu0 %1152
        %1154 = vrot.lane.b32.xlu0 %v1078, 97
        %v1155 = vpop.permute.xlu0 %1154
        %1156 = vrot.lane.b32.xlu0 %v1077, 97
        %v1157 = vpop.permute.xlu0 %1156
        %1158 = vrot.lane.b32.xlu0 %v1076, 97
        %v1159 = vpop.permute.xlu0 %1158
        %1160 = vrot.lane.b32.xlu0 %v1075, 97
        %v1161 = vpop.permute.xlu0 %1160
        %1162 = vrot.lane.b32.xlu0 %v1074, 97
        %v1163 = vpop.permute.xlu0 %1162
        %1164 = vrot.lane.b32.xlu0 %v1073, 97
        %v1165 = vpop.permute.xlu0 %1164
        %1166 = vrot.lane.b32.xlu0 %v1072, 97
        %v1167 = vpop.permute.xlu0 %1166
        %v1168 = vsel %vm648, %v1165, %v1167
        %v1169 = vsel %vm648, %v1163, %v1165
        %v1170 = vsel %vm648, %v1161, %v1163
        %v1171 = vsel %vm648, %v1159, %v1161
        %v1172 = vsel %vm648, %v1157, %v1159
        %v1173 = vsel %vm648, %v1155, %v1157
        %v1174 = vsel %vm648, %v1153, %v1155
        %v1175 = vsel %vm648, %v1167, %v1153
        %1176 = vrot.lane.b32.xlu0 %v1079, 96
        %v1177 = vpop.permute.xlu0 %1176
        %1178 = vrot.lane.b32.xlu0 %v1078, 96
        %v1179 = vpop.permute.xlu0 %1178
        %1180 = vrot.lane.b32.xlu0 %v1077, 96
        %v1181 = vpop.permute.xlu0 %1180
        %1182 = vrot.lane.b32.xlu0 %v1076, 96
        %v1183 = vpop.permute.xlu0 %1182
        %1184 = vrot.lane.b32.xlu0 %v1075, 96
        %v1185 = vpop.permute.xlu0 %1184
        %1186 = vrot.lane.b32.xlu0 %v1074, 96
        %v1187 = vpop.permute.xlu0 %1186
        %1188 = vrot.lane.b32.xlu0 %v1073, 96
        %v1189 = vpop.permute.xlu0 %1188
        %1190 = vrot.lane.b32.xlu0 %v1072, 96
        %v1191 = vpop.permute.xlu0 %1190
        %v1192 = vsel %vm673, %v1189, %v1191
        %v1193 = vsel %vm673, %v1187, %v1189
        %v1194 = vsel %vm673, %v1185, %v1187
        %v1195 = vsel %vm673, %v1183, %v1185
        %v1196 = vsel %vm673, %v1181, %v1183
        %v1197 = vsel %vm673, %v1179, %v1181
        %v1198 = vsel %vm673, %v1177, %v1179
        %v1199 = vsel %vm673, %v1191, %v1177
        %1200 = vrot.lane.b32.xlu0 %v1079, 68
        %v1201 = vpop.permute.xlu0 %1200
        %1202 = vrot.lane.b32.xlu0 %v1078, 68
        %v1203 = vpop.permute.xlu0 %1202
        %1204 = vrot.lane.b32.xlu0 %v1077, 68
        %v1205 = vpop.permute.xlu0 %1204
        %1206 = vrot.lane.b32.xlu0 %v1076, 68
        %v1207 = vpop.permute.xlu0 %1206
        %1208 = vrot.lane.b32.xlu0 %v1075, 68
        %v1209 = vpop.permute.xlu0 %1208
        %1210 = vrot.lane.b32.xlu0 %v1074, 68
        %v1211 = vpop.permute.xlu0 %1210
        %1212 = vrot.lane.b32.xlu0 %v1073, 68
        %v1213 = vpop.permute.xlu0 %1212
        %1214 = vrot.lane.b32.xlu0 %v1072, 68
        %v1215 = vpop.permute.xlu0 %1214
        %v1216 = vsel %vm698, %v1213, %v1215
        %v1217 = vsel %vm698, %v1211, %v1213
        %v1218 = vsel %vm698, %v1209, %v1211
        %v1219 = vsel %vm698, %v1207, %v1209
        %v1220 = vsel %vm698, %v1205, %v1207
        %v1221 = vsel %vm698, %v1203, %v1205
        %v1222 = vsel %vm698, %v1201, %v1203
        %v1223 = vsel %vm698, %v1215, %v1201
        %1224 = vrot.lane.b32.xlu0 %v1079, 67
        %v1225 = vpop.permute.xlu0 %1224
        %1226 = vrot.lane.b32.xlu0 %v1078, 67
        %v1227 = vpop.permute.xlu0 %1226
        %1228 = vrot.lane.b32.xlu0 %v1077, 67
        %v1229 = vpop.permute.xlu0 %1228
        %1230 = vrot.lane.b32.xlu0 %v1076, 67
        %v1231 = vpop.permute.xlu0 %1230
        %1232 = vrot.lane.b32.xlu0 %v1075, 67
        %v1233 = vpop.permute.xlu0 %1232
        %1234 = vrot.lane.b32.xlu0 %v1074, 67
        %v1235 = vpop.permute.xlu0 %1234
        %1236 = vrot.lane.b32.xlu0 %v1073, 67
        %v1237 = vpop.permute.xlu0 %1236
        %1238 = vrot.lane.b32.xlu0 %v1072, 67
        %v1239 = vpop.permute.xlu0 %1238
        %v1240 = vsel %vm723, %v1237, %v1239
        %v1241 = vsel %vm723, %v1235, %v1237
        %v1242 = vsel %vm723, %v1233, %v1235
        %v1243 = vsel %vm723, %v1231, %v1233
        %v1244 = vsel %vm723, %v1229, %v1231
        %v1245 = vsel %vm723, %v1227, %v1229
        %v1246 = vsel %vm723, %v1225, %v1227
        %v1247 = vsel %vm723, %v1239, %v1225
        %1248 = vrot.lane.b32.xlu0 %v1079, 66
        %v1249 = vpop.permute.xlu0 %1248
        %1250 = vrot.lane.b32.xlu0 %v1078, 66
        %v1251 = vpop.permute.xlu0 %1250
        %1252 = vrot.lane.b32.xlu0 %v1077, 66
        %v1253 = vpop.permute.xlu0 %1252
        %1254 = vrot.lane.b32.xlu0 %v1076, 66
        %v1255 = vpop.permute.xlu0 %1254
        %1256 = vrot.lane.b32.xlu0 %v1075, 66
        %v1257 = vpop.permute.xlu0 %1256
        %1258 = vrot.lane.b32.xlu0 %v1074, 66
        %v1259 = vpop.permute.xlu0 %1258
        %1260 = vrot.lane.b32.xlu0 %v1073, 66
        %v1261 = vpop.permute.xlu0 %1260
        %1262 = vrot.lane.b32.xlu0 %v1072, 66
        %v1263 = vpop.permute.xlu0 %1262
        %v1264 = vsel %vm748, %v1261, %v1263
        %v1265 = vsel %vm748, %v1259, %v1261
        %v1266 = vsel %vm748, %v1257, %v1259
        %v1267 = vsel %vm748, %v1255, %v1257
        %v1268 = vsel %vm748, %v1253, %v1255
        %v1269 = vsel %vm748, %v1251, %v1253
        %v1270 = vsel %vm748, %v1249, %v1251
        %v1271 = vsel %vm748, %v1263, %v1249
        %v1272 = vld [vmem:[%s3] sm:$0xf]
        %v1273 = vpack.c.bf16 %v1102, %v1079
        %v1274 = vpack.c.bf16 %v1101, %v1078
        %v1275 = vpack.c.bf16 %v1100, %v1077
        %v1276 = vpack.c.bf16 %v1099, %v1076
        %v1277 = vpack.c.bf16 %v1098, %v1075
        %v1278 = vpack.c.bf16 %v1097, %v1074
        %v1279 = vpack.c.bf16 %v1096, %v1073
        %v1280 = vpack.c.bf16 %v1103, %v1072
        %v1281 = vpack.c.bf16 %v1150, %v1126
        %v1282 = vpack.c.bf16 %v1149, %v1125
        %v1283 = vpack.c.bf16 %v1148, %v1124
        %v1284 = vpack.c.bf16 %v1147, %v1123
        %v1285 = vpack.c.bf16 %v1146, %v1122
        %v1286 = vpack.c.bf16 %v1145, %v1121
        %v1287 = vpack.c.bf16 %v1144, %v1120
        %v1288 = vpack.c.bf16 %v1151, %v1127
        %v1289 = vpack.c.bf16 %v1198, %v1174
        %v1290 = vpack.c.bf16 %v1197, %v1173
        %v1291 = vpack.c.bf16 %v1196, %v1172
        %v1292 = vpack.c.bf16 %v1195, %v1171
        %v1293 = vpack.c.bf16 %v1194, %v1170
        %v1294 = vpack.c.bf16 %v1193, %v1169
        %v1295 = vpack.c.bf16 %v1192, %v1168
        %v1296 = vpack.c.bf16 %v1199, %v1175
        %v1297 = vpack.c.bf16 %v1246, %v1222
        %v1298 = vpack.c.bf16 %v1245, %v1221
        %v1299 = vpack.c.bf16 %v1244, %v1220
        %v1300 = vpack.c.bf16 %v1243, %v1219
        %v1301 = vpack.c.bf16 %v1242, %v1218
        %v1302 = vpack.c.bf16 %v1241, %v1217
        %v1303 = vpack.c.bf16 %v1240, %v1216
        %v1304 = vpack.c.bf16 %v1247, %v1223
        %v1305 = vpack.c.bf16 %v1270, %v1270
        %v1306 = vpack.c.bf16 %v1269, %v1269
        %v1307 = vpack.c.bf16 %v1268, %v1268
        %v1308 = vpack.c.bf16 %v1267, %v1267
        %v1309 = vpack.c.bf16 %v1266, %v1266
        %v1310 = vpack.c.bf16 %v1265, %v1265
        %v1311 = vpack.c.bf16 %v1264, %v1264
        %v1312 = vpack.c.bf16 %v1271, %v1271
        %v1313 = vld [vmem:[%s4] sm:$0xff]
        %1315 = vset.pattern.permute.xlu0 0
        %1316 = vperm.xlu0 %1315, %v1313
        %v1317 = vpop.permute.xlu0 %1316
        %v1320 = vsel %vm804, %v1272, 0
        %v1323 = vsel %vm808, %v1305, 0
        %v1326 = vsel %vm808, %v1306, 0
        %v1329 = vsel %vm808, %v1307, 0
        %v1332 = vsel %vm808, %v1308, 0
        %v1335 = vsel %vm808, %v1309, 0
        %v1338 = vsel %vm808, %v1310, 0
        %v1341 = vsel %vm808, %v1311, 0
        %v1344 = vsel %vm808, %v1312, 0
        %1346 = vmatprep.subr.bf16.mxu0 %v1274
        %1347 = vmatpush1.bf16.msra.mxu0 %v1273
        %1348 = vmatprep.subr.bf16.mxu0 %v1282
        %1349 = vmatpush1.bf16.msra.mxu0 %v1281
        %1350 = vmatprep.subr.bf16.mxu0 %v1290
        %1351 = vmatpush1.bf16.msra.mxu0 %v1289
        %1352 = vmatprep.subr.bf16.mxu0 %v1298
        %1353 = vmatpush1.bf16.msra.mxu0 %v1297
        %1354 = vmatprep.subr.bf16.mxu0 %v1326
        %1355 = vmatpush1.bf16.msra.mxu0 %v1323
        %1356 = vmatprep.subr.bf16.mxu0 0
        %1357 = vmatpush1.bf16.msra.mxu0 0
        %1358 = vmatprep.subr.bf16.mxu0 0
        %1359 = vmatpush1.bf16.msra.mxu0 0
        %1360 = vmatprep.subr.bf16.mxu0 0
        %1361 = vmatpush1.bf16.msra.mxu0 0
        %1362 = vmatprep.subr.bf16.mxu0 0
        %1363 = vmatpush1.bf16.msra.mxu0 0
        %1364 = vmatprep.subr.bf16.mxu0 0
        %1365 = vmatpush1.bf16.msra.mxu0 0
        %1366 = vmatprep.subr.bf16.mxu0 0
        %1367 = vmatpush1.bf16.msra.mxu0 0
        %1368 = vmatprep.subr.bf16.mxu0 0
        %1369 = vmatpush1.bf16.msra.mxu0 0
        %1370 = vmatprep.subr.bf16.mxu0 0
        %1371 = vmatpush1.bf16.msra.mxu0 0
        %1372 = vmatprep.subr.bf16.mxu0 0
        %1373 = vmatpush1.bf16.msra.mxu0 0
        %1374 = vmatprep.subr.bf16.mxu0 0
        %1375 = vmatpush1.bf16.msra.mxu0 0
        %1376 = vmatprep.subr.bf16.mxu0 0
        %1377 = vmatpush1.bf16.msra.mxu0 0
        %1378 = vmatprep.mubr.bf16.mxu0 0
        %1379 = vmatmul.mubr.bf16.gmra.mrb[0].mxu0 %v1320
        %v1380 = vpop.f32.mrb[0].mxu0
        %v1381 = vadd.f32 %v1317, %v1380
        %v1382 = vpop.f32.mrb[0].mxu0
        %v1383 = vadd.f32 %v1317, %v1382
        %v1384 = vpop.f32.mrb[0].mxu0
        %v1385 = vpop.f32.mrb[0].mxu0
        %1386 = vdwg.mxu0
        %1387 = vmatprep.subr.bf16.mxu0 %v1276
        %1388 = vmatpush1.bf16.msra.mxu0 %v1275
        %1389 = vmatprep.subr.bf16.mxu0 %v1284
        %1390 = vmatpush1.bf16.msra.mxu0 %v1283
        %1391 = vmatprep.subr.bf16.mxu0 %v1292
        %1392 = vmatpush1.bf16.msra.mxu0 %v1291
        %1393 = vmatprep.subr.bf16.mxu0 %v1300
        %1394 = vmatpush1.bf16.msra.mxu0 %v1299
        %1395 = vmatprep.subr.bf16.mxu0 %v1332
        %1396 = vmatpush1.bf16.msra.mxu0 %v1329
        %1397 = vmatprep.subr.bf16.mxu0 0
        %1398 = vmatpush1.bf16.msra.mxu0 0
        %1399 = vmatprep.subr.bf16.mxu0 0
        %1400 = vmatpush1.bf16.msra.mxu0 0
        %1401 = vmatprep.subr.bf16.mxu0 0
        %1402 = vmatpush1.bf16.msra.mxu0 0
        %1403 = vmatprep.subr.bf16.mxu0 0
        %1404 = vmatpush1.bf16.msra.mxu0 0
        %1405 = vmatprep.subr.bf16.mxu0 0
        %1406 = vmatpush1.bf16.msra.mxu0 0
        %1407 = vmatprep.subr.bf16.mxu0 0
        %1408 = vmatpush1.bf16.msra.mxu0 0
        %1409 = vmatprep.subr.bf16.mxu0 0
        %1410 = vmatpush1.bf16.msra.mxu0 0
        %1411 = vmatprep.subr.bf16.mxu0 0
        %1412 = vmatpush1.bf16.msra.mxu0 0
        %1413 = vmatprep.subr.bf16.mxu0 0
        %1414 = vmatpush1.bf16.msra.mxu0 0
        %1415 = vmatprep.subr.bf16.mxu0 0
        %1416 = vmatpush1.bf16.msra.mxu0 0
        %1417 = vmatprep.subr.bf16.mxu0 0
        %1418 = vmatpush1.bf16.msra.mxu0 0
        %1419 = vmatprep.mubr.bf16.mxu0 0
        %1420 = vmatmul.mubr.bf16.gmra.mrb[0].mxu0 %v1320
        %v1421 = vpop.f32.mrb[0].mxu0
        %v1422 = vadd.f32 %v1317, %v1421
        %v1423 = vpop.f32.mrb[0].mxu0
        %v1424 = vadd.f32 %v1317, %v1423
        %v1425 = vpop.f32.mrb[0].mxu0
        %v1426 = vpop.f32.mrb[0].mxu0
        %1427 = vdwg.mxu0
        %1428 = vmatprep.subr.bf16.mxu0 %v1278
        %1429 = vmatpush1.bf16.msra.mxu0 %v1277
        %1430 = vmatprep.subr.bf16.mxu0 %v1286
        %1431 = vmatpush1.bf16.msra.mxu0 %v1285
        %1432 = vmatprep.subr.bf16.mxu0 %v1294
        %1433 = vmatpush1.bf16.msra.mxu0 %v1293
        %1434 = vmatprep.subr.bf16.mxu0 %v1302
        %1435 = vmatpush1.bf16.msra.mxu0 %v1301
        %1436 = vmatprep.subr.bf16.mxu0 %v1338
        %1437 = vmatpush1.bf16.msra.mxu0 %v1335
        %1438 = vmatprep.subr.bf16.mxu0 0
        %1439 = vmatpush1.bf16.msra.mxu0 0
        %1440 = vmatprep.subr.bf16.mxu0 0
        %1441 = vmatpush1.bf16.msra.mxu0 0
        %1442 = vmatprep.subr.bf16.mxu0 0
        %1443 = vmatpush1.bf16.msra.mxu0 0
        %1444 = vmatprep.subr.bf16.mxu0 0
        %1445 = vmatpush1.bf16.msra.mxu0 0
        %1446 = vmatprep.subr.bf16.mxu0 0
        %1447 = vmatpush1.bf16.msra.mxu0 0
        %1448 = vmatprep.subr.bf16.mxu0 0
        %1449 = vmatpush1.bf16.msra.mxu0 0
        %1450 = vmatprep.subr.bf16.mxu0 0
        %1451 = vmatpush1.bf16.msra.mxu0 0
        %1452 = vmatprep.subr.bf16.mxu0 0
        %1453 = vmatpush1.bf16.msra.mxu0 0
        %1454 = vmatprep.subr.bf16.mxu0 0
        %1455 = vmatpush1.bf16.msra.mxu0 0
        %1456 = vmatprep.subr.bf16.mxu0 0
        %1457 = vmatpush1.bf16.msra.mxu0 0
        %1458 = vmatprep.subr.bf16.mxu0 0
        %1459 = vmatpush1.bf16.msra.mxu0 0
        %1460 = vmatprep.mubr.bf16.mxu0 0
        %1461 = vmatmul.mubr.bf16.gmra.mrb[0].mxu0 %v1320
        %v1462 = vpop.f32.mrb[0].mxu0
        %v1463 = vadd.f32 %v1317, %v1462
        %v1464 = vpop.f32.mrb[0].mxu0
        %v1465 = vadd.f32 %v1317, %v1464
        %v1466 = vpop.f32.mrb[0].mxu0
        %v1467 = vpop.f32.mrb[0].mxu0
        %1468 = vdwg.mxu0
        %1469 = vmatprep.subr.bf16.mxu0 %v1280
        %1470 = vmatpush1.bf16.msra.mxu0 %v1279
        %1471 = vmatprep.subr.bf16.mxu0 %v1288
        %1472 = vmatpush1.bf16.msra.mxu0 %v1287
        %1473 = vmatprep.subr.bf16.mxu0 %v1296
        %1474 = vmatpush1.bf16.msra.mxu0 %v1295
        %1475 = vmatprep.subr.bf16.mxu0 %v1304
        %1476 = vmatpush1.bf16.msra.mxu0 %v1303
        %1477 = vmatprep.subr.bf16.mxu0 %v1344
        %1478 = vmatpush1.bf16.msra.mxu0 %v1341
        %1479 = vmatprep.subr.bf16.mxu0 0
        %1480 = vmatpush1.bf16.msra.mxu0 0
        %1481 = vmatprep.subr.bf16.mxu0 0
        %1482 = vmatpush1.bf16.msra.mxu0 0
        %1483 = vmatprep.subr.bf16.mxu0 0
        %1484 = vmatpush1.bf16.msra.mxu0 0
        %1485 = vmatprep.subr.bf16.mxu0 0
        %1486 = vmatpush1.bf16.msra.mxu0 0
        %1487 = vmatprep.subr.bf16.mxu0 0
        %1488 = vmatpush1.bf16.msra.mxu0 0
        %1489 = vmatprep.subr.bf16.mxu0 0
        %1490 = vmatpush1.bf16.msra.mxu0 0
        %1491 = vmatprep.subr.bf16.mxu0 0
        %1492 = vmatpush1.bf16.msra.mxu0 0
        %1493 = vmatprep.subr.bf16.mxu0 0
        %1494 = vmatpush1.bf16.msra.mxu0 0
        %1495 = vmatprep.subr.bf16.mxu0 0
        %1496 = vmatpush1.bf16.msra.mxu0 0
        %1497 = vmatprep.subr.bf16.mxu0 0
        %1498 = vmatpush1.bf16.msra.mxu0 0
        %1499 = vmatprep.subr.bf16.mxu0 0
        %1500 = vmatpush1.bf16.msra.mxu0 0
        %1501 = vmatprep.mubr.bf16.mxu0 0
        %1502 = vmatmul.mubr.bf16.gmra.mrb[0].mxu0 %v1320
        %v1503 = vpop.f32.mrb[0].mxu0
        %v1504 = vadd.f32 %v1317, %v1503
        %v1505 = vpop.f32.mrb[0].mxu0
        %v1506 = vadd.f32 %v1317, %v1505
        %v1507 = vpop.f32.mrb[0].mxu0
        %v1508 = vpop.f32.mrb[0].mxu0
        %1509 = vdwg.mxu0
        %v1510 = vmax.f32 %v1381, 0.0
        %v1511 = vmax.f32 %v1383, 0.0
        %v1512 = vmax.f32 %v1422, 0.0
        %v1513 = vmax.f32 %v1424, 0.0
        %v1514 = vmax.f32 %v1463, 0.0
        %v1515 = vmax.f32 %v1465, 0.0
        %v1516 = vmax.f32 %v1504, 0.0
        %v1517 = vmax.f32 %v1506, 0.0
        %1518 = vrot.lane.b32.xlu0 %v1510, 127
        %v1519 = vpop.permute.xlu0 %1518
        %1520 = vrot.lane.b32.xlu0 %v1511, 127
        %v1521 = vpop.permute.xlu0 %1520
        %1522 = vrot.lane.b32.xlu0 %v1512, 127
        %v1523 = vpop.permute.xlu0 %1522
        %1524 = vrot.lane.b32.xlu0 %v1513, 127
        %v1525 = vpop.permute.xlu0 %1524
        %1526 = vrot.lane.b32.xlu0 %v1514, 127
        %v1527 = vpop.permute.xlu0 %1526
        %1528 = vrot.lane.b32.xlu0 %v1515, 127
        %v1529 = vpop.permute.xlu0 %1528
        %1530 = vrot.lane.b32.xlu0 %v1516, 127
        %v1531 = vpop.permute.xlu0 %1530
        %1532 = vrot.lane.b32.xlu0 %v1517, 127
        %v1533 = vpop.permute.xlu0 %1532
        %v1534 = vsel %vm573, %v1531, %v1533
        %v1535 = vsel %vm573, %v1529, %v1531
        %v1536 = vsel %vm573, %v1527, %v1529
        %v1537 = vsel %vm573, %v1525, %v1527
        %v1538 = vsel %vm573, %v1523, %v1525
        %v1539 = vsel %vm573, %v1521, %v1523
        %v1540 = vsel %vm573, %v1519, %v1521
        %v1541 = vsel %vm573, %v1533, %v1519
        %v1542 = vmax.f32 %v1510, %v1540
        %v1543 = vmax.f32 %v1511, %v1539
        %v1544 = vmax.f32 %v1512, %v1538
        %v1545 = vmax.f32 %v1513, %v1537
        %v1546 = vmax.f32 %v1514, %v1536
        %v1547 = vmax.f32 %v1515, %v1535
        %v1548 = vmax.f32 %v1516, %v1534
        %v1549 = vmax.f32 %v1517, %v1541
        %1550 = vrot.lane.b32.xlu0 %v1510, 98
        %v1551 = vpop.permute.xlu0 %1550
        %1552 = vrot.lane.b32.xlu0 %v1511, 98
        %v1553 = vpop.permute.xlu0 %1552
        %1554 = vrot.lane.b32.xlu0 %v1512, 98
        %v1555 = vpop.permute.xlu0 %1554
        %1556 = vrot.lane.b32.xlu0 %v1513, 98
        %v1557 = vpop.permute.xlu0 %1556
        %1558 = vrot.lane.b32.xlu0 %v1514, 98
        %v1559 = vpop.permute.xlu0 %1558
        %1560 = vrot.lane.b32.xlu0 %v1515, 98
        %v1561 = vpop.permute.xlu0 %1560
        %1562 = vrot.lane.b32.xlu0 %v1516, 98
        %v1563 = vpop.permute.xlu0 %1562
        %1564 = vrot.lane.b32.xlu0 %v1517, 98
        %v1565 = vpop.permute.xlu0 %1564
        %v1566 = vsel %vm623, %v1563, %v1565
        %v1567 = vsel %vm623, %v1561, %v1563
        %v1568 = vsel %vm623, %v1559, %v1561
        %v1569 = vsel %vm623, %v1557, %v1559
        %v1570 = vsel %vm623, %v1555, %v1557
        %v1571 = vsel %vm623, %v1553, %v1555
        %v1572 = vsel %vm623, %v1551, %v1553
        %v1573 = vsel %vm623, %v1565, %v1551
        %1574 = vrot.lane.b32.xlu0 %v1510, 97
        %v1575 = vpop.permute.xlu0 %1574
        %1576 = vrot.lane.b32.xlu0 %v1511, 97
        %v1577 = vpop.permute.xlu0 %1576
        %1578 = vrot.lane.b32.xlu0 %v1512, 97
        %v1579 = vpop.permute.xlu0 %1578
        %1580 = vrot.lane.b32.xlu0 %v1513, 97
        %v1581 = vpop.permute.xlu0 %1580
        %1582 = vrot.lane.b32.xlu0 %v1514, 97
        %v1583 = vpop.permute.xlu0 %1582
        %1584 = vrot.lane.b32.xlu0 %v1515, 97
        %v1585 = vpop.permute.xlu0 %1584
        %1586 = vrot.lane.b32.xlu0 %v1516, 97
        %v1587 = vpop.permute.xlu0 %1586
        %1588 = vrot.lane.b32.xlu0 %v1517, 97
        %v1589 = vpop.permute.xlu0 %1588
        %v1590 = vsel %vm648, %v1587, %v1589
        %v1591 = vsel %vm648, %v1585, %v1587
        %v1592 = vsel %vm648, %v1583, %v1585
        %v1593 = vsel %vm648, %v1581, %v1583
        %v1594 = vsel %vm648, %v1579, %v1581
        %v1595 = vsel %vm648, %v1577, %v1579
        %v1596 = vsel %vm648, %v1575, %v1577
        %v1597 = vsel %vm648, %v1589, %v1575
        %v1598 = vmax.f32 %v1572, %v1596
        %v1599 = vmax.f32 %v1571, %v1595
        %v1600 = vmax.f32 %v1570, %v1594
        %v1601 = vmax.f32 %v1569, %v1593
        %v1602 = vmax.f32 %v1568, %v1592
        %v1603 = vmax.f32 %v1567, %v1591
        %v1604 = vmax.f32 %v1566, %v1590
        %v1605 = vmax.f32 %v1573, %v1597
        %v1606 = vmax.f32 %v1542, %v1598
        %v1607 = vmax.f32 %v1543, %v1599
        %v1608 = vmax.f32 %v1544, %v1600
        %v1609 = vmax.f32 %v1545, %v1601
        %v1610 = vmax.f32 %v1546, %v1602
        %v1611 = vmax.f32 %v1547, %v1603
        %v1612 = vmax.f32 %v1548, %v1604
        %v1613 = vmax.f32 %v1549, %v1605
        %v1614 = vpack.c.bf16 %v1606, %v1606
        %v1615 = vpack.c.bf16 %v1607, %v1607
        %v1616 = vpack.c.bf16 %v1608, %v1608
        %v1617 = vpack.c.bf16 %v1609, %v1609
        %v1618 = vpack.c.bf16 %v1610, %v1610
        %v1619 = vpack.c.bf16 %v1611, %v1611
        %v1620 = vpack.c.bf16 %v1612, %v1612
        %v1621 = vpack.c.bf16 %v1613, %v1613
        %v1622 = vld [vmem:[%s11] sm:$0xff]
        %v1623 = vld [vmem:[%s11 + $0x8] sm:$0xff]
        %v1624 = vld [vmem:[%s11 + $0x10] sm:$0xff]
        %v1625 = vld [vmem:[%s11 + $0x18] sm:$0xff]
        %v1626 = vld [vmem:[%s11 + $0x20] sm:$0xff]
        %v1627 = vld [vmem:[%s11 + $0x28] sm:$0xff]
        %v1628 = vld [vmem:[%s11 + $0x30] sm:$0xff]
        %v1629 = vld [vmem:[%s11 + $0x38] sm:$0xff]
        %v1630 = vld [vmem:[%s11 + $0x40] sm:$0xff]
        %v1631 = vld [vmem:[%s11 + $0x48] sm:$0xff]
        %v1632 = vld [vmem:[%s11 + $0x50] sm:$0xff]
        %v1633 = vld [vmem:[%s11 + $0x58] sm:$0xff]
        %v1634 = vld [vmem:[%s11 + $0x60] sm:$0xff]
        %v1635 = vld [vmem:[%s11 + $0x68] sm:$0xff]
        %v1636 = vld [vmem:[%s11 + $0x70] sm:$0xff]
        %v1637 = vld [vmem:[%s11 + $0x78] sm:$0xff]
        %v1638 = vld [vmem:[%s11 + $0x80] sm:$0xff]
        %v1639 = vld [vmem:[%s11 + $0x88] sm:$0xff]
        %v1640 = vld [vmem:[%s11 + $0x90] sm:$0xff]
        %v1641 = vld [vmem:[%s11 + $0x98] sm:$0xff]
        %v1642 = vld [vmem:[%s11 + $0xa0] sm:$0xff]
        %v1643 = vld [vmem:[%s11 + $0xa8] sm:$0xff]
        %v1644 = vld [vmem:[%s11 + $0xb0] sm:$0xff]
        %v1645 = vld [vmem:[%s11 + $0xb8] sm:$0xff]
        %v1646 = vld [vmem:[%s11 + $0xc0] sm:$0xff]
        %v1647 = vld [vmem:[%s11 + $0xc8] sm:$0xff]
        %v1648 = vld [vmem:[%s11 + $0xd0] sm:$0xff]
        %v1649 = vld [vmem:[%s11 + $0xd8] sm:$0xff]
        %v1650 = vld [vmem:[%s11 + $0xe0] sm:$0xff]
        %v1651 = vld [vmem:[%s11 + $0xe8] sm:$0xff]
        %v1652 = vld [vmem:[%s11 + $0xf0] sm:$0xff]
        %v1653 = vld [vmem:[%s11 + $0xf8] sm:$0xff]
        %v1654 = vld [vmem:[%s11 + $0x100] sm:$0xff]
        %v1655 = vld [vmem:[%s11 + $0x108] sm:$0xff]
        %v1656 = vld [vmem:[%s11 + $0x110] sm:$0xff]
        %v1657 = vld [vmem:[%s11 + $0x118] sm:$0xff]
        %v1658 = vld [vmem:[%s11 + $0x120] sm:$0xff]
        %v1659 = vld [vmem:[%s11 + $0x128] sm:$0xff]
        %v1660 = vld [vmem:[%s11 + $0x130] sm:$0xff]
        %v1661 = vld [vmem:[%s11 + $0x138] sm:$0xff]
        %v1662 = vld [vmem:[%s11 + $0x140] sm:$0xff]
        %v1663 = vld [vmem:[%s11 + $0x148] sm:$0xff]
        %v1664 = vld [vmem:[%s11 + $0x150] sm:$0xff]
        %v1665 = vld [vmem:[%s11 + $0x158] sm:$0xff]
        %v1666 = vld [vmem:[%s11 + $0x160] sm:$0xff]
        %v1667 = vld [vmem:[%s11 + $0x168] sm:$0xff]
        %v1668 = vld [vmem:[%s11 + $0x170] sm:$0xff]
        %v1669 = vld [vmem:[%s11 + $0x178] sm:$0xff]
        %v1670 = vld [vmem:[%s11 + $0x180] sm:$0xff]
        %v1671 = vld [vmem:[%s11 + $0x188] sm:$0xff]
        %v1672 = vld [vmem:[%s11 + $0x190] sm:$0xff]
        %v1673 = vld [vmem:[%s11 + $0x198] sm:$0xff]
        %v1674 = vld [vmem:[%s11 + $0x1a0] sm:$0xff]
        %v1675 = vld [vmem:[%s11 + $0x1a8] sm:$0xff]
        %v1676 = vld [vmem:[%s11 + $0x1b0] sm:$0xff]
        %v1677 = vld [vmem:[%s11 + $0x1b8] sm:$0xff]
        %v1678 = vld [vmem:[%s11 + $0x1c0] sm:$0xff]
        %v1679 = vld [vmem:[%s11 + $0x1c8] sm:$0xff]
        %v1680 = vld [vmem:[%s11 + $0x1d0] sm:$0xff]
        %v1681 = vld [vmem:[%s11 + $0x1d8] sm:$0xff]
        %v1682 = vld [vmem:[%s11 + $0x1e0] sm:$0xff]
        %v1683 = vld [vmem:[%s11 + $0x1e8] sm:$0xff]
        %v1684 = vld [vmem:[%s11 + $0x1f0] sm:$0xff]
        %v1685 = vld [vmem:[%s11 + $0x1f8] sm:$0xff]
        %v1686 = vld [vmem:[%s11 + $0x200] sm:$0xff]
        %v1687 = vld [vmem:[%s11 + $0x208] sm:$0xff]
        %v1688 = vld [vmem:[%s11 + $0x210] sm:$0xff]
        %v1689 = vld [vmem:[%s11 + $0x218] sm:$0xff]
        %v1690 = vld [vmem:[%s11 + $0x220] sm:$0xff]
        %v1691 = vld [vmem:[%s11 + $0x228] sm:$0xff]
        %v1692 = vld [vmem:[%s11 + $0x230] sm:$0xff]
        %v1693 = vld [vmem:[%s11 + $0x238] sm:$0xff]
        %v1694 = vld [vmem:[%s11 + $0x240] sm:$0xff]
        %v1695 = vld [vmem:[%s11 + $0x248] sm:$0xff]
        %v1696 = vld [vmem:[%s11 + $0x250] sm:$0xff]
        %v1697 = vld [vmem:[%s11 + $0x258] sm:$0xff]
        %v1698 = vld [vmem:[%s11 + $0x260] sm:$0xff]
        %v1699 = vld [vmem:[%s11 + $0x268] sm:$0xff]
        %v1700 = vld [vmem:[%s11 + $0x270] sm:$0xff]
        %v1701 = vld [vmem:[%s11 + $0x278] sm:$0xff]
        %v1702 = vld [vmem:[%s11 + $0x280] sm:$0xff]
        %v1703 = vld [vmem:[%s11 + $0x288] sm:$0xff]
        %v1704 = vld [vmem:[%s11 + $0x290] sm:$0xff]
        %v1705 = vld [vmem:[%s11 + $0x298] sm:$0xff]
        %v1706 = vld [vmem:[%s11 + $0x2a0] sm:$0xff]
        %v1707 = vld [vmem:[%s11 + $0x2a8] sm:$0xff]
        %v1708 = vld [vmem:[%s11 + $0x2b0] sm:$0xff]
        %v1709 = vld [vmem:[%s11 + $0x2b8] sm:$0xff]
        %v1710 = vld [vmem:[%s11 + $0x2c0] sm:$0xff]
        %v1711 = vld [vmem:[%s11 + $0x2c8] sm:$0xff]
        %v1712 = vld [vmem:[%s11 + $0x2d0] sm:$0xff]
        %v1713 = vld [vmem:[%s11 + $0x2d8] sm:$0xff]
        %v1714 = vld [vmem:[%s11 + $0x2e0] sm:$0xff]
        %v1715 = vld [vmem:[%s11 + $0x2e8] sm:$0xff]
        %v1716 = vld [vmem:[%s11 + $0x2f0] sm:$0xff]
        %v1717 = vld [vmem:[%s11 + $0x2f8] sm:$0xff]
        %v1718 = vld [vmem:[%s11 + $0x300] sm:$0xff]
        %v1719 = vld [vmem:[%s11 + $0x308] sm:$0xff]
        %v1720 = vld [vmem:[%s11 + $0x310] sm:$0xff]
        %v1721 = vld [vmem:[%s11 + $0x318] sm:$0xff]
        %v1722 = vld [vmem:[%s11 + $0x320] sm:$0xff]
        %v1723 = vld [vmem:[%s11 + $0x328] sm:$0xff]
        %v1724 = vld [vmem:[%s11 + $0x330] sm:$0xff]
        %v1725 = vld [vmem:[%s11 + $0x338] sm:$0xff]
        %v1726 = vld [vmem:[%s11 + $0x340] sm:$0xff]
        %v1727 = vld [vmem:[%s11 + $0x348] sm:$0xff]
        %v1728 = vld [vmem:[%s11 + $0x350] sm:$0xff]
        %v1729 = vld [vmem:[%s11 + $0x358] sm:$0xff]
        %v1730 = vld [vmem:[%s11 + $0x360] sm:$0xff]
        %v1731 = vld [vmem:[%s11 + $0x368] sm:$0xff]
        %v1732 = vld [vmem:[%s11 + $0x370] sm:$0xff]
        %v1733 = vld [vmem:[%s11 + $0x378] sm:$0xff]
        %v1734 = vld [vmem:[%s11 + $0x380] sm:$0xff]
        %v1735 = vld [vmem:[%s11 + $0x388] sm:$0xff]
        %v1736 = vld [vmem:[%s11 + $0x390] sm:$0xff]
        %v1737 = vld [vmem:[%s11 + $0x398] sm:$0xff]
        %v1738 = vld [vmem:[%s11 + $0x3a0] sm:$0xff]
        %v1739 = vld [vmem:[%s11 + $0x3a8] sm:$0xff]
        %v1740 = vld [vmem:[%s11 + $0x3b0] sm:$0xff]
        %v1741 = vld [vmem:[%s11 + $0x3b8] sm:$0xff]
        %v1742 = vld [vmem:[%s11 + $0x3c0] sm:$0xff]
        %v1743 = vld [vmem:[%s11 + $0x3c8] sm:$0xff]
        %v1744 = vld [vmem:[%s11 + $0x3d0] sm:$0xff]
        %v1745 = vld [vmem:[%s11 + $0x3d8] sm:$0xff]
        %v1746 = vld [vmem:[%s11 + $0x3e0] sm:$0xff]
        %v1747 = vld [vmem:[%s11 + $0x3e8] sm:$0xff]
        %v1748 = vld [vmem:[%s11 + $0x3f0] sm:$0xff]
        %v1749 = vld [vmem:[%s11 + $0x3f8] sm:$0xff]
        %v1878 = vunpack.c.l.b16 %v1622
        %v1879 = vunpack.c.h.b16 %v1622
        %v1880 = vunpack.c.l.b16 %v1623
        %v1881 = vunpack.c.h.b16 %v1623
        %v1882 = vunpack.c.l.b16 %v1624
        %v1883 = vunpack.c.h.b16 %v1624
        %v1884 = vunpack.c.l.b16 %v1625
        %v1885 = vunpack.c.h.b16 %v1625
        %v1886 = vunpack.c.l.b16 %v1626
        %v1887 = vunpack.c.h.b16 %v1626
        %v1888 = vunpack.c.l.b16 %v1627
        %v1889 = vunpack.c.h.b16 %v1627
        %v1890 = vunpack.c.l.b16 %v1628
        %v1891 = vunpack.c.h.b16 %v1628
        %v1892 = vunpack.c.l.b16 %v1629
        %v1893 = vunpack.c.h.b16 %v1629
        %v1894 = vunpack.c.l.b16 %v1630
        %v1895 = vunpack.c.h.b16 %v1630
        %v1896 = vunpack.c.l.b16 %v1631
        %v1897 = vunpack.c.h.b16 %v1631
        %v1898 = vunpack.c.l.b16 %v1632
        %v1899 = vunpack.c.h.b16 %v1632
        %v1900 = vunpack.c.l.b16 %v1633
        %v1901 = vunpack.c.h.b16 %v1633
        %v1902 = vunpack.c.l.b16 %v1634
        %v1903 = vunpack.c.h.b16 %v1634
        %v1904 = vunpack.c.l.b16 %v1635
        %v1905 = vunpack.c.h.b16 %v1635
        %v1906 = vunpack.c.l.b16 %v1636
        %v1907 = vunpack.c.h.b16 %v1636
        %v1908 = vunpack.c.l.b16 %v1637
        %v1909 = vunpack.c.h.b16 %v1637
        %v1910 = vunpack.c.l.b16 %v1638
        %v1911 = vunpack.c.h.b16 %v1638
        %v1912 = vunpack.c.l.b16 %v1639
        %v1913 = vunpack.c.h.b16 %v1639
        %v1914 = vunpack.c.l.b16 %v1640
        %v1915 = vunpack.c.h.b16 %v1640
        %v1916 = vunpack.c.l.b16 %v1641
        %v1917 = vunpack.c.h.b16 %v1641
        %v1918 = vunpack.c.l.b16 %v1642
        %v1919 = vunpack.c.h.b16 %v1642
        %v1920 = vunpack.c.l.b16 %v1643
        %v1921 = vunpack.c.h.b16 %v1643
        %v1922 = vunpack.c.l.b16 %v1644
        %v1923 = vunpack.c.h.b16 %v1644
        %v1924 = vunpack.c.l.b16 %v1645
        %v1925 = vunpack.c.h.b16 %v1645
        %v1926 = vunpack.c.l.b16 %v1646
        %v1927 = vunpack.c.h.b16 %v1646
        %v1928 = vunpack.c.l.b16 %v1647
        %v1929 = vunpack.c.h.b16 %v1647
        %v1930 = vunpack.c.l.b16 %v1648
        %v1931 = vunpack.c.h.b16 %v1648
        %v1932 = vunpack.c.l.b16 %v1649
        %v1933 = vunpack.c.h.b16 %v1649
        %v1934 = vunpack.c.l.b16 %v1650
        %v1935 = vunpack.c.h.b16 %v1650
        %v1936 = vunpack.c.l.b16 %v1651
        %v1937 = vunpack.c.h.b16 %v1651
        %v1938 = vunpack.c.l.b16 %v1652
        %v1939 = vunpack.c.h.b16 %v1652
        %v1940 = vunpack.c.l.b16 %v1653
        %v1941 = vunpack.c.h.b16 %v1653
        %v1942 = vunpack.c.l.b16 %v1654
        %v1943 = vunpack.c.h.b16 %v1654
        %v1944 = vunpack.c.l.b16 %v1655
        %v1945 = vunpack.c.h.b16 %v1655
        %v1946 = vunpack.c.l.b16 %v1656
        %v1947 = vunpack.c.h.b16 %v1656
        %v1948 = vunpack.c.l.b16 %v1657
        %v1949 = vunpack.c.h.b16 %v1657
        %v1950 = vunpack.c.l.b16 %v1658
        %v1951 = vunpack.c.h.b16 %v1658
        %v1952 = vunpack.c.l.b16 %v1659
        %v1953 = vunpack.c.h.b16 %v1659
        %v1954 = vunpack.c.l.b16 %v1660
        %v1955 = vunpack.c.h.b16 %v1660
        %v1956 = vunpack.c.l.b16 %v1661
        %v1957 = vunpack.c.h.b16 %v1661
        %v1958 = vunpack.c.l.b16 %v1662
        %v1959 = vunpack.c.h.b16 %v1662
        %v1960 = vunpack.c.l.b16 %v1663
        %v1961 = vunpack.c.h.b16 %v1663
        %v1962 = vunpack.c.l.b16 %v1664
        %v1963 = vunpack.c.h.b16 %v1664
        %v1964 = vunpack.c.l.b16 %v1665
        %v1965 = vunpack.c.h.b16 %v1665
        %v1966 = vunpack.c.l.b16 %v1666
        %v1967 = vunpack.c.h.b16 %v1666
        %v1968 = vunpack.c.l.b16 %v1667
        %v1969 = vunpack.c.h.b16 %v1667
        %v1970 = vunpack.c.l.b16 %v1668
        %v1971 = vunpack.c.h.b16 %v1668
        %v1972 = vunpack.c.l.b16 %v1669
        %v1973 = vunpack.c.h.b16 %v1669
        %v1974 = vunpack.c.l.b16 %v1670
        %v1975 = vunpack.c.h.b16 %v1670
        %v1976 = vunpack.c.l.b16 %v1671
        %v1977 = vunpack.c.h.b16 %v1671
        %v1978 = vunpack.c.l.b16 %v1672
        %v1979 = vunpack.c.h.b16 %v1672
        %v1980 = vunpack.c.l.b16 %v1673
        %v1981 = vunpack.c.h.b16 %v1673
        %v1982 = vunpack.c.l.b16 %v1674
        %v1983 = vunpack.c.h.b16 %v1674
        %v1984 = vunpack.c.l.b16 %v1675
        %v1985 = vunpack.c.h.b16 %v1675
        %v1986 = vunpack.c.l.b16 %v1676
        %v1987 = vunpack.c.h.b16 %v1676
        %v1988 = vunpack.c.l.b16 %v1677
        %v1989 = vunpack.c.h.b16 %v1677
        %v1990 = vunpack.c.l.b16 %v1678
        %v1991 = vunpack.c.h.b16 %v1678
        %v1992 = vunpack.c.l.b16 %v1679
        %v1993 = vunpack.c.h.b16 %v1679
        %v1994 = vunpack.c.l.b16 %v1680
        %v1995 = vunpack.c.h.b16 %v1680
        %v1996 = vunpack.c.l.b16 %v1681
        %v1997 = vunpack.c.h.b16 %v1681
        %v1998 = vunpack.c.l.b16 %v1682
        %v1999 = vunpack.c.h.b16 %v1682
        %v2000 = vunpack.c.l.b16 %v1683
        %v2001 = vunpack.c.h.b16 %v1683
        %v2002 = vunpack.c.l.b16 %v1684
        %v2003 = vunpack.c.h.b16 %v1684
        %v2004 = vunpack.c.l.b16 %v1685
        %v2005 = vunpack.c.h.b16 %v1685
        %v2006 = vunpack.c.l.b16 %v1686
        %v2007 = vunpack.c.h.b16 %v1686
        %v2008 = vunpack.c.l.b16 %v1687
        %v2009 = vunpack.c.h.b16 %v1687
        %v2010 = vunpack.c.l.b16 %v1688
        %v2011 = vunpack.c.h.b16 %v1688
        %v2012 = vunpack.c.l.b16 %v1689
        %v2013 = vunpack.c.h.b16 %v1689
        %v2014 = vunpack.c.l.b16 %v1690
        %v2015 = vunpack.c.h.b16 %v1690
        %v2016 = vunpack.c.l.b16 %v1691
        %v2017 = vunpack.c.h.b16 %v1691
        %v2018 = vunpack.c.l.b16 %v1692
        %v2019 = vunpack.c.h.b16 %v1692
        %v2020 = vunpack.c.l.b16 %v1693
        %v2021 = vunpack.c.h.b16 %v1693
        %v2022 = vunpack.c.l.b16 %v1694
        %v2023 = vunpack.c.h.b16 %v1694
        %v2024 = vunpack.c.l.b16 %v1695
        %v2025 = vunpack.c.h.b16 %v1695
        %v2026 = vunpack.c.l.b16 %v1696
        %v2027 = vunpack.c.h.b16 %v1696
        %v2028 = vunpack.c.l.b16 %v1697
        %v2029 = vunpack.c.h.b16 %v1697
        %v2030 = vunpack.c.l.b16 %v1698
        %v2031 = vunpack.c.h.b16 %v1698
        %v2032 = vunpack.c.l.b16 %v1699
        %v2033 = vunpack.c.h.b16 %v1699
        %v2034 = vunpack.c.l.b16 %v1700
        %v2035 = vunpack.c.h.b16 %v1700
        %v2036 = vunpack.c.l.b16 %v1701
        %v2037 = vunpack.c.h.b16 %v1701
        %v2038 = vunpack.c.l.b16 %v1702
        %v2039 = vunpack.c.h.b16 %v1702
        %v2040 = vunpack.c.l.b16 %v1703
        %v2041 = vunpack.c.h.b16 %v1703
        %v2042 = vunpack.c.l.b16 %v1704
        %v2043 = vunpack.c.h.b16 %v1704
        %v2044 = vunpack.c.l.b16 %v1705
        %v2045 = vunpack.c.h.b16 %v1705
        %v2046 = vunpack.c.l.b16 %v1706
        %v2047 = vunpack.c.h.b16 %v1706
        %v2048 = vunpack.c.l.b16 %v1707
        %v2049 = vunpack.c.h.b16 %v1707
        %v2050 = vunpack.c.l.b16 %v1708
        %v2051 = vunpack.c.h.b16 %v1708
        %v2052 = vunpack.c.l.b16 %v1709
        %v2053 = vunpack.c.h.b16 %v1709
        %v2054 = vunpack.c.l.b16 %v1710
        %v2055 = vunpack.c.h.b16 %v1710
        %v2056 = vunpack.c.l.b16 %v1711
        %v2057 = vunpack.c.h.b16 %v1711
        %v2058 = vunpack.c.l.b16 %v1712
        %v2059 = vunpack.c.h.b16 %v1712
        %v2060 = vunpack.c.l.b16 %v1713
        %v2061 = vunpack.c.h.b16 %v1713
        %v2062 = vunpack.c.l.b16 %v1714
        %v2063 = vunpack.c.h.b16 %v1714
        %v2064 = vunpack.c.l.b16 %v1715
        %v2065 = vunpack.c.h.b16 %v1715
        %v2066 = vunpack.c.l.b16 %v1716
        %v2067 = vunpack.c.h.b16 %v1716
        %v2068 = vunpack.c.l.b16 %v1717
        %v2069 = vunpack.c.h.b16 %v1717
        %v2070 = vunpack.c.l.b16 %v1718
        %v2071 = vunpack.c.h.b16 %v1718
        %v2072 = vunpack.c.l.b16 %v1719
        %v2073 = vunpack.c.h.b16 %v1719
        %v2074 = vunpack.c.l.b16 %v1720
        %v2075 = vunpack.c.h.b16 %v1720
        %v2076 = vunpack.c.l.b16 %v1721
        %v2077 = vunpack.c.h.b16 %v1721
        %v2078 = vunpack.c.l.b16 %v1722
        %v2079 = vunpack.c.h.b16 %v1722
        %v2080 = vunpack.c.l.b16 %v1723
        %v2081 = vunpack.c.h.b16 %v1723
        %v2082 = vunpack.c.l.b16 %v1724
        %v2083 = vunpack.c.h.b16 %v1724
        %v2084 = vunpack.c.l.b16 %v1725
        %v2085 = vunpack.c.h.b16 %v1725
        %v2086 = vunpack.c.l.b16 %v1726
        %v2087 = vunpack.c.h.b16 %v1726
        %v2088 = vunpack.c.l.b16 %v1727
        %v2089 = vunpack.c.h.b16 %v1727
        %v2090 = vunpack.c.l.b16 %v1728
        %v2091 = vunpack.c.h.b16 %v1728
        %v2092 = vunpack.c.l.b16 %v1729
        %v2093 = vunpack.c.h.b16 %v1729
        %v2094 = vunpack.c.l.b16 %v1730
        %v2095 = vunpack.c.h.b16 %v1730
        %v2096 = vunpack.c.l.b16 %v1731
        %v2097 = vunpack.c.h.b16 %v1731
        %v2098 = vunpack.c.l.b16 %v1732
        %v2099 = vunpack.c.h.b16 %v1732
        %v2100 = vunpack.c.l.b16 %v1733
        %v2101 = vunpack.c.h.b16 %v1733
        %v2102 = vunpack.c.l.b16 %v1734
        %v2103 = vunpack.c.h.b16 %v1734
        %v2104 = vunpack.c.l.b16 %v1735
        %v2105 = vunpack.c.h.b16 %v1735
        %v2106 = vunpack.c.l.b16 %v1736
        %v2107 = vunpack.c.h.b16 %v1736
        %v2108 = vunpack.c.l.b16 %v1737
        %v2109 = vunpack.c.h.b16 %v1737
        %v2110 = vunpack.c.l.b16 %v1738
        %v2111 = vunpack.c.h.b16 %v1738
        %v2112 = vunpack.c.l.b16 %v1739
        %v2113 = vunpack.c.h.b16 %v1739
        %v2114 = vunpack.c.l.b16 %v1740
        %v2115 = vunpack.c.h.b16 %v1740
        %v2116 = vunpack.c.l.b16 %v1741
        %v2117 = vunpack.c.h.b16 %v1741
        %v2118 = vunpack.c.l.b16 %v1742
        %v2119 = vunpack.c.h.b16 %v1742
        %v2120 = vunpack.c.l.b16 %v1743
        %v2121 = vunpack.c.h.b16 %v1743
        %v2122 = vunpack.c.l.b16 %v1744
        %v2123 = vunpack.c.h.b16 %v1744
        %v2124 = vunpack.c.l.b16 %v1745
        %v2125 = vunpack.c.h.b16 %v1745
        %v2126 = vunpack.c.l.b16 %v1746
        %v2127 = vunpack.c.h.b16 %v1746
        %v2128 = vunpack.c.l.b16 %v1747
        %v2129 = vunpack.c.h.b16 %v1747
        %v2130 = vunpack.c.l.b16 %v1748
        %v2131 = vunpack.c.h.b16 %v1748
        %v2132 = vunpack.c.l.b16 %v1749
        %v2133 = vunpack.c.h.b16 %v1749
        %v2134 = vpack.c.b16 %v1880, %v1878
        %v2135 = vpack.c.b16 %v1881, %v1879
        %v2136 = vpack.c.b16 %v1884, %v1882
        %v2137 = vpack.c.b16 %v1885, %v1883
        %v2138 = vpack.c.b16 %v1888, %v1886
        %v2139 = vpack.c.b16 %v1889, %v1887
        %v2140 = vpack.c.b16 %v1892, %v1890
        %v2141 = vpack.c.b16 %v1893, %v1891
        %v2142 = vpack.c.b16 %v1896, %v1894
        %v2143 = vpack.c.b16 %v1897, %v1895
        %v2144 = vpack.c.b16 %v1900, %v1898
        %v2145 = vpack.c.b16 %v1901, %v1899
        %v2146 = vpack.c.b16 %v1904, %v1902
        %v2147 = vpack.c.b16 %v1905, %v1903
        %v2148 = vpack.c.b16 %v1908, %v1906
        %v2149 = vpack.c.b16 %v1909, %v1907
        %v2150 = vpack.c.b16 %v1912, %v1910
        %v2151 = vpack.c.b16 %v1913, %v1911
        %v2152 = vpack.c.b16 %v1916, %v1914
        %v2153 = vpack.c.b16 %v1917, %v1915
        %v2154 = vpack.c.b16 %v1920, %v1918
        %v2155 = vpack.c.b16 %v1921, %v1919
        %v2156 = vpack.c.b16 %v1924, %v1922
        %v2157 = vpack.c.b16 %v1925, %v1923
        %v2158 = vpack.c.b16 %v1928, %v1926
        %v2159 = vpack.c.b16 %v1929, %v1927
        %v2160 = vpack.c.b16 %v1932, %v1930
        %v2161 = vpack.c.b16 %v1933, %v1931
        %v2162 = vpack.c.b16 %v1936, %v1934
        %v2163 = vpack.c.b16 %v1937, %v1935
        %v2164 = vpack.c.b16 %v1940, %v1938
        %v2165 = vpack.c.b16 %v1941, %v1939
        %v2166 = vpack.c.b16 %v1944, %v1942
        %v2167 = vpack.c.b16 %v1945, %v1943
        %v2168 = vpack.c.b16 %v1948, %v1946
        %v2169 = vpack.c.b16 %v1949, %v1947
        %v2170 = vpack.c.b16 %v1952, %v1950
        %v2171 = vpack.c.b16 %v1953, %v1951
        %v2172 = vpack.c.b16 %v1956, %v1954
        %v2173 = vpack.c.b16 %v1957, %v1955
        %v2174 = vpack.c.b16 %v1960, %v1958
        %v2175 = vpack.c.b16 %v1961, %v1959
        %v2176 = vpack.c.b16 %v1964, %v1962
        %v2177 = vpack.c.b16 %v1965, %v1963
        %v2178 = vpack.c.b16 %v1968, %v1966
        %v2179 = vpack.c.b16 %v1969, %v1967
        %v2180 = vpack.c.b16 %v1972, %v1970
        %v2181 = vpack.c.b16 %v1973, %v1971
        %v2182 = vpack.c.b16 %v1976, %v1974
        %v2183 = vpack.c.b16 %v1977, %v1975
        %v2184 = vpack.c.b16 %v1980, %v1978
        %v2185 = vpack.c.b16 %v1981, %v1979
        %v2186 = vpack.c.b16 %v1984, %v1982
        %v2187 = vpack.c.b16 %v1985, %v1983
        %v2188 = vpack.c.b16 %v1988, %v1986
        %v2189 = vpack.c.b16 %v1989, %v1987
        %v2190 = vpack.c.b16 %v1992, %v1990
        %v2191 = vpack.c.b16 %v1993, %v1991
        %v2192 = vpack.c.b16 %v1996, %v1994
        %v2193 = vpack.c.b16 %v1997, %v1995
        %v2194 = vpack.c.b16 %v2000, %v1998
        %v2195 = vpack.c.b16 %v2001, %v1999
        %v2196 = vpack.c.b16 %v2004, %v2002
        %v2197 = vpack.c.b16 %v2005, %v2003
        %v2198 = vpack.c.b16 %v2008, %v2006
        %v2199 = vpack.c.b16 %v2009, %v2007
        %v2200 = vpack.c.b16 %v2012, %v2010
        %v2201 = vpack.c.b16 %v2013, %v2011
        %v2202 = vpack.c.b16 %v2016, %v2014
        %v2203 = vpack.c.b16 %v2017, %v2015
        %v2204 = vpack.c.b16 %v2020, %v2018
        %v2205 = vpack.c.b16 %v2021, %v2019
        %v2206 = vpack.c.b16 %v2024, %v2022
        %v2207 = vpack.c.b16 %v2025, %v2023
        %v2208 = vpack.c.b16 %v2028, %v2026
        %v2209 = vpack.c.b16 %v2029, %v2027
        %v2210 = vpack.c.b16 %v2032, %v2030
        %v2211 = vpack.c.b16 %v2033, %v2031
        %v2212 = vpack.c.b16 %v2036, %v2034
        %v2213 = vpack.c.b16 %v2037, %v2035
        %v2214 = vpack.c.b16 %v2040, %v2038
        %v2215 = vpack.c.b16 %v2041, %v2039
        %v2216 = vpack.c.b16 %v2044, %v2042
        %v2217 = vpack.c.b16 %v2045, %v2043
        %v2218 = vpack.c.b16 %v2048, %v2046
        %v2219 = vpack.c.b16 %v2049, %v2047
        %v2220 = vpack.c.b16 %v2052, %v2050
        %v2221 = vpack.c.b16 %v2053, %v2051
        %v2222 = vpack.c.b16 %v2056, %v2054
        %v2223 = vpack.c.b16 %v2057, %v2055
        %v2224 = vpack.c.b16 %v2060, %v2058
        %v2225 = vpack.c.b16 %v2061, %v2059
        %v2226 = vpack.c.b16 %v2064, %v2062
        %v2227 = vpack.c.b16 %v2065, %v2063
        %v2228 = vpack.c.b16 %v2068, %v2066
        %v2229 = vpack.c.b16 %v2069, %v2067
        %v2230 = vpack.c.b16 %v2072, %v2070
        %v2231 = vpack.c.b16 %v2073, %v2071
        %v2232 = vpack.c.b16 %v2076, %v2074
        %v2233 = vpack.c.b16 %v2077, %v2075
        %v2234 = vpack.c.b16 %v2080, %v2078
        %v2235 = vpack.c.b16 %v2081, %v2079
        %v2236 = vpack.c.b16 %v2084, %v2082
        %v2237 = vpack.c.b16 %v2085, %v2083
        %v2238 = vpack.c.b16 %v2088, %v2086
        %v2239 = vpack.c.b16 %v2089, %v2087
        %v2240 = vpack.c.b16 %v2092, %v2090
        %v2241 = vpack.c.b16 %v2093, %v2091
        %v2242 = vpack.c.b16 %v2096, %v2094
        %v2243 = vpack.c.b16 %v2097, %v2095
        %v2244 = vpack.c.b16 %v2100, %v2098
        %v2245 = vpack.c.b16 %v2101, %v2099
        %v2246 = vpack.c.b16 %v2104, %v2102
        %v2247 = vpack.c.b16 %v2105, %v2103
        %v2248 = vpack.c.b16 %v2108, %v2106
        %v2249 = vpack.c.b16 %v2109, %v2107
        %v2250 = vpack.c.b16 %v2112, %v2110
        %v2251 = vpack.c.b16 %v2113, %v2111
        %v2252 = vpack.c.b16 %v2116, %v2114
        %v2253 = vpack.c.b16 %v2117, %v2115
        %v2254 = vpack.c.b16 %v2120, %v2118
        %v2255 = vpack.c.b16 %v2121, %v2119
        %v2256 = vpack.c.b16 %v2124, %v2122
        %v2257 = vpack.c.b16 %v2125, %v2123
        %v2258 = vpack.c.b16 %v2128, %v2126
        %v2259 = vpack.c.b16 %v2129, %v2127
        %v2260 = vpack.c.b16 %v2132, %v2130
        %v2261 = vpack.c.b16 %v2133, %v2131
        %2390 = vmatprep.subr.bf16.mxu0 %v2135
        %2391 = vmatpush1.bf16.msra.mxu0 %v2134
        %2392 = vmatprep.subr.bf16.mxu0 %v2137
        %2393 = vmatpush1.bf16.msra.mxu0 %v2136
        %2394 = vmatprep.subr.bf16.mxu0 %v2139
        %2395 = vmatpush1.bf16.msra.mxu0 %v2138
        %2396 = vmatprep.subr.bf16.mxu0 %v2141
        %2397 = vmatpush1.bf16.msra.mxu0 %v2140
        %2398 = vmatprep.subr.bf16.mxu0 %v2143
        %2399 = vmatpush1.bf16.msra.mxu0 %v2142
        %2400 = vmatprep.subr.bf16.mxu0 %v2145
        %2401 = vmatpush1.bf16.msra.mxu0 %v2144
        %2402 = vmatprep.subr.bf16.mxu0 %v2147
        %2403 = vmatpush1.bf16.msra.mxu0 %v2146
        %2404 = vmatprep.subr.bf16.mxu0 %v2149
        %2405 = vmatpush1.bf16.msra.mxu0 %v2148
        %2406 = vmatprep.subr.bf16.mxu0 %v2151
        %2407 = vmatpush1.bf16.msra.mxu0 %v2150
        %2408 = vmatprep.subr.bf16.mxu0 %v2153
        %2409 = vmatpush1.bf16.msra.mxu0 %v2152
        %2410 = vmatprep.subr.bf16.mxu0 %v2155
        %2411 = vmatpush1.bf16.msra.mxu0 %v2154
        %2412 = vmatprep.subr.bf16.mxu0 %v2157
        %2413 = vmatpush1.bf16.msra.mxu0 %v2156
        %2414 = vmatprep.subr.bf16.mxu0 %v2159
        %2415 = vmatpush1.bf16.msra.mxu0 %v2158
        %2416 = vmatprep.subr.bf16.mxu0 %v2161
        %2417 = vmatpush1.bf16.msra.mxu0 %v2160
        %2418 = vmatprep.subr.bf16.mxu0 %v2163
        %2419 = vmatpush1.bf16.msra.mxu0 %v2162
        %2420 = vmatprep.subr.bf16.mxu0 %v2165
        %2421 = vmatpush1.bf16.msra.mxu0 %v2164
        %2422 = vmatprep.mubr.bf16.mxu0 %v1615
        %2423 = vmatmul.mubr.bf16.gmra.mrb[0].mxu0 %v1614
        %v2424 = vpop.f32.mrb[0].mxu0
        %v2425 = vadd.f32 0.0, %v2424
        %v2426 = vpop.f32.mrb[0].mxu0
        %v2427 = vadd.f32 0.0, %v2426
        %v2428 = vpop.f32.mrb[0].mxu0
        %v2429 = vpop.f32.mrb[0].mxu0
        %2430 = vdwg.mxu0
        %2431 = vmatprep.subr.bf16.mxu0 %v2167
        %2432 = vmatpush1.bf16.msra.mxu0 %v2166
        %2433 = vmatprep.subr.bf16.mxu0 %v2169
        %2434 = vmatpush1.bf16.msra.mxu0 %v2168
        %2435 = vmatprep.subr.bf16.mxu0 %v2171
        %2436 = vmatpush1.bf16.msra.mxu0 %v2170
        %2437 = vmatprep.subr.bf16.mxu0 %v2173
        %2438 = vmatpush1.bf16.msra.mxu0 %v2172
        %2439 = vmatprep.subr.bf16.mxu0 %v2175
        %2440 = vmatpush1.bf16.msra.mxu0 %v2174
        %2441 = vmatprep.subr.bf16.mxu0 %v2177
        %2442 = vmatpush1.bf16.msra.mxu0 %v2176
        %2443 = vmatprep.subr.bf16.mxu0 %v2179
        %2444 = vmatpush1.bf16.msra.mxu0 %v2178
        %2445 = vmatprep.subr.bf16.mxu0 %v2181
        %2446 = vmatpush1.bf16.msra.mxu0 %v2180
        %2447 = vmatprep.subr.bf16.mxu0 %v2183
        %2448 = vmatpush1.bf16.msra.mxu0 %v2182
        %2449 = vmatprep.subr.bf16.mxu0 %v2185
        %2450 = vmatpush1.bf16.msra.mxu0 %v2184
        %2451 = vmatprep.subr.bf16.mxu0 %v2187
        %2452 = vmatpush1.bf16.msra.mxu0 %v2186
        %2453 = vmatprep.subr.bf16.mxu0 %v2189
        %2454 = vmatpush1.bf16.msra.mxu0 %v2188
        %2455 = vmatprep.subr.bf16.mxu0 %v2191
        %2456 = vmatpush1.bf16.msra.mxu0 %v2190
        %2457 = vmatprep.subr.bf16.mxu0 %v2193
        %2458 = vmatpush1.bf16.msra.mxu0 %v2192
        %2459 = vmatprep.subr.bf16.mxu0 %v2195
        %2460 = vmatpush1.bf16.msra.mxu0 %v2194
        %2461 = vmatprep.subr.bf16.mxu0 %v2197
        %2462 = vmatpush1.bf16.msra.mxu0 %v2196
        %2463 = vmatprep.mubr.bf16.mxu0 %v1617
        %2464 = vmatmul.mubr.bf16.gmra.mrb[0].mxu0 %v1616
        %v2465 = vpop.f32.mrb[0].mxu0
        %v2466 = vadd.f32 %v2425, %v2465
        %v2467 = vpop.f32.mrb[0].mxu0
        %v2468 = vadd.f32 %v2427, %v2467
        %v2469 = vpop.f32.mrb[0].mxu0
        %v2470 = vpop.f32.mrb[0].mxu0
        %2471 = vdwg.mxu0
        %2472 = vmatprep.subr.bf16.mxu0 %v2199
        %2473 = vmatpush1.bf16.msra.mxu0 %v2198
        %2474 = vmatprep.subr.bf16.mxu0 %v2201
        %2475 = vmatpush1.bf16.msra.mxu0 %v2200
        %2476 = vmatprep.subr.bf16.mxu0 %v2203
        %2477 = vmatpush1.bf16.msra.mxu0 %v2202
        %2478 = vmatprep.subr.bf16.mxu0 %v2205
        %2479 = vmatpush1.bf16.msra.mxu0 %v2204
        %2480 = vmatprep.subr.bf16.mxu0 %v2207
        %2481 = vmatpush1.bf16.msra.mxu0 %v2206
        %2482 = vmatprep.subr.bf16.mxu0 %v2209
        %2483 = vmatpush1.bf16.msra.mxu0 %v2208
        %2484 = vmatprep.subr.bf16.mxu0 %v2211
        %2485 = vmatpush1.bf16.msra.mxu0 %v2210
        %2486 = vmatprep.subr.bf16.mxu0 %v2213
        %2487 = vmatpush1.bf16.msra.mxu0 %v2212
        %2488 = vmatprep.subr.bf16.mxu0 %v2215
        %2489 = vmatpush1.bf16.msra.mxu0 %v2214
        %2490 = vmatprep.subr.bf16.mxu0 %v2217
        %2491 = vmatpush1.bf16.msra.mxu0 %v2216
        %2492 = vmatprep.subr.bf16.mxu0 %v2219
        %2493 = vmatpush1.bf16.msra.mxu0 %v2218
        %2494 = vmatprep.subr.bf16.mxu0 %v2221
        %2495 = vmatpush1.bf16.msra.mxu0 %v2220
        %2496 = vmatprep.subr.bf16.mxu0 %v2223
        %2497 = vmatpush1.bf16.msra.mxu0 %v2222
        %2498 = vmatprep.subr.bf16.mxu0 %v2225
        %2499 = vmatpush1.bf16.msra.mxu0 %v2224
        %2500 = vmatprep.subr.bf16.mxu0 %v2227
        %2501 = vmatpush1.bf16.msra.mxu0 %v2226
        %2502 = vmatprep.subr.bf16.mxu0 %v2229
        %2503 = vmatpush1.bf16.msra.mxu0 %v2228
        %2504 = vmatprep.mubr.bf16.mxu0 %v1619
        %2505 = vmatmul.mubr.bf16.gmra.mrb[0].mxu0 %v1618
        %v2506 = vpop.f32.mrb[0].mxu0
        %v2507 = vadd.f32 %v2466, %v2506
        %v2508 = vpop.f32.mrb[0].mxu0
        %v2509 = vadd.f32 %v2468, %v2508
        %v2510 = vpop.f32.mrb[0].mxu0
        %v2511 = vpop.f32.mrb[0].mxu0
        %2512 = vdwg.mxu0
        %2513 = vmatprep.subr.bf16.mxu0 %v2231
        %2514 = vmatpush1.bf16.msra.mxu0 %v2230
        %2515 = vmatprep.subr.bf16.mxu0 %v2233
        %2516 = vmatpush1.bf16.msra.mxu0 %v2232
        %2517 = vmatprep.subr.bf16.mxu0 %v2235
        %2518 = vmatpush1.bf16.msra.mxu0 %v2234
        %2519 = vmatprep.subr.bf16.mxu0 %v2237
        %2520 = vmatpush1.bf16.msra.mxu0 %v2236
        %2521 = vmatprep.subr.bf16.mxu0 %v2239
        %2522 = vmatpush1.bf16.msra.mxu0 %v2238
        %2523 = vmatprep.subr.bf16.mxu0 %v2241
        %2524 = vmatpush1.bf16.msra.mxu0 %v2240
        %2525 = vmatprep.subr.bf16.mxu0 %v2243
        %2526 = vmatpush1.bf16.msra.mxu0 %v2242
        %2527 = vmatprep.subr.bf16.mxu0 %v2245
        %2528 = vmatpush1.bf16.msra.mxu0 %v2244
        %2529 = vmatprep.subr.bf16.mxu0 %v2247
        %2530 = vmatpush1.bf16.msra.mxu0 %v2246
        %2531 = vmatprep.subr.bf16.mxu0 %v2249
        %2532 = vmatpush1.bf16.msra.mxu0 %v2248
        %2533 = vmatprep.subr.bf16.mxu0 %v2251
        %2534 = vmatpush1.bf16.msra.mxu0 %v2250
        %2535 = vmatprep.subr.bf16.mxu0 %v2253
        %2536 = vmatpush1.bf16.msra.mxu0 %v2252
        %2537 = vmatprep.subr.bf16.mxu0 %v2255
        %2538 = vmatpush1.bf16.msra.mxu0 %v2254
        %2539 = vmatprep.subr.bf16.mxu0 %v2257
        %2540 = vmatpush1.bf16.msra.mxu0 %v2256
        %2541 = vmatprep.subr.bf16.mxu0 %v2259
        %2542 = vmatpush1.bf16.msra.mxu0 %v2258
        %2543 = vmatprep.subr.bf16.mxu0 %v2261
        %2544 = vmatpush1.bf16.msra.mxu0 %v2260
        %2545 = vmatprep.mubr.bf16.mxu0 %v1621
        %2546 = vmatmul.mubr.bf16.gmra.mrb[0].mxu0 %v1620
        %v2547 = vpop.f32.mrb[0].mxu0
        %v2548 = vadd.f32 %v2507, %v2547
        %v2549 = vpop.f32.mrb[0].mxu0
        %v2550 = vadd.f32 %v2509, %v2549
        %v2551 = vpop.f32.mrb[0].mxu0
        %v2552 = vpop.f32.mrb[0].mxu0
        %2553 = vdwg.mxu0
        %2554 = vrot.lane.b32.xlu0 %v2548, 127
        %v2555 = vpop.permute.xlu0 %2554
        %2556 = vrot.lane.b32.xlu0 %v2550, 127
        %v2557 = vpop.permute.xlu0 %2556
        %v2558 = vsel %vm573, %v2555, %v2557
        %v2559 = vsel %vm573, %v2557, %v2555
        %2560 = vrot.lane.b32.xlu0 %v2548, 126
        %v2561 = vpop.permute.xlu0 %2560
        %2562 = vrot.lane.b32.xlu0 %v2550, 126
        %v2563 = vpop.permute.xlu0 %2562
        %v2564 = vsel %vm598, %v2561, %v2563
        %v2565 = vsel %vm598, %v2563, %v2561
        %2566 = vrot.lane.b32.xlu0 %v2548, 112
        %v2567 = vpop.permute.xlu0 %2566
        %2568 = vrot.lane.b32.xlu0 %v2550, 112
        %v2569 = vpop.permute.xlu0 %2568
        %vm2570 = vcmp.lt.s32.totalorder %v572, 112
        %v2571 = vsel %vm2570, %v2567, %v2569
        %v2572 = vsel %vm2570, %v2569, %v2567
        %2573 = vrot.lane.b32.xlu0 %v2548, 111
        %v2574 = vpop.permute.xlu0 %2573
        %2575 = vrot.lane.b32.xlu0 %v2550, 111
        %v2576 = vpop.permute.xlu0 %2575
        %vm2577 = vcmp.lt.s32.totalorder %v572, 111
        %v2578 = vsel %vm2577, %v2574, %v2576
        %v2579 = vsel %vm2577, %v2576, %v2574
        %2580 = vrot.lane.b32.xlu0 %v2548, 110
        %v2581 = vpop.permute.xlu0 %2580
        %2582 = vrot.lane.b32.xlu0 %v2550, 110
        %v2583 = vpop.permute.xlu0 %2582
        %vm2584 = vcmp.lt.s32.totalorder %v572, 110
        %v2585 = vsel %vm2584, %v2581, %v2583
        %v2586 = vsel %vm2584, %v2583, %v2581
        %2587 = vrot.lane.b32.xlu0 %v2548, 96
        %v2588 = vpop.permute.xlu0 %2587
        %2589 = vrot.lane.b32.xlu0 %v2550, 96
        %v2590 = vpop.permute.xlu0 %2589
        %v2591 = vsel %vm673, %v2588, %v2590
        %v2592 = vsel %vm673, %v2590, %v2588
        %2593 = vrot.lane.b32.xlu0 %v2548, 95
        %v2594 = vpop.permute.xlu0 %2593
        %2595 = vrot.lane.b32.xlu0 %v2550, 95
        %v2596 = vpop.permute.xlu0 %2595
        %vm2597 = vcmp.lt.s32.totalorder %v572, 95
        %v2598 = vsel %vm2597, %v2594, %v2596
        %v2599 = vsel %vm2597, %v2596, %v2594
        %2600 = vrot.lane.b32.xlu0 %v2548, 94
        %v2601 = vpop.permute.xlu0 %2600
        %2602 = vrot.lane.b32.xlu0 %v2550, 94
        %v2603 = vpop.permute.xlu0 %2602
        %vm2604 = vcmp.lt.s32.totalorder %v572, 94
        %v2605 = vsel %vm2604, %v2601, %v2603
        %v2606 = vsel %vm2604, %v2603, %v2601
        %v2607 = vld [vmem:[%s5] sm:$0xf]
        %v2608 = vpack.c.bf16 %v2558, %v2548
        %v2609 = vpack.c.bf16 %v2559, %v2550
        %v2610 = vpack.c.bf16 %v2571, %v2564
        %v2611 = vpack.c.bf16 %v2572, %v2565
        %v2612 = vpack.c.bf16 %v2585, %v2578
        %v2613 = vpack.c.bf16 %v2586, %v2579
        %v2614 = vpack.c.bf16 %v2598, %v2591
        %v2615 = vpack.c.bf16 %v2599, %v2592
        %v2616 = vpack.c.bf16 %v2605, %v2605
        %v2617 = vpack.c.bf16 %v2606, %v2606
        %v2618 = vld [vmem:[%s6] sm:$0xff]
        %2620 = vset.pattern.permute.xlu0 0
        %2621 = vperm.xlu0 %2620, %v2618
        %v2622 = vpop.permute.xlu0 %2621
        %v2625 = vsel %vm804, %v2607, 0
        %v2628 = vsel %vm808, %v2616, 0
        %v2631 = vsel %vm808, %v2617, 0
        %2633 = vmatprep.subr.bf16.mxu0 %v2609
        %2634 = vmatpush1.bf16.msra.mxu0 %v2608
        %2635 = vmatprep.subr.bf16.mxu0 %v2611
        %2636 = vmatpush1.bf16.msra.mxu0 %v2610
        %2637 = vmatprep.subr.bf16.mxu0 %v2613
        %2638 = vmatpush1.bf16.msra.mxu0 %v2612
        %2639 = vmatprep.subr.bf16.mxu0 %v2615
        %2640 = vmatpush1.bf16.msra.mxu0 %v2614
        %2641 = vmatprep.subr.bf16.mxu0 %v2631
        %2642 = vmatpush1.bf16.msra.mxu0 %v2628
        %2643 = vmatprep.subr.bf16.mxu0 0
        %2644 = vmatpush1.bf16.msra.mxu0 0
        %2645 = vmatprep.subr.bf16.mxu0 0
        %2646 = vmatpush1.bf16.msra.mxu0 0
        %2647 = vmatprep.subr.bf16.mxu0 0
        %2648 = vmatpush1.bf16.msra.mxu0 0
        %2649 = vmatprep.subr.bf16.mxu0 0
        %2650 = vmatpush1.bf16.msra.mxu0 0
        %2651 = vmatprep.subr.bf16.mxu0 0
        %2652 = vmatpush1.bf16.msra.mxu0 0
        %2653 = vmatprep.subr.bf16.mxu0 0
        %2654 = vmatpush1.bf16.msra.mxu0 0
        %2655 = vmatprep.subr.bf16.mxu0 0
        %2656 = vmatpush1.bf16.msra.mxu0 0
        %2657 = vmatprep.subr.bf16.mxu0 0
        %2658 = vmatpush1.bf16.msra.mxu0 0
        %2659 = vmatprep.subr.bf16.mxu0 0
        %2660 = vmatpush1.bf16.msra.mxu0 0
        %2661 = vmatprep.subr.bf16.mxu0 0
        %2662 = vmatpush1.bf16.msra.mxu0 0
        %2663 = vmatprep.subr.bf16.mxu0 0
        %2664 = vmatpush1.bf16.msra.mxu0 0
        %2665 = vmatprep.mubr.bf16.mxu0 0
        %2666 = vmatmul.mubr.bf16.gmra.mrb[0].mxu0 %v2625
        %v2667 = vpop.f32.mrb[0].mxu0
        %v2668 = vadd.f32 %v2622, %v2667
        %v2669 = vpop.f32.mrb[0].mxu0
        %v2670 = vadd.f32 %v2622, %v2669
        %v2671 = vpop.f32.mrb[0].mxu0
        %v2672 = vpop.f32.mrb[0].mxu0
        %2673 = vdwg.mxu0
        %v2674 = vmax.f32 %v2668, 0.0
        %v2675 = vmax.f32 %v2670, 0.0
        %2676 = vrot.lane.b32.xlu0 %v2674, 127
        %v2677 = vpop.permute.xlu0 %2676
        %2678 = vrot.lane.b32.xlu0 %v2675, 127
        %v2679 = vpop.permute.xlu0 %2678
        %v2680 = vsel %vm573, %v2677, %v2679
        %v2681 = vsel %vm573, %v2679, %v2677
        %v2682 = vmax.f32 %v2674, %v2680
        %v2683 = vmax.f32 %v2675, %v2681
        %2684 = vrot.lane.b32.xlu0 %v2674, 112
        %v2685 = vpop.permute.xlu0 %2684
        %2686 = vrot.lane.b32.xlu0 %v2675, 112
        %v2687 = vpop.permute.xlu0 %2686
        %v2688 = vsel %vm2570, %v2685, %v2687
        %v2689 = vsel %vm2570, %v2687, %v2685
        %2690 = vrot.lane.b32.xlu0 %v2674, 111
        %v2691 = vpop.permute.xlu0 %2690
        %2692 = vrot.lane.b32.xlu0 %v2675, 111
        %v2693 = vpop.permute.xlu0 %2692
        %v2694 = vsel %vm2577, %v2691, %v2693
        %v2695 = vsel %vm2577, %v2693, %v2691
        %v2696 = vmax.f32 %v2688, %v2694
        %v2697 = vmax.f32 %v2689, %v2695
        %v2698 = vmax.f32 %v2682, %v2696
        %v2699 = vmax.f32 %v2683, %v2697
        %v2700 = vpack.c.bf16 %v2698, %v2698
        %v2701 = vpack.c.bf16 %v2699, %v2699
        %v2702 = vld [vmem:[%s12] sm:$0xf]
        %v2703 = vld [vmem:[%s12 + $0x4] sm:$0xf]
        %v2704 = vld [vmem:[%s12 + $0x8] sm:$0xf]
        %v2705 = vld [vmem:[%s12 + $0xc] sm:$0xf]
        %v2706 = vld [vmem:[%s12 + $0x10] sm:$0xf]
        %v2707 = vld [vmem:[%s12 + $0x14] sm:$0xf]
        %v2708 = vld [vmem:[%s12 + $0x18] sm:$0xf]
        %v2709 = vld [vmem:[%s12 + $0x1c] sm:$0xf]
        %v2710 = vld [vmem:[%s12 + $0x20] sm:$0xf]
        %v2711 = vld [vmem:[%s12 + $0x24] sm:$0xf]
        %v2712 = vld [vmem:[%s12 + $0x28] sm:$0xf]
        %v2713 = vld [vmem:[%s12 + $0x2c] sm:$0xf]
        %v2714 = vld [vmem:[%s12 + $0x30] sm:$0xf]
        %v2715 = vld [vmem:[%s12 + $0x34] sm:$0xf]
        %v2716 = vld [vmem:[%s12 + $0x38] sm:$0xf]
        %v2717 = vld [vmem:[%s12 + $0x3c] sm:$0xf]
        %v2718 = vld [vmem:[%s12 + $0x40] sm:$0xf]
        %v2719 = vld [vmem:[%s12 + $0x44] sm:$0xf]
        %v2720 = vld [vmem:[%s12 + $0x48] sm:$0xf]
        %v2721 = vld [vmem:[%s12 + $0x4c] sm:$0xf]
        %v2722 = vld [vmem:[%s12 + $0x50] sm:$0xf]
        %v2723 = vld [vmem:[%s12 + $0x54] sm:$0xf]
        %v2724 = vld [vmem:[%s12 + $0x58] sm:$0xf]
        %v2725 = vld [vmem:[%s12 + $0x5c] sm:$0xf]
        %v2726 = vld [vmem:[%s12 + $0x60] sm:$0xf]
        %v2727 = vld [vmem:[%s12 + $0x64] sm:$0xf]
        %v2728 = vld [vmem:[%s12 + $0x68] sm:$0xf]
        %v2729 = vld [vmem:[%s12 + $0x6c] sm:$0xf]
        %v2730 = vld [vmem:[%s12 + $0x70] sm:$0xf]
        %v2731 = vld [vmem:[%s12 + $0x74] sm:$0xf]
        %v2732 = vld [vmem:[%s12 + $0x78] sm:$0xf]
        %v2733 = vld [vmem:[%s12 + $0x7c] sm:$0xf]
        %v2766 = vunpack.c.l.b16 %v2702
        %v2767 = vunpack.c.l.b16 %v2703
        %v2768 = vunpack.c.l.b16 %v2704
        %v2769 = vunpack.c.l.b16 %v2705
        %v2770 = vunpack.c.l.b16 %v2706
        %v2771 = vunpack.c.l.b16 %v2707
        %v2772 = vunpack.c.l.b16 %v2708
        %v2773 = vunpack.c.l.b16 %v2709
        %v2774 = vunpack.c.l.b16 %v2710
        %v2775 = vunpack.c.l.b16 %v2711
        %v2776 = vunpack.c.l.b16 %v2712
        %v2777 = vunpack.c.l.b16 %v2713
        %v2778 = vunpack.c.l.b16 %v2714
        %v2779 = vunpack.c.l.b16 %v2715
        %v2780 = vunpack.c.l.b16 %v2716
        %v2781 = vunpack.c.l.b16 %v2717
        %v2782 = vunpack.c.l.b16 %v2718
        %v2783 = vunpack.c.l.b16 %v2719
        %v2784 = vunpack.c.l.b16 %v2720
        %v2785 = vunpack.c.l.b16 %v2721
        %v2786 = vunpack.c.l.b16 %v2722
        %v2787 = vunpack.c.l.b16 %v2723
        %v2788 = vunpack.c.l.b16 %v2724
        %v2789 = vunpack.c.l.b16 %v2725
        %v2790 = vunpack.c.l.b16 %v2726
        %v2791 = vunpack.c.l.b16 %v2727
        %v2792 = vunpack.c.l.b16 %v2728
        %v2793 = vunpack.c.l.b16 %v2729
        %v2794 = vunpack.c.l.b16 %v2730
        %v2795 = vunpack.c.l.b16 %v2731
        %v2796 = vunpack.c.l.b16 %v2732
        %v2797 = vunpack.c.l.b16 %v2733
        %v2798 = vpack.c.b16 %v2767, %v2766
        %v2799 = vpack.c.b16 %v2769, %v2768
        %v2800 = vpack.c.b16 %v2771, %v2770
        %v2801 = vpack.c.b16 %v2773, %v2772
        %v2802 = vpack.c.b16 %v2775, %v2774
        %v2803 = vpack.c.b16 %v2777, %v2776
        %v2804 = vpack.c.b16 %v2779, %v2778
        %v2805 = vpack.c.b16 %v2781, %v2780
        %v2806 = vpack.c.b16 %v2783, %v2782
        %v2807 = vpack.c.b16 %v2785, %v2784
        %v2808 = vpack.c.b16 %v2787, %v2786
        %v2809 = vpack.c.b16 %v2789, %v2788
        %v2810 = vpack.c.b16 %v2791, %v2790
        %v2811 = vpack.c.b16 %v2793, %v2792
        %v2812 = vpack.c.b16 %v2795, %v2794
        %v2813 = vpack.c.b16 %v2797, %v2796
        %2830 = vmatprep.subr.bf16.mxu0 0
        %2831 = vmatpush1.bf16.msra.mxu0 %v2798
        %2832 = vmatprep.subr.bf16.mxu0 0
        %2833 = vmatpush1.bf16.msra.mxu0 %v2799
        %2834 = vmatprep.subr.bf16.mxu0 0
        %2835 = vmatpush1.bf16.msra.mxu0 %v2800
        %2836 = vmatprep.subr.bf16.mxu0 0
        %2837 = vmatpush1.bf16.msra.mxu0 %v2801
        %2838 = vmatprep.subr.bf16.mxu0 0
        %2839 = vmatpush1.bf16.msra.mxu0 %v2802
        %2840 = vmatprep.subr.bf16.mxu0 0
        %2841 = vmatpush1.bf16.msra.mxu0 %v2803
        %2842 = vmatprep.subr.bf16.mxu0 0
        %2843 = vmatpush1.bf16.msra.mxu0 %v2804
        %2844 = vmatprep.subr.bf16.mxu0 0
        %2845 = vmatpush1.bf16.msra.mxu0 %v2805
        %2846 = vmatprep.subr.bf16.mxu0 0
        %2847 = vmatpush1.bf16.msra.mxu0 %v2806
        %2848 = vmatprep.subr.bf16.mxu0 0
        %2849 = vmatpush1.bf16.msra.mxu0 %v2807
        %2850 = vmatprep.subr.bf16.mxu0 0
        %2851 = vmatpush1.bf16.msra.mxu0 %v2808
        %2852 = vmatprep.subr.bf16.mxu0 0
        %2853 = vmatpush1.bf16.msra.mxu0 %v2809
        %2854 = vmatprep.subr.bf16.mxu0 0
        %2855 = vmatpush1.bf16.msra.mxu0 %v2810
        %2856 = vmatprep.subr.bf16.mxu0 0
        %2857 = vmatpush1.bf16.msra.mxu0 %v2811
        %2858 = vmatprep.subr.bf16.mxu0 0
        %2859 = vmatpush1.bf16.msra.mxu0 %v2812
        %2860 = vmatprep.subr.bf16.mxu0 0
        %2861 = vmatpush1.bf16.msra.mxu0 %v2813
        %2862 = vmatprep.mubr.bf16.mxu0 %v2701
        %2863 = vmatmul.mubr.bf16.gmra.mrb[0].mxu0 %v2700
        %v2864 = vpop.f32.mrb[0].mxu0
        %v2865 = vadd.f32 0.0, %v2864
        %v2866 = vpop.f32.mrb[0].mxu0
        %v2867 = vpop.f32.mrb[0].mxu0
        %v2868 = vpop.f32.mrb[0].mxu0
        %2869 = vdwg.mxu0
        %2870 = vrot.lane.b32.xlu0 %v2865, 127
        %v2871 = vpop.permute.xlu0 %2870
        %2872 = vrot.lane.b32.xlu0 %v2865, 118
        %v2873 = vpop.permute.xlu0 %2872
        %2874 = vrot.lane.b32.xlu0 %v2865, 117
        %v2875 = vpop.permute.xlu0 %2874
        %v2876 = vld [vmem:[%s7] sm:$0xf]
        %v2877 = vpack.c.bf16 %v2871, %v2865
        %v2878 = vpack.c.bf16 %v2875, %v2873
        %v2879 = vld [vmem:[%s8] sm:$0xff]
        %2881 = vset.pattern.permute.xlu0 0
        %2882 = vperm.xlu0 %2881, %v2879
        %v2883 = vpop.permute.xlu0 %2882
        %vm2885 = vcmask 261120
        %v2887 = vsel %vm2885, %v2876, 0
        %2889 = vmatprep.subr.bf16.mxu0 0
        %2890 = vmatpush1.bf16.msra.mxu0 %v2877
        %2891 = vmatprep.subr.bf16.mxu0 0
        %2892 = vmatpush1.bf16.msra.mxu0 %v2878
        %2893 = vmatprep.subr.bf16.mxu0 0
        %2894 = vmatpush1.bf16.msra.mxu0 0
        %2895 = vmatprep.subr.bf16.mxu0 0
        %2896 = vmatpush1.bf16.msra.mxu0 0
        %2897 = vmatprep.subr.bf16.mxu0 0
        %2898 = vmatpush1.bf16.msra.mxu0 0
        %2899 = vmatprep.subr.bf16.mxu0 0
        %2900 = vmatpush1.bf16.msra.mxu0 0
        %2901 = vmatprep.subr.bf16.mxu0 0
        %2902 = vmatpush1.bf16.msra.mxu0 0
        %2903 = vmatprep.subr.bf16.mxu0 0
        %2904 = vmatpush1.bf16.msra.mxu0 0
        %2905 = vmatprep.subr.bf16.mxu0 0
        %2906 = vmatpush1.bf16.msra.mxu0 0
        %2907 = vmatprep.subr.bf16.mxu0 0
        %2908 = vmatpush1.bf16.msra.mxu0 0
        %2909 = vmatprep.subr.bf16.mxu0 0
        %2910 = vmatpush1.bf16.msra.mxu0 0
        %2911 = vmatprep.subr.bf16.mxu0 0
        %2912 = vmatpush1.bf16.msra.mxu0 0
        %2913 = vmatprep.subr.bf16.mxu0 0
        %2914 = vmatpush1.bf16.msra.mxu0 0
        %2915 = vmatprep.subr.bf16.mxu0 0
        %2916 = vmatpush1.bf16.msra.mxu0 0
        %2917 = vmatprep.subr.bf16.mxu0 0
        %2918 = vmatpush1.bf16.msra.mxu0 0
        %2919 = vmatprep.subr.bf16.mxu0 0
        %2920 = vmatpush1.bf16.msra.mxu0 0
        %2921 = vmatprep.mubr.bf16.mxu0 0
        %2922 = vmatmul.mubr.bf16.gmra.mrb[0].mxu0 %v2887
        %v2923 = vpop.f32.mrb[0].mxu0
        %v2924 = vadd.f32 %v2883, %v2923
        %v2925 = vpop.f32.mrb[0].mxu0
        %v2926 = vpop.f32.mrb[0].mxu0
        %v2927 = vpop.f32.mrb[0].mxu0
        %2928 = vdwg.mxu0
        %v2929 = vmax.f32 %v2924, 0.0
        %v2930 = vld [vmem:[%s16] sm:$0x1]
        %v2932 = vlaneseq
        %v2933 = vshrl.u32 %v2932, 7
        %v2934 = vsub.s32 0, %v2933
        %v2935 = vrot.slane %v2930, %v2934
        %v2937 = vmul.f32 %v2929, %v2935
        %2938 = vrot.lane.b32.xlu0 %v2937, 11
        %v2939 = vpop.permute.xlu0 %2938
        %2940 = vrot.lane.b32.xlu0 %v2939, 127
        %v2941 = vpop.permute.xlu0 %2940
        %2942 = vrot.lane.b32.xlu0 %v2939, 126
        %v2943 = vpop.permute.xlu0 %2942
        %2944 = vrot.lane.b32.xlu0 %v2939, 118
        %v2945 = vpop.permute.xlu0 %2944
        %2946 = vrot.lane.b32.xlu0 %v2939, 117
        %v2947 = vpop.permute.xlu0 %2946
        %2948 = vrot.lane.b32.xlu0 %v2939, 116
        %v2949 = vpop.permute.xlu0 %2948
        %2950 = vrot.lane.b32.xlu0 %v2939, 108
        %v2951 = vpop.permute.xlu0 %2950
        %2952 = vrot.lane.b32.xlu0 %v2939, 107
        %v2953 = vpop.permute.xlu0 %2952
        %2954 = vrot.lane.b32.xlu0 %v2939, 106
        %v2955 = vpop.permute.xlu0 %2954
        %v2956 = vld [vmem:[%s9] sm:$0xf]
        %v2957 = vpack.c.bf16 %v2941, %v2939
        %v2958 = vpack.c.bf16 %v2945, %v2943
        %v2959 = vpack.c.bf16 %v2949, %v2947
        %v2960 = vpack.c.bf16 %v2953, %v2951
        %v2961 = vpack.c.bf16 %v2955, %v2955
        %v2962 = vld [vmem:[%s10] sm:$0xff]
        %2964 = vset.pattern.permute.xlu0 0
        %2965 = vperm.xlu0 %2964, %v2962
        %v2966 = vpop.permute.xlu0 %2965
        %v2969 = vsel %vm804, %v2956, 0
        %v2972 = vsel %vm808, %v2961, 0
        %2974 = vmatprep.subr.bf16.mxu0 0
        %2975 = vmatpush1.bf16.msra.mxu0 %v2957
        %2976 = vmatprep.subr.bf16.mxu0 0
        %2977 = vmatpush1.bf16.msra.mxu0 %v2958
        %2978 = vmatprep.subr.bf16.mxu0 0
        %2979 = vmatpush1.bf16.msra.mxu0 %v2959
        %2980 = vmatprep.subr.bf16.mxu0 0
        %2981 = vmatpush1.bf16.msra.mxu0 %v2960
        %2982 = vmatprep.subr.bf16.mxu0 0
        %2983 = vmatpush1.bf16.msra.mxu0 %v2972
        %2984 = vmatprep.subr.bf16.mxu0 0
        %2985 = vmatpush1.bf16.msra.mxu0 0
        %2986 = vmatprep.subr.bf16.mxu0 0
        %2987 = vmatpush1.bf16.msra.mxu0 0
        %2988 = vmatprep.subr.bf16.mxu0 0
        %2989 = vmatpush1.bf16.msra.mxu0 0
        %2990 = vmatprep.subr.bf16.mxu0 0
        %2991 = vmatpush1.bf16.msra.mxu0 0
        %2992 = vmatprep.subr.bf16.mxu0 0
        %2993 = vmatpush1.bf16.msra.mxu0 0
        %2994 = vmatprep.subr.bf16.mxu0 0
        %2995 = vmatpush1.bf16.msra.mxu0 0
        %2996 = vmatprep.subr.bf16.mxu0 0
        %2997 = vmatpush1.bf16.msra.mxu0 0
        %2998 = vmatprep.subr.bf16.mxu0 0
        %2999 = vmatpush1.bf16.msra.mxu0 0
        %3000 = vmatprep.subr.bf16.mxu0 0
        %3001 = vmatpush1.bf16.msra.mxu0 0
        %3002 = vmatprep.subr.bf16.mxu0 0
        %3003 = vmatpush1.bf16.msra.mxu0 0
        %3004 = vmatprep.subr.bf16.mxu0 0
        %3005 = vmatpush1.bf16.msra.mxu0 0
        %3006 = vmatprep.mubr.bf16.mxu0 0
        %3007 = vmatmul.mubr.bf16.gmra.mrb[0].mxu0 %v2969
        %v3008 = vpop.f32.mrb[0].mxu0
        %v3009 = vadd.f32 %v2966, %v3008
        %v3010 = vpop.f32.mrb[0].mxu0
        %v3011 = vpop.f32.mrb[0].mxu0
        %v3012 = vpop.f32.mrb[0].mxu0
        %3013 = vdwg.mxu0
        %v3014 = vmax.f32 %v3009, 0.0
        %3015 = vrot.lane.b32.xlu0 %v3014, 127
        %v3016 = vpop.permute.xlu0 %3015
        %v3017 = vmax.f32 %v3014, %v3016
        %3018 = vrot.lane.b32.xlu0 %v3014, 118
        %v3019 = vpop.permute.xlu0 %3018
        %3020 = vrot.lane.b32.xlu0 %v3014, 117
        %v3021 = vpop.permute.xlu0 %3020
        %v3022 = vmax.f32 %v3019, %v3021
        %v3023 = vmax.f32 %v3017, %v3022
        %v3024 = vld [vmem:[%s14] sm:$0x1]
        %v3025 = vpack.c.bf16 %v3023, %v3023
        %v3026 = vld [vmem:[%s13] sm:$0xf]
        %v3027 = vld [vmem:[%s13 + $0x4] sm:$0xf]
        %v3028 = vld [vmem:[%s13 + $0x8] sm:$0xf]
        %v3029 = vld [vmem:[%s13 + $0xc] sm:$0xf]
        %v3030 = vld [vmem:[%s13 + $0x10] sm:$0xf]
        %v3031 = vld [vmem:[%s13 + $0x14] sm:$0xf]
        %v3032 = vld [vmem:[%s13 + $0x18] sm:$0xf]
        %v3033 = vld [vmem:[%s13 + $0x1c] sm:$0xf]
        %v3034 = vld [vmem:[%s13 + $0x20] sm:$0xf]
        %v3035 = vld [vmem:[%s13 + $0x24] sm:$0xf]
        %v3036 = vld [vmem:[%s13 + $0x28] sm:$0xf]
        %v3037 = vld [vmem:[%s13 + $0x2c] sm:$0xf]
        %v3038 = vld [vmem:[%s13 + $0x30] sm:$0xf]
        %v3039 = vld [vmem:[%s13 + $0x34] sm:$0xf]
        %v3040 = vld [vmem:[%s13 + $0x38] sm:$0xf]
        %v3041 = vld [vmem:[%s13 + $0x3c] sm:$0xf]
        %v3058 = vunpack.c.l.b16 %v3026
        %v3059 = vunpack.c.l.b16 %v3027
        %v3060 = vunpack.c.l.b16 %v3028
        %v3061 = vunpack.c.l.b16 %v3029
        %v3062 = vunpack.c.l.b16 %v3030
        %v3063 = vunpack.c.l.b16 %v3031
        %v3064 = vunpack.c.l.b16 %v3032
        %v3065 = vunpack.c.l.b16 %v3033
        %v3066 = vunpack.c.l.b16 %v3034
        %v3067 = vunpack.c.l.b16 %v3035
        %v3068 = vunpack.c.l.b16 %v3036
        %v3069 = vunpack.c.l.b16 %v3037
        %v3070 = vunpack.c.l.b16 %v3038
        %v3071 = vunpack.c.l.b16 %v3039
        %v3072 = vunpack.c.l.b16 %v3040
        %v3073 = vunpack.c.l.b16 %v3041
        %v3074 = vpack.c.b16 %v3059, %v3058
        %v3075 = vpack.c.b16 %v3061, %v3060
        %v3076 = vpack.c.b16 %v3063, %v3062
        %v3077 = vpack.c.b16 %v3065, %v3064
        %v3078 = vpack.c.b16 %v3067, %v3066
        %v3079 = vpack.c.b16 %v3069, %v3068
        %v3080 = vpack.c.b16 %v3071, %v3070
        %v3081 = vpack.c.b16 %v3073, %v3072
        %3090 = vmatprep.subr.bf16.mxu0 0
        %3091 = vmatpush1.bf16.msra.mxu0 %v3074
        %3092 = vmatprep.subr.bf16.mxu0 0
        %3093 = vmatpush1.bf16.msra.mxu0 %v3075
        %3094 = vmatprep.subr.bf16.mxu0 0
        %3095 = vmatpush1.bf16.msra.mxu0 %v3076
        %3096 = vmatprep.subr.bf16.mxu0 0
        %3097 = vmatpush1.bf16.msra.mxu0 %v3077
        %3098 = vmatprep.subr.bf16.mxu0 0
        %3099 = vmatpush1.bf16.msra.mxu0 %v3078
        %3100 = vmatprep.subr.bf16.mxu0 0
        %3101 = vmatpush1.bf16.msra.mxu0 %v3079
        %3102 = vmatprep.subr.bf16.mxu0 0
        %3103 = vmatpush1.bf16.msra.mxu0 %v3080
        %3104 = vmatprep.subr.bf16.mxu0 0
        %3105 = vmatpush1.bf16.msra.mxu0 %v3081
        %3106 = vmatprep.subr.bf16.mxu0 0
        %3107 = vmatpush1.bf16.msra.mxu0 0
        %3108 = vmatprep.subr.bf16.mxu0 0
        %3109 = vmatpush1.bf16.msra.mxu0 0
        %3110 = vmatprep.subr.bf16.mxu0 0
        %3111 = vmatpush1.bf16.msra.mxu0 0
        %3112 = vmatprep.subr.bf16.mxu0 0
        %3113 = vmatpush1.bf16.msra.mxu0 0
        %3114 = vmatprep.subr.bf16.mxu0 0
        %3115 = vmatpush1.bf16.msra.mxu0 0
        %3116 = vmatprep.subr.bf16.mxu0 0
        %3117 = vmatpush1.bf16.msra.mxu0 0
        %3118 = vmatprep.subr.bf16.mxu0 0
        %3119 = vmatpush1.bf16.msra.mxu0 0
        %3120 = vmatprep.subr.bf16.mxu0 0
        %3121 = vmatpush1.bf16.msra.mxu0 0
        %3122 = vmatprep.mubr.bf16.mxu0 0
        %3123 = vmatmul.mubr.bf16.gmra.mrb[0].mxu0 %v3025
        %v3124 = vpop.f32.mrb[0].mxu0
        %v3125 = vadd.f32 0.0, %v3124
        %v3126 = vpop.f32.mrb[0].mxu0
        %v3127 = vpop.f32.mrb[0].mxu0
        %v3128 = vpop.f32.mrb[0].mxu0
        %3129 = vdwg.mxu0
        %v3130 = vadd.f32 %v3024, %v3125
        %s3131 = scalar_lea.vmem %s13, 64
        %v3132 = vld [vmem:[%s3131] sm:$0xf]
        %v3133 = vld [vmem:[%s3131 + $0x4] sm:$0xf]
        %v3134 = vld [vmem:[%s3131 + $0x8] sm:$0xf]
        %v3135 = vld [vmem:[%s3131 + $0xc] sm:$0xf]
        %v3136 = vld [vmem:[%s3131 + $0x10] sm:$0xf]
        %v3137 = vld [vmem:[%s3131 + $0x14] sm:$0xf]
        %v3138 = vld [vmem:[%s3131 + $0x18] sm:$0xf]
        %v3139 = vld [vmem:[%s3131 + $0x1c] sm:$0xf]
        %v3140 = vld [vmem:[%s3131 + $0x20] sm:$0xf]
        %v3141 = vld [vmem:[%s3131 + $0x24] sm:$0xf]
        %v3142 = vld [vmem:[%s3131 + $0x28] sm:$0xf]
        %v3143 = vld [vmem:[%s3131 + $0x2c] sm:$0xf]
        %v3144 = vld [vmem:[%s3131 + $0x30] sm:$0xf]
        %v3145 = vld [vmem:[%s3131 + $0x34] sm:$0xf]
        %v3146 = vld [vmem:[%s3131 + $0x38] sm:$0xf]
        %v3147 = vld [vmem:[%s3131 + $0x3c] sm:$0xf]
        %v3149 = vshrl.u32 %v3025, 16
        %v3168 = vunpack.c.l.b16 %v3132
        %v3169 = vunpack.c.l.b16 %v3133
        %v3170 = vunpack.c.l.b16 %v3134
        %v3171 = vunpack.c.l.b16 %v3135
        %v3172 = vunpack.c.l.b16 %v3136
        %v3173 = vunpack.c.l.b16 %v3137
        %v3174 = vunpack.c.l.b16 %v3138
        %v3175 = vunpack.c.l.b16 %v3139
        %v3176 = vunpack.c.l.b16 %v3140
        %v3177 = vunpack.c.l.b16 %v3141
        %v3178 = vunpack.c.l.b16 %v3142
        %v3179 = vunpack.c.l.b16 %v3143
        %v3180 = vunpack.c.l.b16 %v3144
        %v3181 = vunpack.c.l.b16 %v3145
        %v3182 = vunpack.c.l.b16 %v3146
        %v3183 = vunpack.c.l.b16 %v3147
        %v3184 = vpack.c.b16 %v3169, %v3168
        %v3185 = vpack.c.b16 %v3171, %v3170
        %v3186 = vpack.c.b16 %v3173, %v3172
        %v3187 = vpack.c.b16 %v3175, %v3174
        %v3188 = vpack.c.b16 %v3177, %v3176
        %v3189 = vpack.c.b16 %v3179, %v3178
        %v3190 = vpack.c.b16 %v3181, %v3180
        %v3191 = vpack.c.b16 %v3183, %v3182
        %3200 = vmatprep.subr.bf16.mxu0 0
        %3201 = vmatpush1.bf16.msra.mxu0 %v3184
        %3202 = vmatprep.subr.bf16.mxu0 0
        %3203 = vmatpush1.bf16.msra.mxu0 %v3185
        %3204 = vmatprep.subr.bf16.mxu0 0
        %3205 = vmatpush1.bf16.msra.mxu0 %v3186
        %3206 = vmatprep.subr.bf16.mxu0 0
        %3207 = vmatpush1.bf16.msra.mxu0 %v3187
        %3208 = vmatprep.subr.bf16.mxu0 0
        %3209 = vmatpush1.bf16.msra.mxu0 %v3188
        %3210 = vmatprep.subr.bf16.mxu0 0
        %3211 = vmatpush1.bf16.msra.mxu0 %v3189
        %3212 = vmatprep.subr.bf16.mxu0 0
        %3213 = vmatpush1.bf16.msra.mxu0 %v3190
        %3214 = vmatprep.subr.bf16.mxu0 0
        %3215 = vmatpush1.bf16.msra.mxu0 %v3191
        %3216 = vmatprep.subr.bf16.mxu0 0
        %3217 = vmatpush1.bf16.msra.mxu0 0
        %3218 = vmatprep.subr.bf16.mxu0 0
        %3219 = vmatpush1.bf16.msra.mxu0 0
        %3220 = vmatprep.subr.bf16.mxu0 0
        %3221 = vmatpush1.bf16.msra.mxu0 0
        %3222 = vmatprep.subr.bf16.mxu0 0
        %3223 = vmatpush1.bf16.msra.mxu0 0
        %3224 = vmatprep.subr.bf16.mxu0 0
        %3225 = vmatpush1.bf16.msra.mxu0 0
        %3226 = vmatprep.subr.bf16.mxu0 0
        %3227 = vmatpush1.bf16.msra.mxu0 0
        %3228 = vmatprep.subr.bf16.mxu0 0
        %3229 = vmatpush1.bf16.msra.mxu0 0
        %3230 = vmatprep.subr.bf16.mxu0 0
        %3231 = vmatpush1.bf16.msra.mxu0 0
        %3232 = vmatprep.mubr.bf16.mxu0 0
        %3233 = vmatmul.mubr.bf16.gmra.mrb[0].mxu0 %v3149
        %v3234 = vpop.f32.mrb[0].mxu0
        %v3235 = vadd.f32 0.0, %v3234
        %v3236 = vpop.f32.mrb[0].mxu0
        %v3237 = vpop.f32.mrb[0].mxu0
        %v3238 = vpop.f32.mrb[0].mxu0
        %3239 = vdwg.mxu0
        %v3240 = vadd.f32 %v3130, %v3235
        %s3241 = scalar_lea.vmem %s13, 128
        %v3242 = vld [vmem:[%s3241] sm:$0xf]
        %v3243 = vld [vmem:[%s3241 + $0x4] sm:$0xf]
        %v3244 = vld [vmem:[%s3241 + $0x8] sm:$0xf]
        %v3245 = vld [vmem:[%s3241 + $0xc] sm:$0xf]
        %v3246 = vld [vmem:[%s3241 + $0x10] sm:$0xf]
        %v3247 = vld [vmem:[%s3241 + $0x14] sm:$0xf]
        %v3248 = vld [vmem:[%s3241 + $0x18] sm:$0xf]
        %v3249 = vld [vmem:[%s3241 + $0x1c] sm:$0xf]
        %v3250 = vld [vmem:[%s3241 + $0x20] sm:$0xf]
        %v3251 = vld [vmem:[%s3241 + $0x24] sm:$0xf]
        %v3252 = vld [vmem:[%s3241 + $0x28] sm:$0xf]
        %v3253 = vld [vmem:[%s3241 + $0x2c] sm:$0xf]
        %v3254 = vld [vmem:[%s3241 + $0x30] sm:$0xf]
        %v3255 = vld [vmem:[%s3241 + $0x34] sm:$0xf]
        %v3256 = vld [vmem:[%s3241 + $0x38] sm:$0xf]
        %v3257 = vld [vmem:[%s3241 + $0x3c] sm:$0xf]
        %v3259 = vrot.slane %v3025, 1
        %v3277 = vunpack.c.l.b16 %v3242
        %v3278 = vunpack.c.l.b16 %v3243
        %v3279 = vunpack.c.l.b16 %v3244
        %v3280 = vunpack.c.l.b16 %v3245
        %v3281 = vunpack.c.l.b16 %v3246
        %v3282 = vunpack.c.l.b16 %v3247
        %v3283 = vunpack.c.l.b16 %v3248
        %v3284 = vunpack.c.l.b16 %v3249
        %v3285 = vunpack.c.l.b16 %v3250
        %v3286 = vunpack.c.l.b16 %v3251
        %v3287 = vunpack.c.l.b16 %v3252
        %v3288 = vunpack.c.l.b16 %v3253
        %v3289 = vunpack.c.l.b16 %v3254
        %v3290 = vunpack.c.l.b16 %v3255
        %v3291 = vunpack.c.l.b16 %v3256
        %v3292 = vunpack.c.l.b16 %v3257
        %v3293 = vpack.c.b16 %v3278, %v3277
        %v3294 = vpack.c.b16 %v3280, %v3279
        %v3295 = vpack.c.b16 %v3282, %v3281
        %v3296 = vpack.c.b16 %v3284, %v3283
        %v3297 = vpack.c.b16 %v3286, %v3285
        %v3298 = vpack.c.b16 %v3288, %v3287
        %v3299 = vpack.c.b16 %v3290, %v3289
        %v3300 = vpack.c.b16 %v3292, %v3291
        %3309 = vmatprep.subr.bf16.mxu0 0
        %3310 = vmatpush1.bf16.msra.mxu0 %v3293
        %3311 = vmatprep.subr.bf16.mxu0 0
        %3312 = vmatpush1.bf16.msra.mxu0 %v3294
        %3313 = vmatprep.subr.bf16.mxu0 0
        %3314 = vmatpush1.bf16.msra.mxu0 %v3295
        %3315 = vmatprep.subr.bf16.mxu0 0
        %3316 = vmatpush1.bf16.msra.mxu0 %v3296
        %3317 = vmatprep.subr.bf16.mxu0 0
        %3318 = vmatpush1.bf16.msra.mxu0 %v3297
        %3319 = vmatprep.subr.bf16.mxu0 0
        %3320 = vmatpush1.bf16.msra.mxu0 %v3298
        %3321 = vmatprep.subr.bf16.mxu0 0
        %3322 = vmatpush1.bf16.msra.mxu0 %v3299
        %3323 = vmatprep.subr.bf16.mxu0 0
        %3324 = vmatpush1.bf16.msra.mxu0 %v3300
        %3325 = vmatprep.subr.bf16.mxu0 0
        %3326 = vmatpush1.bf16.msra.mxu0 0
        %3327 = vmatprep.subr.bf16.mxu0 0
        %3328 = vmatpush1.bf16.msra.mxu0 0
        %3329 = vmatprep.subr.bf16.mxu0 0
        %3330 = vmatpush1.bf16.msra.mxu0 0
        %3331 = vmatprep.subr.bf16.mxu0 0
        %3332 = vmatpush1.bf16.msra.mxu0 0
        %3333 = vmatprep.subr.bf16.mxu0 0
        %3334 = vmatpush1.bf16.msra.mxu0 0
        %3335 = vmatprep.subr.bf16.mxu0 0
        %3336 = vmatpush1.bf16.msra.mxu0 0
        %3337 = vmatprep.subr.bf16.mxu0 0
        %3338 = vmatpush1.bf16.msra.mxu0 0
        %3339 = vmatprep.subr.bf16.mxu0 0
        %3340 = vmatpush1.bf16.msra.mxu0 0
        %3341 = vmatprep.mubr.bf16.mxu0 0
        %3342 = vmatmul.mubr.bf16.gmra.mrb[0].mxu0 %v3259
        %v3343 = vpop.f32.mrb[0].mxu0
        %v3344 = vadd.f32 0.0, %v3343
        %v3345 = vpop.f32.mrb[0].mxu0
        %v3346 = vpop.f32.mrb[0].mxu0
        %v3347 = vpop.f32.mrb[0].mxu0
        %3348 = vdwg.mxu0
        %v3349 = vadd.f32 %v3240, %v3344
        %s3350 = scalar_lea.vmem %s13, 192
        %v3351 = vld [vmem:[%s3350] sm:$0xf]
        %v3352 = vld [vmem:[%s3350 + $0x4] sm:$0xf]
        %v3353 = vld [vmem:[%s3350 + $0x8] sm:$0xf]
        %v3354 = vld [vmem:[%s3350 + $0xc] sm:$0xf]
        %v3355 = vld [vmem:[%s3350 + $0x10] sm:$0xf]
        %v3356 = vld [vmem:[%s3350 + $0x14] sm:$0xf]
        %v3357 = vld [vmem:[%s3350 + $0x18] sm:$0xf]
        %v3358 = vld [vmem:[%s3350 + $0x1c] sm:$0xf]
        %v3359 = vld [vmem:[%s3350 + $0x20] sm:$0xf]
        %v3360 = vld [vmem:[%s3350 + $0x24] sm:$0xf]
        %v3361 = vld [vmem:[%s3350 + $0x28] sm:$0xf]
        %v3362 = vld [vmem:[%s3350 + $0x2c] sm:$0xf]
        %v3363 = vld [vmem:[%s3350 + $0x30] sm:$0xf]
        %v3364 = vld [vmem:[%s3350 + $0x34] sm:$0xf]
        %v3365 = vld [vmem:[%s3350 + $0x38] sm:$0xf]
        %v3366 = vld [vmem:[%s3350 + $0x3c] sm:$0xf]
        %v3367 = vrot.slane %v3149, 1
        %v3385 = vunpack.c.l.b16 %v3351
        %v3386 = vunpack.c.l.b16 %v3352
        %v3387 = vunpack.c.l.b16 %v3353
        %v3388 = vunpack.c.l.b16 %v3354
        %v3389 = vunpack.c.l.b16 %v3355
        %v3390 = vunpack.c.l.b16 %v3356
        %v3391 = vunpack.c.l.b16 %v3357
        %v3392 = vunpack.c.l.b16 %v3358
        %v3393 = vunpack.c.l.b16 %v3359
        %v3394 = vunpack.c.l.b16 %v3360
        %v3395 = vunpack.c.l.b16 %v3361
        %v3396 = vunpack.c.l.b16 %v3362
        %v3397 = vunpack.c.l.b16 %v3363
        %v3398 = vunpack.c.l.b16 %v3364
        %v3399 = vunpack.c.l.b16 %v3365
        %v3400 = vunpack.c.l.b16 %v3366
        %v3401 = vpack.c.b16 %v3386, %v3385
        %v3402 = vpack.c.b16 %v3388, %v3387
        %v3403 = vpack.c.b16 %v3390, %v3389
        %v3404 = vpack.c.b16 %v3392, %v3391
        %v3405 = vpack.c.b16 %v3394, %v3393
        %v3406 = vpack.c.b16 %v3396, %v3395
        %v3407 = vpack.c.b16 %v3398, %v3397
        %v3408 = vpack.c.b16 %v3400, %v3399
        %3417 = vmatprep.subr.bf16.mxu0 0
        %3418 = vmatpush1.bf16.msra.mxu0 %v3401
        %3419 = vmatprep.subr.bf16.mxu0 0
        %3420 = vmatpush1.bf16.msra.mxu0 %v3402
        %3421 = vmatprep.subr.bf16.mxu0 0
        %3422 = vmatpush1.bf16.msra.mxu0 %v3403
        %3423 = vmatprep.subr.bf16.mxu0 0
        %3424 = vmatpush1.bf16.msra.mxu0 %v3404
        %3425 = vmatprep.subr.bf16.mxu0 0
        %3426 = vmatpush1.bf16.msra.mxu0 %v3405
        %3427 = vmatprep.subr.bf16.mxu0 0
        %3428 = vmatpush1.bf16.msra.mxu0 %v3406
        %3429 = vmatprep.subr.bf16.mxu0 0
        %3430 = vmatpush1.bf16.msra.mxu0 %v3407
        %3431 = vmatprep.subr.bf16.mxu0 0
        %3432 = vmatpush1.bf16.msra.mxu0 %v3408
        %3433 = vmatprep.subr.bf16.mxu0 0
        %3434 = vmatpush1.bf16.msra.mxu0 0
        %3435 = vmatprep.subr.bf16.mxu0 0
        %3436 = vmatpush1.bf16.msra.mxu0 0
        %3437 = vmatprep.subr.bf16.mxu0 0
        %3438 = vmatpush1.bf16.msra.mxu0 0
        %3439 = vmatprep.subr.bf16.mxu0 0
        %3440 = vmatpush1.bf16.msra.mxu0 0
        %3441 = vmatprep.subr.bf16.mxu0 0
        %3442 = vmatpush1.bf16.msra.mxu0 0
        %3443 = vmatprep.subr.bf16.mxu0 0
        %3444 = vmatpush1.bf16.msra.mxu0 0
        %3445 = vmatprep.subr.bf16.mxu0 0
        %3446 = vmatpush1.bf16.msra.mxu0 0
        %3447 = vmatprep.subr.bf16.mxu0 0
        %3448 = vmatpush1.bf16.msra.mxu0 0
        %3449 = vmatprep.mubr.bf16.mxu0 0
        %3450 = vmatmul.mubr.bf16.gmra.mrb[0].mxu0 %v3367
        %v3451 = vpop.f32.mrb[0].mxu0
        %v3452 = vadd.f32 0.0, %v3451
        %v3453 = vpop.f32.mrb[0].mxu0
        %v3454 = vpop.f32.mrb[0].mxu0
        %v3455 = vpop.f32.mrb[0].mxu0
        %3456 = vdwg.mxu0
        %v3457 = vadd.f32 %v3349, %v3452
        %s3458 = scalar_lea.vmem %s13, 256
        %v3459 = vld [vmem:[%s3458] sm:$0xf]
        %v3460 = vld [vmem:[%s3458 + $0x4] sm:$0xf]
        %v3461 = vld [vmem:[%s3458 + $0x8] sm:$0xf]
        %v3462 = vld [vmem:[%s3458 + $0xc] sm:$0xf]
        %v3463 = vld [vmem:[%s3458 + $0x10] sm:$0xf]
        %v3464 = vld [vmem:[%s3458 + $0x14] sm:$0xf]
        %v3465 = vld [vmem:[%s3458 + $0x18] sm:$0xf]
        %v3466 = vld [vmem:[%s3458 + $0x1c] sm:$0xf]
        %v3467 = vld [vmem:[%s3458 + $0x20] sm:$0xf]
        %v3468 = vld [vmem:[%s3458 + $0x24] sm:$0xf]
        %v3469 = vld [vmem:[%s3458 + $0x28] sm:$0xf]
        %v3470 = vld [vmem:[%s3458 + $0x2c] sm:$0xf]
        %v3471 = vld [vmem:[%s3458 + $0x30] sm:$0xf]
        %v3472 = vld [vmem:[%s3458 + $0x34] sm:$0xf]
        %v3473 = vld [vmem:[%s3458 + $0x38] sm:$0xf]
        %v3474 = vld [vmem:[%s3458 + $0x3c] sm:$0xf]
        %v3475 = vrot.slane %v3025, 2
        %v3493 = vunpack.c.l.b16 %v3459
        %v3494 = vunpack.c.l.b16 %v3460
        %v3495 = vunpack.c.l.b16 %v3461
        %v3496 = vunpack.c.l.b16 %v3462
        %v3497 = vunpack.c.l.b16 %v3463
        %v3498 = vunpack.c.l.b16 %v3464
        %v3499 = vunpack.c.l.b16 %v3465
        %v3500 = vunpack.c.l.b16 %v3466
        %v3501 = vunpack.c.l.b16 %v3467
        %v3502 = vunpack.c.l.b16 %v3468
        %v3503 = vunpack.c.l.b16 %v3469
        %v3504 = vunpack.c.l.b16 %v3470
        %v3505 = vunpack.c.l.b16 %v3471
        %v3506 = vunpack.c.l.b16 %v3472
        %v3507 = vunpack.c.l.b16 %v3473
        %v3508 = vunpack.c.l.b16 %v3474
        %v3509 = vpack.c.b16 %v3494, %v3493
        %v3510 = vpack.c.b16 %v3496, %v3495
        %v3511 = vpack.c.b16 %v3498, %v3497
        %v3512 = vpack.c.b16 %v3500, %v3499
        %v3513 = vpack.c.b16 %v3502, %v3501
        %v3514 = vpack.c.b16 %v3504, %v3503
        %v3515 = vpack.c.b16 %v3506, %v3505
        %v3516 = vpack.c.b16 %v3508, %v3507
        %3525 = vmatprep.subr.bf16.mxu0 0
        %3526 = vmatpush1.bf16.msra.mxu0 %v3509
        %3527 = vmatprep.subr.bf16.mxu0 0
        %3528 = vmatpush1.bf16.msra.mxu0 %v3510
        %3529 = vmatprep.subr.bf16.mxu0 0
        %3530 = vmatpush1.bf16.msra.mxu0 %v3511
        %3531 = vmatprep.subr.bf16.mxu0 0
        %3532 = vmatpush1.bf16.msra.mxu0 %v3512
        %3533 = vmatprep.subr.bf16.mxu0 0
        %3534 = vmatpush1.bf16.msra.mxu0 %v3513
        %3535 = vmatprep.subr.bf16.mxu0 0
        %3536 = vmatpush1.bf16.msra.mxu0 %v3514
        %3537 = vmatprep.subr.bf16.mxu0 0
        %3538 = vmatpush1.bf16.msra.mxu0 %v3515
        %3539 = vmatprep.subr.bf16.mxu0 0
        %3540 = vmatpush1.bf16.msra.mxu0 %v3516
        %3541 = vmatprep.subr.bf16.mxu0 0
        %3542 = vmatpush1.bf16.msra.mxu0 0
        %3543 = vmatprep.subr.bf16.mxu0 0
        %3544 = vmatpush1.bf16.msra.mxu0 0
        %3545 = vmatprep.subr.bf16.mxu0 0
        %3546 = vmatpush1.bf16.msra.mxu0 0
        %3547 = vmatprep.subr.bf16.mxu0 0
        %3548 = vmatpush1.bf16.msra.mxu0 0
        %3549 = vmatprep.subr.bf16.mxu0 0
        %3550 = vmatpush1.bf16.msra.mxu0 0
        %3551 = vmatprep.subr.bf16.mxu0 0
        %3552 = vmatpush1.bf16.msra.mxu0 0
        %3553 = vmatprep.subr.bf16.mxu0 0
        %3554 = vmatpush1.bf16.msra.mxu0 0
        %3555 = vmatprep.subr.bf16.mxu0 0
        %3556 = vmatpush1.bf16.msra.mxu0 0
        %3557 = vmatprep.mubr.bf16.mxu0 0
        %3558 = vmatmul.mubr.bf16.gmra.mrb[0].mxu0 %v3475
        %v3559 = vpop.f32.mrb[0].mxu0
        %v3560 = vadd.f32 0.0, %v3559
        %v3561 = vpop.f32.mrb[0].mxu0
        %v3562 = vpop.f32.mrb[0].mxu0
        %v3563 = vpop.f32.mrb[0].mxu0
        %3564 = vdwg.mxu0
        %v3565 = vadd.f32 %v3457, %v3560
        %s3566 = scalar_lea.vmem %s13, 320
        %v3567 = vld [vmem:[%s3566] sm:$0xf]
        %v3568 = vld [vmem:[%s3566 + $0x4] sm:$0xf]
        %v3569 = vld [vmem:[%s3566 + $0x8] sm:$0xf]
        %v3570 = vld [vmem:[%s3566 + $0xc] sm:$0xf]
        %v3571 = vld [vmem:[%s3566 + $0x10] sm:$0xf]
        %v3572 = vld [vmem:[%s3566 + $0x14] sm:$0xf]
        %v3573 = vld [vmem:[%s3566 + $0x18] sm:$0xf]
        %v3574 = vld [vmem:[%s3566 + $0x1c] sm:$0xf]
        %v3575 = vld [vmem:[%s3566 + $0x20] sm:$0xf]
        %v3576 = vld [vmem:[%s3566 + $0x24] sm:$0xf]
        %v3577 = vld [vmem:[%s3566 + $0x28] sm:$0xf]
        %v3578 = vld [vmem:[%s3566 + $0x2c] sm:$0xf]
        %v3579 = vld [vmem:[%s3566 + $0x30] sm:$0xf]
        %v3580 = vld [vmem:[%s3566 + $0x34] sm:$0xf]
        %v3581 = vld [vmem:[%s3566 + $0x38] sm:$0xf]
        %v3582 = vld [vmem:[%s3566 + $0x3c] sm:$0xf]
        %v3583 = vrot.slane %v3149, 2
        %v3601 = vunpack.c.l.b16 %v3567
        %v3602 = vunpack.c.l.b16 %v3568
        %v3603 = vunpack.c.l.b16 %v3569
        %v3604 = vunpack.c.l.b16 %v3570
        %v3605 = vunpack.c.l.b16 %v3571
        %v3606 = vunpack.c.l.b16 %v3572
        %v3607 = vunpack.c.l.b16 %v3573
        %v3608 = vunpack.c.l.b16 %v3574
        %v3609 = vunpack.c.l.b16 %v3575
        %v3610 = vunpack.c.l.b16 %v3576
        %v3611 = vunpack.c.l.b16 %v3577
        %v3612 = vunpack.c.l.b16 %v3578
        %v3613 = vunpack.c.l.b16 %v3579
        %v3614 = vunpack.c.l.b16 %v3580
        %v3615 = vunpack.c.l.b16 %v3581
        %v3616 = vunpack.c.l.b16 %v3582
        %v3617 = vpack.c.b16 %v3602, %v3601
        %v3618 = vpack.c.b16 %v3604, %v3603
        %v3619 = vpack.c.b16 %v3606, %v3605
        %v3620 = vpack.c.b16 %v3608, %v3607
        %v3621 = vpack.c.b16 %v3610, %v3609
        %v3622 = vpack.c.b16 %v3612, %v3611
        %v3623 = vpack.c.b16 %v3614, %v3613
        %v3624 = vpack.c.b16 %v3616, %v3615
        %3633 = vmatprep.subr.bf16.mxu0 0
        %3634 = vmatpush1.bf16.msra.mxu0 %v3617
        %3635 = vmatprep.subr.bf16.mxu0 0
        %3636 = vmatpush1.bf16.msra.mxu0 %v3618
        %3637 = vmatprep.subr.bf16.mxu0 0
        %3638 = vmatpush1.bf16.msra.mxu0 %v3619
        %3639 = vmatprep.subr.bf16.mxu0 0
        %3640 = vmatpush1.bf16.msra.mxu0 %v3620
        %3641 = vmatprep.subr.bf16.mxu0 0
        %3642 = vmatpush1.bf16.msra.mxu0 %v3621
        %3643 = vmatprep.subr.bf16.mxu0 0
        %3644 = vmatpush1.bf16.msra.mxu0 %v3622
        %3645 = vmatprep.subr.bf16.mxu0 0
        %3646 = vmatpush1.bf16.msra.mxu0 %v3623
        %3647 = vmatprep.subr.bf16.mxu0 0
        %3648 = vmatpush1.bf16.msra.mxu0 %v3624
        %3649 = vmatprep.subr.bf16.mxu0 0
        %3650 = vmatpush1.bf16.msra.mxu0 0
        %3651 = vmatprep.subr.bf16.mxu0 0
        %3652 = vmatpush1.bf16.msra.mxu0 0
        %3653 = vmatprep.subr.bf16.mxu0 0
        %3654 = vmatpush1.bf16.msra.mxu0 0
        %3655 = vmatprep.subr.bf16.mxu0 0
        %3656 = vmatpush1.bf16.msra.mxu0 0
        %3657 = vmatprep.subr.bf16.mxu0 0
        %3658 = vmatpush1.bf16.msra.mxu0 0
        %3659 = vmatprep.subr.bf16.mxu0 0
        %3660 = vmatpush1.bf16.msra.mxu0 0
        %3661 = vmatprep.subr.bf16.mxu0 0
        %3662 = vmatpush1.bf16.msra.mxu0 0
        %3663 = vmatprep.subr.bf16.mxu0 0
        %3664 = vmatpush1.bf16.msra.mxu0 0
        %3665 = vmatprep.mubr.bf16.mxu0 0
        %3666 = vmatmul.mubr.bf16.gmra.mrb[0].mxu0 %v3583
        %v3667 = vpop.f32.mrb[0].mxu0
        %v3668 = vadd.f32 0.0, %v3667
        %v3669 = vpop.f32.mrb[0].mxu0
        %v3670 = vpop.f32.mrb[0].mxu0
        %v3671 = vpop.f32.mrb[0].mxu0
        %3672 = vdwg.mxu0
        %v3673 = vadd.f32 %v3565, %v3668
        %s3674 = scalar_lea.vmem %s13, 384
        %v3675 = vld [vmem:[%s3674] sm:$0xf]
        %v3676 = vld [vmem:[%s3674 + $0x4] sm:$0xf]
        %v3677 = vld [vmem:[%s3674 + $0x8] sm:$0xf]
        %v3678 = vld [vmem:[%s3674 + $0xc] sm:$0xf]
        %v3679 = vld [vmem:[%s3674 + $0x10] sm:$0xf]
        %v3680 = vld [vmem:[%s3674 + $0x14] sm:$0xf]
        %v3681 = vld [vmem:[%s3674 + $0x18] sm:$0xf]
        %v3682 = vld [vmem:[%s3674 + $0x1c] sm:$0xf]
        %v3683 = vld [vmem:[%s3674 + $0x20] sm:$0xf]
        %v3684 = vld [vmem:[%s3674 + $0x24] sm:$0xf]
        %v3685 = vld [vmem:[%s3674 + $0x28] sm:$0xf]
        %v3686 = vld [vmem:[%s3674 + $0x2c] sm:$0xf]
        %v3687 = vld [vmem:[%s3674 + $0x30] sm:$0xf]
        %v3688 = vld [vmem:[%s3674 + $0x34] sm:$0xf]
        %v3689 = vld [vmem:[%s3674 + $0x38] sm:$0xf]
        %v3690 = vld [vmem:[%s3674 + $0x3c] sm:$0xf]
        %v3691 = vrot.slane %v3025, 3
        %v3709 = vunpack.c.l.b16 %v3675
        %v3710 = vunpack.c.l.b16 %v3676
        %v3711 = vunpack.c.l.b16 %v3677
        %v3712 = vunpack.c.l.b16 %v3678
        %v3713 = vunpack.c.l.b16 %v3679
        %v3714 = vunpack.c.l.b16 %v3680
        %v3715 = vunpack.c.l.b16 %v3681
        %v3716 = vunpack.c.l.b16 %v3682
        %v3717 = vunpack.c.l.b16 %v3683
        %v3718 = vunpack.c.l.b16 %v3684
        %v3719 = vunpack.c.l.b16 %v3685
        %v3720 = vunpack.c.l.b16 %v3686
        %v3721 = vunpack.c.l.b16 %v3687
        %v3722 = vunpack.c.l.b16 %v3688
        %v3723 = vunpack.c.l.b16 %v3689
        %v3724 = vunpack.c.l.b16 %v3690
        %v3725 = vpack.c.b16 %v3710, %v3709
        %v3726 = vpack.c.b16 %v3712, %v3711
        %v3727 = vpack.c.b16 %v3714, %v3713
        %v3728 = vpack.c.b16 %v3716, %v3715
        %v3729 = vpack.c.b16 %v3718, %v3717
        %v3730 = vpack.c.b16 %v3720, %v3719
        %v3731 = vpack.c.b16 %v3722, %v3721
        %v3732 = vpack.c.b16 %v3724, %v3723
        %3741 = vmatprep.subr.bf16.mxu0 0
        %3742 = vmatpush1.bf16.msra.mxu0 %v3725
        %3743 = vmatprep.subr.bf16.mxu0 0
        %3744 = vmatpush1.bf16.msra.mxu0 %v3726
        %3745 = vmatprep.subr.bf16.mxu0 0
        %3746 = vmatpush1.bf16.msra.mxu0 %v3727
        %3747 = vmatprep.subr.bf16.mxu0 0
        %3748 = vmatpush1.bf16.msra.mxu0 %v3728
        %3749 = vmatprep.subr.bf16.mxu0 0
        %3750 = vmatpush1.bf16.msra.mxu0 %v3729
        %3751 = vmatprep.subr.bf16.mxu0 0
        %3752 = vmatpush1.bf16.msra.mxu0 %v3730
        %3753 = vmatprep.subr.bf16.mxu0 0
        %3754 = vmatpush1.bf16.msra.mxu0 %v3731
        %3755 = vmatprep.subr.bf16.mxu0 0
        %3756 = vmatpush1.bf16.msra.mxu0 %v3732
        %3757 = vmatprep.subr.bf16.mxu0 0
        %3758 = vmatpush1.bf16.msra.mxu0 0
        %3759 = vmatprep.subr.bf16.mxu0 0
        %3760 = vmatpush1.bf16.msra.mxu0 0
        %3761 = vmatprep.subr.bf16.mxu0 0
        %3762 = vmatpush1.bf16.msra.mxu0 0
        %3763 = vmatprep.subr.bf16.mxu0 0
        %3764 = vmatpush1.bf16.msra.mxu0 0
        %3765 = vmatprep.subr.bf16.mxu0 0
        %3766 = vmatpush1.bf16.msra.mxu0 0
        %3767 = vmatprep.subr.bf16.mxu0 0
        %3768 = vmatpush1.bf16.msra.mxu0 0
        %3769 = vmatprep.subr.bf16.mxu0 0
        %3770 = vmatpush1.bf16.msra.mxu0 0
        %3771 = vmatprep.subr.bf16.mxu0 0
        %3772 = vmatpush1.bf16.msra.mxu0 0
        %3773 = vmatprep.mubr.bf16.mxu0 0
        %3774 = vmatmul.mubr.bf16.gmra.mrb[0].mxu0 %v3691
        %v3775 = vpop.f32.mrb[0].mxu0
        %v3776 = vadd.f32 0.0, %v3775
        %v3777 = vpop.f32.mrb[0].mxu0
        %v3778 = vpop.f32.mrb[0].mxu0
        %v3779 = vpop.f32.mrb[0].mxu0
        %3780 = vdwg.mxu0
        %v3781 = vadd.f32 %v3673, %v3776
        %s3782 = scalar_lea.vmem %s13, 448
        %v3783 = vld [vmem:[%s3782] sm:$0xf]
        %v3784 = vld [vmem:[%s3782 + $0x4] sm:$0xf]
        %v3785 = vld [vmem:[%s3782 + $0x8] sm:$0xf]
        %v3786 = vld [vmem:[%s3782 + $0xc] sm:$0xf]
        %v3787 = vld [vmem:[%s3782 + $0x10] sm:$0xf]
        %v3788 = vld [vmem:[%s3782 + $0x14] sm:$0xf]
        %v3789 = vld [vmem:[%s3782 + $0x18] sm:$0xf]
        %v3790 = vld [vmem:[%s3782 + $0x1c] sm:$0xf]
        %v3791 = vld [vmem:[%s3782 + $0x20] sm:$0xf]
        %v3792 = vld [vmem:[%s3782 + $0x24] sm:$0xf]
        %v3793 = vld [vmem:[%s3782 + $0x28] sm:$0xf]
        %v3794 = vld [vmem:[%s3782 + $0x2c] sm:$0xf]
        %v3795 = vld [vmem:[%s3782 + $0x30] sm:$0xf]
        %v3796 = vld [vmem:[%s3782 + $0x34] sm:$0xf]
        %v3797 = vld [vmem:[%s3782 + $0x38] sm:$0xf]
        %v3798 = vld [vmem:[%s3782 + $0x3c] sm:$0xf]
        %v3799 = vrot.slane %v3149, 3
        %v3817 = vunpack.c.l.b16 %v3783
        %v3818 = vunpack.c.l.b16 %v3784
        %v3819 = vunpack.c.l.b16 %v3785
        %v3820 = vunpack.c.l.b16 %v3786
        %v3821 = vunpack.c.l.b16 %v3787
        %v3822 = vunpack.c.l.b16 %v3788
        %v3823 = vunpack.c.l.b16 %v3789
        %v3824 = vunpack.c.l.b16 %v3790
        %v3825 = vunpack.c.l.b16 %v3791
        %v3826 = vunpack.c.l.b16 %v3792
        %v3827 = vunpack.c.l.b16 %v3793
        %v3828 = vunpack.c.l.b16 %v3794
        %v3829 = vunpack.c.l.b16 %v3795
        %v3830 = vunpack.c.l.b16 %v3796
        %v3831 = vunpack.c.l.b16 %v3797
        %v3832 = vunpack.c.l.b16 %v3798
        %v3833 = vpack.c.b16 %v3818, %v3817
        %v3834 = vpack.c.b16 %v3820, %v3819
        %v3835 = vpack.c.b16 %v3822, %v3821
        %v3836 = vpack.c.b16 %v3824, %v3823
        %v3837 = vpack.c.b16 %v3826, %v3825
        %v3838 = vpack.c.b16 %v3828, %v3827
        %v3839 = vpack.c.b16 %v3830, %v3829
        %v3840 = vpack.c.b16 %v3832, %v3831
        %3849 = vmatprep.subr.bf16.mxu0 0
        %3850 = vmatpush1.bf16.msra.mxu0 %v3833
        %3851 = vmatprep.subr.bf16.mxu0 0
        %3852 = vmatpush1.bf16.msra.mxu0 %v3834
        %3853 = vmatprep.subr.bf16.mxu0 0
        %3854 = vmatpush1.bf16.msra.mxu0 %v3835
        %3855 = vmatprep.subr.bf16.mxu0 0
        %3856 = vmatpush1.bf16.msra.mxu0 %v3836
        %3857 = vmatprep.subr.bf16.mxu0 0
        %3858 = vmatpush1.bf16.msra.mxu0 %v3837
        %3859 = vmatprep.subr.bf16.mxu0 0
        %3860 = vmatpush1.bf16.msra.mxu0 %v3838
        %3861 = vmatprep.subr.bf16.mxu0 0
        %3862 = vmatpush1.bf16.msra.mxu0 %v3839
        %3863 = vmatprep.subr.bf16.mxu0 0
        %3864 = vmatpush1.bf16.msra.mxu0 %v3840
        %3865 = vmatprep.subr.bf16.mxu0 0
        %3866 = vmatpush1.bf16.msra.mxu0 0
        %3867 = vmatprep.subr.bf16.mxu0 0
        %3868 = vmatpush1.bf16.msra.mxu0 0
        %3869 = vmatprep.subr.bf16.mxu0 0
        %3870 = vmatpush1.bf16.msra.mxu0 0
        %3871 = vmatprep.subr.bf16.mxu0 0
        %3872 = vmatpush1.bf16.msra.mxu0 0
        %3873 = vmatprep.subr.bf16.mxu0 0
        %3874 = vmatpush1.bf16.msra.mxu0 0
        %3875 = vmatprep.subr.bf16.mxu0 0
        %3876 = vmatpush1.bf16.msra.mxu0 0
        %3877 = vmatprep.subr.bf16.mxu0 0
        %3878 = vmatpush1.bf16.msra.mxu0 0
        %3879 = vmatprep.subr.bf16.mxu0 0
        %3880 = vmatpush1.bf16.msra.mxu0 0
        %3881 = vmatprep.mubr.bf16.mxu0 0
        %3882 = vmatmul.mubr.bf16.gmra.mrb[0].mxu0 %v3799
        %v3883 = vpop.f32.mrb[0].mxu0
        %v3884 = vadd.f32 0.0, %v3883
        %v3885 = vpop.f32.mrb[0].mxu0
        %v3886 = vpop.f32.mrb[0].mxu0
        %v3887 = vpop.f32.mrb[0].mxu0
        %3888 = vdwg.mxu0
        %v3889 = vadd.f32 %v3781, %v3884
        %vm3890 = vcmask 73728
        %3891 = vst.msk [vmem:[%s540] sm:$0x1] %vm3890, %v3889
        %s3892 = sand.u32 %s401, 1
        %s3893 = scalar_lea.sflag [#allocation3], %s3892
        %s3894 = sand.u32 %s401, 1
        %s3895 = scalar_lea.vmem [#allocation2], %s3894
        // Predicated region
        $region89: #{fashion_mnist_forward.1} parent=87 // pred_check
          %p3896 = pneg %p411
        $region90: #{fashion_mnist_forward.1} parent=87 // pred_check_branch
          %3898 = sbr.rel (%p3896) target = $region92
        $region91: #{fashion_mnist_forward.1} parent=87 // pred_region
          %s3900 = ssub.s32 16, 16
          %3901 = vsyncadd %s3893, %s3900
          %s3902 = smul.addr %s31, 16
          %s3903 = scalar_lea.hbm %s17, %s3902
          %s3905 = sshll.u32 %s3895, 4
          %s3906 = int_to_ptr.vmem [resolvable:$true] %s3905
          %3908 = dma.vmem_to_hbm [thread:$0]  %s3906, 16, %s3903, %s3893
        $region92: #{fashion_mnist_forward.1} parent=87 // pred_fallthru
          _
      $region88: #{fashion_mnist_forward.1} parent=5 // pred_fallthru
        _
      %p3909 = scmp.le.s32.totalorder 2, %s26
      // Predicated region
      $region93: #{fashion_mnist_forward.1} parent=5 // pred_check
        %p3910 = pneg %p3909
      $region94: #{fashion_mnist_forward.1} parent=5 // pred_check_branch
        %3912 = sbr.rel (%p3910) target = $region96
      $region95: #{fashion_mnist_forward.1} parent=5 // pred_region
        %s3913 = ssub.s32 %s26, 2
        // Predicated region
        $region97: #{fashion_mnist_forward.1} parent=95 // pred_check
          %p3914 = pneg %p417
        $region98: #{fashion_mnist_forward.1} parent=95 // pred_check_branch
          %3916 = sbr.rel (%p3914) target = $region100
        $region99: #{fashion_mnist_forward.1} parent=95 // pred_region
          %s3917 = sand.u32 %s402, 1
          %s3918 = scalar_lea.sflag [#allocation3], %s3917
          %s3919 = sand.u32 %s402, 1
          %s3920 = scalar_lea.vmem [#allocation2], %s3919
          %3921 = dma.done %s3918, 16
        $region100: #{fashion_mnist_forward.1} parent=95 // pred_fallthru
          _
      $region96: #{fashion_mnist_forward.1} parent=5 // pred_fallthru
        _
    $region6: #{fashion_mnist_forward.1} parent=1 // loop_footer
      %s30 = sadd.s32 1, %s26
    $region7: #{fashion_mnist_forward.1} parent=1 // loop_footer_branch
      %25 = sbr.rel target = $region3
    $region8: #{fashion_mnist_forward.1} parent=1 // loop_exit
      _
    %3922 = vsyncpa [#allocation3], 1
    %s3923 = scalar_lea.sflag [#allocation3], 1
    %3924 = vsyncpa %s3923, 1

</llo_original>
